<compile_context>
chip_gen: v7x
topology: tpu7x:2x2x1
jax: 0.10.0
libtpu: 0.0.40
codegen_flags: <defaults>
</compile_context>

<pallas_src>
import jax
import jax.numpy as jnp
from jax.experimental import pallas as pl
from jax.experimental.pallas import tpu as pltpu

_TARGET_M_ROWS = 512            # aim for >= ~512 matmul rows (TH*OW) per grid step
_MAX_TH = 32                    # cap on rows per tile
_VMEM_STEP_BUDGET = 10 * 1024 * 1024   # per-step working-set target (pre double-buffer)


def _pick_th(oh, ow, kh, n_batch, row_bytes):
    halo = max(kh - 1, 1)
    th = max(1, _TARGET_M_ROWS // max(ow, 1))
    th = min(th, _MAX_TH, max(oh, 1))
    # expose >= ~4 grid steps (megacore on v7x, pipeline warm-up amortisation)
    want_blocks = max(1, -(-4 // max(n_batch, 1)))
    th = min(th, max(1, -(-oh // want_blocks)))
    # keep the working set well inside scoped VMEM (matters on v7x: 64 MiB phys)
    while th > 1 and th * row_bytes > _VMEM_STEP_BUDGET:
        th = max(1, th // 2)
    # halo block indexing requires TH to be a multiple of (kh - 1)
    th = max(1, -(-th // halo) * halo)
    return th


# --------------------------------------------------------------------------
# Fused "windowed matmul" kernel:
#   stride-1 conv (optional symmetric zero pad) of x:(N, H0, W0, C) with tap
#   weights (kh*kw, C, OC), + bias + PReLU (+ optional fused residual).
#   One (TH*OW, C) x (C, OC) dot per tap, window built in VMEM.
# --------------------------------------------------------------------------
def _fused_conv_bias_prelu(x, w_taps, bias, alpha, *, kh, kw, pad=0,
                           residual=None, res_sign=1, out_dtype=jnp.bfloat16):
    N, H0, W0, C = x.shape
    ntaps, Cw, OC = w_taps.shape
    assert ntaps == kh * kw and Cw == C
    Hin, Win = H0 + 2 * pad, W0 + 2 * pad
    OH, OW = Hin - kh + 1, Win - kw + 1
    halo = kh - 1
    has_halo = halo > 0
    has_res = residual is not None
    out_isz = jnp.dtype(out_dtype).itemsize

    row_bytes = (3 * Win * C * 2
                 + OW * OC * (4 + 2 * out_isz + (4 if has_res else 0)))
    TH = _pick_th(OH, OW, kh, N, row_bytes)
    n_hb = pl.cdiv(OH, TH)
    oh_pad = n_hb * TH
    in_rows = oh_pad + halo            # exactly covers every block + its halo rows
    M = TH * OW

    # single pad: spatial zero-pad merged with the block/halo row padding;
    # activations hit HBM as bf16 (halves DMA traffic vs f32)
    xb = jnp.pad(x.astype(jnp.bfloat16),
                 ((0, 0), (pad, in_rows - H0 - pad), (pad, pad), (0, 0)))

    w_mx = w_taps.astype(jnp.bfloat16)                 # MXU operands in bf16
    b2 = bias.reshape(1, OC).astype(jnp.float32)       # f32 epilogue
    a1 = jnp.reshape(alpha, (1,)).astype(jnp.float32)  # PReLU slope -> SMEM

    if has_res:
        res = residual.astype(jnp.bfloat16)
        if oh_pad > OH:
            res = jnp.pad(res, ((0, 0), (0, oh_pad - OH), (0, 0), (0, 0)))

    def kernel(*refs):
        it = iter(refs)
        xa_ref = next(it)
        xb_ref = next(it) if has_halo else None
        w_ref = next(it)
        b_ref = next(it)
        res_ref = next(it) if has_res else None
        a_ref = next(it)
        o_ref = next(it)
        x_scr = next(it) if has_halo else None

        if has_halo:                    # stage main + halo rows contiguously in VMEM
            x_scr[0:TH, :, :] = xa_ref[0]
            x_scr[TH:TH + halo, :, :] = xb_ref[0]

        acc = None
        for dy in range(kh):            # one whole-tile dot per (dy, dx) tap
            for dx in range(kw):
                if has_halo:
                    win = x_scr[dy:dy + TH, dx:dx + OW, :]
                elif kw > 1:
                    win = xa_ref[0, :, dx:dx + OW, :]
                else:
                    win = xa_ref[0]
                part = jnp.dot(win.reshape(M, C), w_ref[dy * kw + dx],
                               preferred_element_type=jnp.float32)
                acc = part if acc is None else acc + part

        y = acc + b_ref[...]                               # (M, OC) f32
        alpha_s = a_ref[0]
        y = jnp.where(y >= 0.0, y, alpha_s * y)             # PReLU (f32)
        y = y.reshape(TH, OW, OC)
        if has_res:
            r = res_ref[0].astype(jnp.float32)
            y = y - r if res_sign < 0 else y + r             # fused residual
        o_ref[0] = y.astype(o_ref.dtype)                     # one block store

    in_specs = [pl.BlockSpec((1, TH, Win, C), lambda n, h: (n, h, 0, 0))]
    inputs = [xb]
    if has_halo:
        th_over_halo = TH // halo
        # same array, tiny (kh-1)-row halo view starting at row (h+1)*TH
        in_specs.append(pl.BlockSpec(
            (1, halo, Win, C), lambda n, h: (n, (h + 1) * th_over_halo, 0, 0)))
        inputs.append(xb)
    in_specs.append(pl.BlockSpec((ntaps, C, OC), lambda n, h: (0, 0, 0)))
    inputs.append(w_mx)
    in_specs.append(pl.BlockSpec((1, OC), lambda n, h: (0, 0)))
    inputs.append(b2)
    if has_res:
        in_specs.append(pl.BlockSpec((1, TH, OW, OC), lambda n, h: (n, h, 0, 0)))
        inputs.append(res)
    in_specs.append(pl.BlockSpec(memory_space=pltpu.MemorySpace.SMEM))
    inputs.append(a1)

    scratch_shapes = ([pltpu.VMEM((TH + halo, Win, C), jnp.bfloat16)]
                      if has_halo else [])

    m_rows = int(N) * int(oh_pad) * int(OW)
    cost = pl.CostEstimate(
        flops=int(2 * m_rows * kh * kw * C * OC),
        transcendentals=0,
        bytes_accessed=int(
            xb.size * 2
            + (N * n_hb * halo * Win * C * 2 if has_halo else 0)
            + w_mx.size * 2 + b2.size * 4
            + (res.size * 2 if has_res else 0)
            + m_rows * OC * out_isz))

    blk_bytes = (2 * TH * Win * C * 2 + 2 * halo * Win * C * 2     # x + halo (x2 buf)
                 + 2 * (ntaps * C * OC * 2 + OC * 4)               # weights + bias
                 + (2 * TH * OW * OC * 2 if has_res else 0)        # residual
                 + 2 * TH * OW * OC * out_isz                      # output
                 + (TH + halo) * Win * C * 2                       # VMEM scratch
                 + 2 * M * OC * 4)                                 # f32 accumulator headroom
    vmem_limit = int(min(64 * 1024 * 1024, max(32 * 1024 * 1024, 2 * blk_bytes)))

    out = pl.pallas_call(
        kernel,
        out_shape=jax.ShapeDtypeStruct((N, oh_pad, OW, OC), out_dtype),
        grid=(N, n_hb),
        in_specs=in_specs,
        out_specs=pl.BlockSpec((1, TH, OW, OC), lambda n, h: (n, h, 0, 0)),
        scratch_shapes=scratch_shapes,
        compiler_params=pltpu.CompilerParams(
            dimension_semantics=("parallel", "parallel"),
            vmem_limit_bytes=vmem_limit),
        cost_estimate=cost,
    )(*inputs)
    if oh_pad > OH:
        out = out[:, :OH]
    return out


# --------------------------------------------------------------------------
# Weight re-arrangements (pure layout, traced once under jit)
# --------------------------------------------------------------------------
def _expand_deconv_weight(w_iohw):
    """ConvTranspose2d(nf, nf, 8, stride=4, pad=2) weight (IC, OC, 8, 8) ->
    tap weights (3*3, IC, 16*OC) for a 3x3 stride-1 conv on the 1-padded
    low-res input producing the 16 (4x4) sub-pixel output phases
    (output channel layout (ry, rx, oc), oc minor)."""
    IC, OC, K, _ = w_iohw.shape
    d = jnp.arange(3)
    r = jnp.arange(4)
    k_tap = r[None, :] + (K - 2) - 4 * d[:, None]          # (3, 4) kernel index
    valid = (k_tap >= 0) & (k_tap < K)
    k_clip = jnp.clip(k_tap, 0, K - 1)
    w_t = jnp.transpose(w_iohw, (2, 3, 0, 1))              # (K, K, IC, OC)
    g = w_t[k_clip[:, None, :, None], k_clip[None, :, None, :]]  # (3,3,4,4,IC,OC)
    mask = valid[:, None, :, None] & valid[None, :, None, :]
    g = g * mask[..., None, None].astype(g.dtype)
    g = jnp.transpose(g, (0, 1, 4, 2, 3, 5))               # (dy, dx, IC, ry, rx, OC)
    return g.reshape(9, IC, 16 * OC)


def _expand_conv_phase_weight(w_oihw):
    """Conv2d(nf, nf, 8, stride=4, pad=2) applied to depth_to_space(h0p, 4)
    folded into a 3x3 stride-1 conv directly on the 1-padded phase tensor h0p
    (input channel layout (ry, rx, ic), ic minor):
        ky = 4*ey + ry - 2, kx = 4*ex + rx - 2 (zero tap when outside [0, 8))."""
    OC, IC, K, _ = w_oihw.shape
    e = jnp.arange(3)
    r = jnp.arange(4)
    k_idx = 4 * e[:, None] + r[None, :] - 2                # (3, 4)
    valid = (k_idx >= 0) & (k_idx < K)
    k_clip = jnp.clip(k_idx, 0, K - 1)
    w_t = jnp.transpose(w_oihw, (2, 3, 1, 0))              # (K, K, IC, OC)
    g = w_t[k_clip[:, None, :, None], k_clip[None, :, None, :]]  # (ey,ex,ry,rx,IC,OC)
    mask = valid[:, None, :, None] & valid[None, :, None, :]
    g = g * mask[..., None, None].astype(g.dtype)
    return g.reshape(9, 16 * IC, OC)


def _depth_to_space(x_phase, r, c):
    N, H, W, _ = x_phase.shape
    x6 = x_phase.reshape(N, H, W, r, r, c)
    return jnp.transpose(x6, (0, 1, 3, 2, 4, 5)).reshape(N, H * r, W * r, c)


# --------------------------------------------------------------------------
# D_UpBlock forward
# --------------------------------------------------------------------------
def d_upblock_forward(x_nchw, p, stride=4, padding=2):
    assert stride == 4 and padding == 2, "lowering specialized to (8, 4, 2)"
    x0 = jnp.transpose(x_nchw, (0, 2, 3, 1))                         # NHWC
    N, H, W, Cin = x0.shape
    nf = p["conv_w"].shape[0]

    # 1x1 ConvBlock (channel mix) as a row-tiled matmul
    w1 = jnp.transpose(p["conv_w"][:, :, 0, 0], (1, 0))[None]        # (1, Cin, nf)
    x1 = _fused_conv_bias_prelu(
        x0.reshape(1, N * H, W, Cin), w1, p["conv_b"], p["conv_a"],
        kh=1, kw=1, pad=0, out_dtype=jnp.bfloat16)
    x1 = x1.reshape(N, H, W, nf)

    # up_conv1: ConvTranspose(8,4,2) as sub-pixel 3x3 conv -> 16 phases (bf16)
    w_up1 = _expand_deconv_weight(p["up1_w"])
    h0p = _fused_conv_bias_prelu(
        x1, w_up1, jnp.tile(p["up1_b"], 16), p["up1_a"],
        kh=3, kw=3, pad=1, out_dtype=jnp.bfloat16)                   # (N,H,W,16nf)

    # up_conv2: Conv(8,4,2) on the hi-res h0 folded into a 3x3 conv on the
    # phase tensor h0p (no d2s/pad/s2d HBM round trip); residual (l0 - x) fused.
    w_up2 = _expand_conv_phase_weight(p["up2_w"])
    d = _fused_conv_bias_prelu(
        h0p, w_up2, p["up2_b"], p["up2_a"], kh=3, kw=3, pad=1,
        residual=x1, res_sign=-1, out_dtype=jnp.bfloat16)            # (N,H,W,nf)

    # up_conv3: sub-pixel deconv, residual (h1 + h0) fused in phase space
    w_up3 = _expand_deconv_weight(p["up3_w"])
    outp = _fused_conv_bias_prelu(
        d, w_up3, jnp.tile(p["up3_b"], 16), p["up3_a"],
        kh=3, kw=3, pad=1, residual=h0p, res_sign=+1,
        out_dtype=jnp.float32)                                       # (N,H,W,16nf)
    out = _depth_to_space(outp, 4, nf)                               # (N,4H,4W,nf)
    return jnp.transpose(out, (0, 3, 1, 2))                          # NCHW


# --------------------------------------------------------------------------
# Parameters (mirrors the PyTorch module; ConvBlock/DeconvBlock are
# constructed with the activation string in the `bias` slot -> bias=True and
# the default PReLU everywhere).
# --------------------------------------------------------------------------
def init_params(key, num_filter, num_stages, k=8):
    ks = jax.random.split(key, 8)
    c_in = num_filter * num_stages

    def u(kk, shape, fan_in):
        bound = 1.0 / (fan_in ** 0.5)
        return jax.random.uniform(kk, shape, jnp.float32, -bound, bound)

    nf = num_filter
    return {
        "conv_w": u(ks[0], (nf, c_in, 1, 1), c_in),
        "conv_b": u(ks[1], (nf,), c_in),
        "conv_a": jnp.array(0.25, jnp.float32),
        "up1_w": u(ks[2], (nf, nf, k, k), nf * k * k),
        "up1_b": u(ks[3], (nf,), nf * k * k),
        "up1_a": jnp.array(0.20, jnp.float32),
        "up2_w": u(ks[4], (nf, nf, k, k), nf * k * k),
        "up2_b": u(ks[5], (nf,), nf * k * k),
        "up2_a": jnp.array(0.30, jnp.float32),
        "up3_w": u(ks[6], (nf, nf, k, k), nf * k * k),
        "up3_b": u(ks[7], (nf,), nf * k * k),
        "up3_a": jnp.array(0.15, jnp.float32),
    }


# --------------------------------------------------------------------------
# Pure-JAX reference (lax convolutions, bf16 operands / f32 accumulation to
# match the kernels' MXU precision)
# --------------------------------------------------------------------------
def _prelu(x, a):
    return jnp.where(x >= 0, x, a * x)


def _ref_conv(x, w_oihw, b, a, stride, padding):
    w_hwio = jnp.transpose(w_oihw, (2, 3, 1, 0)).astype(jnp.bfloat16)
    y = jax.lax.conv_general_dilated(
        x.astype(jnp.bfloat16), w_hwio, (stride, stride),
        [(padding, padding)] * 2,
        dimension_numbers=("NHWC", "HWIO", "NHWC"),
        preferred_element_type=jnp.float32)
    return _prelu(y + b, a)


def _ref_deconv(x, w_iohw, b, a, stride, padding):
    k = w_iohw.shape[-1]
    w_conv = jnp.transpose(w_iohw[:, :, ::-1, ::-1], (1, 0, 2, 3))
    w_hwio = jnp.transpose(w_conv, (2, 3, 1, 0)).astype(jnp.bfloat16)
    y = jax.lax.conv_general_dilated(
        x.astype(jnp.bfloat16), w_hwio, (1, 1),
        [(k - 1 - padding, k - 1 - padding)] * 2,
        lhs_dilation=(stride, stride),
        dimension_numbers=("NHWC", "HWIO", "NHWC"),
        preferred_element_type=jnp.float32)
    return _prelu(y + b, a)


def d_upblock_reference(x_nchw, p, stride=4, padding=2):
    x = jnp.transpose(x_nchw, (0, 2, 3, 1)).astype(jnp.float32)
    x = _ref_conv(x, p["conv_w"], p["conv_b"], p["conv_a"], 1, 0)
    h0 = _ref_deconv(x, p["up1_w"], p["up1_b"], p["up1_a"], stride, padding)
    l0 = _ref_conv(h0, p["up2_w"], p["up2_b"], p["up2_a"], stride, padding)
    h1 = _ref_deconv(l0 - x, p["up3_w"], p["up3_b"], p["up3_a"], stride, padding)
    return jnp.transpose(h1 + h0, (0, 3, 1, 2))


# --------------------------------------------------------------------------
if __name__ == "__main__":
    key = jax.random.PRNGKey(0)
    kx, kp = jax.random.split(key)

    num_filter, num_stages = 4, 1
    N, H, W = 2, 8, 8
    x = jax.random.normal(kx, (N, num_filter * num_stages, H, W), jnp.float32)
    params = init_params(kp, num_filter, num_stages)

    out = jax.block_until_ready(jax.jit(d_upblock_forward)(x, params))
    ref = jax.block_until_ready(d_upblock_reference(x, params))

    assert out.shape == (N, num_filter, H * 4, W * 4), out.shape
    # bf16 MXU operands / bf16 intermediates with f32 accumulation on both sides
    err = float(jnp.max(jnp.abs(out - ref)))
    assert jnp.allclose(out, ref, atol=3e-2, rtol=3e-2), err

    print("KERNEL_OK")
</pallas_src>

<mosaic_0001>
module attributes {stable_mosaic.version = 11 : i64} {
  func.func @kernel(%arg0: i32, %arg1: i32, %arg2: memref<1x4x8x4xbf16, #tpu.memory_space<vmem>>, %arg3: memref<1x4x4xbf16, #tpu.memory_space<vmem>>, %arg4: memref<1x4xf32, #tpu.memory_space<vmem>>, %arg5: memref<1xf32, #tpu.memory_space<smem>>, %arg6: memref<1x4x8x4xbf16, #tpu.memory_space<vmem>>) attributes {dimension_semantics = [#tpu.dimension_semantics<parallel>, #tpu.dimension_semantics<parallel>], iteration_bounds = array<i64: 1, 4>, scalar_prefetch = 0 : i64, scratch_operands = 0 : i64, tpu.core_type = #tpu.core_type<tc>, window_params = [{transform_indices = @transform_0, window_bounds = array<i64: 1, 4, 8, 4>}, {pipeline_mode = #tpu.pipeline_mode<synchronous>, transform_indices = @transform_1, window_bounds = array<i64: 1, 4, 4>}, {pipeline_mode = #tpu.pipeline_mode<synchronous>, transform_indices = @transform_2, window_bounds = array<i64: 1, 4>}, {transform_indices = @transform_3, window_bounds = array<i64: 1>}, {transform_indices = @transform_4, window_bounds = array<i64: 1, 4, 8, 4>}]} {
    %c0 = arith.constant 0 : index
    %c0_0 = arith.constant 0 : index
    %c0_1 = arith.constant 0 : index
    %c0_2 = arith.constant 0 : index
    %0 = vector.load %arg2[%c0, %c0_0, %c0_1, %c0_2] : memref<1x4x8x4xbf16, #tpu.memory_space<vmem>>, vector<1x4x8x4xbf16>
    %1 = vector.shape_cast %0 : vector<1x4x8x4xbf16> to vector<4x8x4xbf16>
    %2 = vector.shape_cast %1 : vector<4x8x4xbf16> to vector<32x4xbf16>
    %c0_3 = arith.constant 0 : index
    %c0_4 = arith.constant 0 : index
    %c0_5 = arith.constant 0 : index
    %3 = vector.load %arg3[%c0_3, %c0_4, %c0_5] : memref<1x4x4xbf16, #tpu.memory_space<vmem>>, vector<1x4x4xbf16>
    %4 = vector.shape_cast %3 : vector<1x4x4xbf16> to vector<4x4xbf16>
    %cst = arith.constant dense<0.000000e+00> : vector<32x4xf32>
    %5 = tpu.matmul %2, %4, %cst {dimension_numbers = #tpu.dot_dimension_numbers<[1], [0], [0], [1], [0, 0, 1, 1], [], []>} : vector<32x4xbf16>, vector<4x4xbf16>, vector<32x4xf32> -> vector<32x4xf32>
    %c0_6 = arith.constant 0 : index
    %c0_7 = arith.constant 0 : index
    %6 = vector.load %arg4[%c0_6, %c0_7] : memref<1x4xf32, #tpu.memory_space<vmem>>, vector<1x4xf32>
    %7 = vector.broadcast %6 : vector<1x4xf32> to vector<32x4xf32>
    %8 = arith.addf %5, %7 : vector<32x4xf32>
    %c0_8 = arith.constant 0 : index
    %9 = memref.load %arg5[%c0_8] : memref<1xf32, #tpu.memory_space<smem>>
    %cst_9 = arith.constant 0.000000e+00 : f32
    %10 = vector.broadcast %cst_9 : f32 to vector<32x4xf32>
    %11 = arith.cmpf oge, %8, %10 : vector<32x4xf32>
    %12 = vector.broadcast %9 : f32 to vector<32x4xf32>
    %13 = arith.mulf %12, %8 : vector<32x4xf32>
    %14 = arith.select %11, %8, %13 : vector<32x4xi1>, vector<32x4xf32>
    %15 = vector.shape_cast %14 : vector<32x4xf32> to vector<4x8x4xf32>
    %16 = arith.truncf %15 : vector<4x8x4xf32> to vector<4x8x4xbf16>
    %c0_10 = arith.constant 0 : index
    %c0_11 = arith.constant 0 : index
    %c0_12 = arith.constant 0 : index
    %c0_13 = arith.constant 0 : index
    %17 = vector.load %arg6[%c0_10, %c0_11, %c0_12, %c0_13] : memref<1x4x8x4xbf16, #tpu.memory_space<vmem>>, vector<1x4x8x4xbf16>
    %18 = vector.shape_cast %17 : vector<1x4x8x4xbf16> to vector<4x8x4xbf16>
    %19 = vector.shape_cast %16 : vector<4x8x4xbf16> to vector<1x4x8x4xbf16>
    tpu.vector_store %arg6[%c0_10, %c0_11, %c0_12, %c0_13], %19 {strides = array<i32>} : memref<1x4x8x4xbf16, #tpu.memory_space<vmem>>, vector<1x4x8x4xbf16>,
    return
  }
  func.func @transform_0(%arg0: i32, %arg1: i32) -> (i32, i32, i32, i32) {
    %c0_i32 = arith.constant 0 : i32
    %c0_i32_0 = arith.constant 0 : i32
    %c0_i32_1 = arith.constant 0 : i32
    return %arg0, %arg1, %c0_i32, %c0_i32_0 : i32, i32, i32, i32
  }
  func.func @transform_1(%arg0: i32, %arg1: i32) -> (i32, i32, i32) {
    %c0_i32 = arith.constant 0 : i32
    %c0_i32_0 = arith.constant 0 : i32
    %c0_i32_1 = arith.constant 0 : i32
    %c0_i32_2 = arith.constant 0 : i32
    return %c0_i32, %c0_i32_0, %c0_i32_1 : i32, i32, i32
  }
  func.func @transform_2(%arg0: i32, %arg1: i32) -> (i32, i32) {
    %c0_i32 = arith.constant 0 : i32
    %c0_i32_0 = arith.constant 0 : i32
    %c0_i32_1 = arith.constant 0 : i32
    return %c0_i32, %c0_i32_0 : i32, i32
  }
  func.func @transform_3(%arg0: i32, %arg1: i32) -> i32 {
    %c0_i32 = arith.constant 0 : i32
    %c0_i32_0 = arith.constant 0 : i32
    return %c0_i32 : i32
  }
  func.func @transform_4(%arg0: i32, %arg1: i32) -> (i32, i32, i32, i32) {
    %c0_i32 = arith.constant 0 : i32
    %c0_i32_0 = arith.constant 0 : i32
    %c0_i32_1 = arith.constant 0 : i32
    return %arg0, %arg1, %c0_i32, %c0_i32_0 : i32, i32, i32, i32
  }
}

module attributes {stable_mosaic.version = 11 : i64} {
  func.func @kernel(%arg0: i32, %arg1: i32, %arg2: memref<1x4x10x4xbf16, #tpu.memory_space<vmem>>, %arg3: memref<1x2x10x4xbf16, #tpu.memory_space<vmem>>, %arg4: memref<9x4x64xbf16, #tpu.memory_space<vmem>>, %arg5: memref<1x64xf32, #tpu.memory_space<vmem>>, %arg6: memref<1xf32, #tpu.memory_space<smem>>, %arg7: memref<1x4x8x64xbf16, #tpu.memory_space<vmem>>, %arg8: memref<6x10x4xbf16, #tpu.memory_space<vmem>>) attributes {dimension_semantics = [#tpu.dimension_semantics<parallel>, #tpu.dimension_semantics<parallel>], iteration_bounds = array<i64: 2, 2>, scalar_prefetch = 0 : i64, scratch_operands = 1 : i64, tpu.core_type = #tpu.core_type<tc>, window_params = [{transform_indices = @transform_0, window_bounds = array<i64: 1, 4, 10, 4>}, {transform_indices = @transform_1, window_bounds = array<i64: 1, 2, 10, 4>}, {pipeline_mode = #tpu.pipeline_mode<synchronous>, transform_indices = @transform_2, window_bounds = array<i64: 9, 4, 64>}, {pipeline_mode = #tpu.pipeline_mode<synchronous>, transform_indices = @transform_3, window_bounds = array<i64: 1, 64>}, {transform_indices = @transform_4, window_bounds = array<i64: 1>}, {transform_indices = @transform_5, window_bounds = array<i64: 1, 4, 8, 64>}]} {
    %c0 = arith.constant 0 : index
    %c0_0 = arith.constant 0 : index
    %c0_1 = arith.constant 0 : index
    %c0_2 = arith.constant 0 : index
    %0 = vector.load %arg2[%c0, %c0_0, %c0_1, %c0_2] : memref<1x4x10x4xbf16, #tpu.memory_space<vmem>>, vector<1x4x10x4xbf16>
    %1 = vector.shape_cast %0 : vector<1x4x10x4xbf16> to vector<4x10x4xbf16>
    %c0_3 = arith.constant 0 : index
    %c0_4 = arith.constant 0 : index
    %c0_5 = arith.constant 0 : index
    %2 = vector.load %arg8[%c0_3, %c0_4, %c0_5] : memref<6x10x4xbf16, #tpu.memory_space<vmem>>, vector<4x10x4xbf16>
    tpu.vector_store %arg8[%c0_3, %c0_4, %c0_5], %1 {strides = array<i32>} : memref<6x10x4xbf16, #tpu.memory_space<vmem>>, vector<4x10x4xbf16>,
    %c0_6 = arith.constant 0 : index
    %c0_7 = arith.constant 0 : index
    %c0_8 = arith.constant 0 : index
    %c0_9 = arith.constant 0 : index
    %3 = vector.load %arg3[%c0_6, %c0_7, %c0_8, %c0_9] : memref<1x2x10x4xbf16, #tpu.memory_space<vmem>>, vector<1x2x10x4xbf16>
    %4 = vector.shape_cast %3 : vector<1x2x10x4xbf16> to vector<2x10x4xbf16>
    %c4 = arith.constant 4 : index
    %c0_10 = arith.constant 0 : index
    %c0_11 = arith.constant 0 : index
    %5 = vector.load %arg8[%c4, %c0_10, %c0_11] : memref<6x10x4xbf16, #tpu.memory_space<vmem>>, vector<2x10x4xbf16>
    tpu.vector_store %arg8[%c4, %c0_10, %c0_11], %4 {strides = array<i32>} : memref<6x10x4xbf16, #tpu.memory_space<vmem>>, vector<2x10x4xbf16>,
    %c0_12 = arith.constant 0 : index
    %c0_13 = arith.constant 0 : index
    %c0_14 = arith.constant 0 : index
    %6 = vector.load %arg8[%c0_12, %c0_13, %c0_14] : memref<6x10x4xbf16, #tpu.memory_space<vmem>>, vector<4x8x4xbf16>
    %7 = vector.shape_cast %6 : vector<4x8x4xbf16> to vector<32x4xbf16>
    %c0_15 = arith.constant 0 : index
    %c0_16 = arith.constant 0 : index
    %c0_17 = arith.constant 0 : index
    %8 = vector.load %arg4[%c0_15, %c0_16, %c0_17] : memref<9x4x64xbf16, #tpu.memory_space<vmem>>, vector<1x4x64xbf16>
    %9 = vector.shape_cast %8 : vector<1x4x64xbf16> to vector<4x64xbf16>
    %cst = arith.constant dense<0.000000e+00> : vector<32x64xf32>
    %10 = tpu.matmul %7, %9, %cst {dimension_numbers = #tpu.dot_dimension_numbers<[1], [0], [0], [1], [0, 0, 1, 1], [], []>} : vector<32x4xbf16>, vector<4x64xbf16>, vector<32x64xf32> -> vector<32x64xf32>
    %c0_18 = arith.constant 0 : index
    %c1 = arith.constant 1 : index
    %c0_19 = arith.constant 0 : index
    %11 = vector.load %arg8[%c0_18, %c1, %c0_19] : memref<6x10x4xbf16, #tpu.memory_space<vmem>>, vector<4x8x4xbf16>
    %12 = vector.shape_cast %11 : vector<4x8x4xbf16> to vector<32x4xbf16>
    %c1_20 = arith.constant 1 : index
    %c0_21 = arith.constant 0 : index
    %c0_22 = arith.constant 0 : index
    %13 = vector.load %arg4[%c1_20, %c0_21, %c0_22] : memref<9x4x64xbf16, #tpu.memory_space<vmem>>, vector<1x4x64xbf16>
    %14 = vector.shape_cast %13 : vector<1x4x64xbf16> to vector<4x64xbf16>
    %cst_23 = arith.constant dense<0.000000e+00> : vector<32x64xf32>
    %15 = tpu.matmul %12, %14, %cst_23 {dimension_numbers = #tpu.dot_dimension_numbers<[1], [0], [0], [1], [0, 0, 1, 1], [], []>} : vector<32x4xbf16>, vector<4x64xbf16>, vector<32x64xf32> -> vector<32x64xf32>
    %16 = arith.addf %10, %15 : vector<32x64xf32>
    %c0_24 = arith.constant 0 : index
    %c2 = arith.constant 2 : index
    %c0_25 = arith.constant 0 : index
    %17 = vector.load %arg8[%c0_24, %c2, %c0_25] : memref<6x10x4xbf16, #tpu.memory_space<vmem>>, vector<4x8x4xbf16>
    %18 = vector.shape_cast %17 : vector<4x8x4xbf16> to vector<32x4xbf16>
    %c2_26 = arith.constant 2 : index
    %c0_27 = arith.constant 0 : index
    %c0_28 = arith.constant 0 : index
    %19 = vector.load %arg4[%c2_26, %c0_27, %c0_28] : memref<9x4x64xbf16, #tpu.memory_space<vmem>>, vector<1x4x64xbf16>
    %20 = vector.shape_cast %19 : vector<1x4x64xbf16> to vector<4x64xbf16>
    %cst_29 = arith.constant dense<0.000000e+00> : vector<32x64xf32>
    %21 = tpu.matmul %18, %20, %cst_29 {dimension_numbers = #tpu.dot_dimension_numbers<[1], [0], [0], [1], [0, 0, 1, 1], [], []>} : vector<32x4xbf16>, vector<4x64xbf16>, vector<32x64xf32> -> vector<32x64xf32>
    %22 = arith.addf %16, %21 : vector<32x64xf32>
    %c1_30 = arith.constant 1 : index
    %c0_31 = arith.constant 0 : index
    %c0_32 = arith.constant 0 : index
    %23 = vector.load %arg8[%c1_30, %c0_31, %c0_32] : memref<6x10x4xbf16, #tpu.memory_space<vmem>>, vector<4x8x4xbf16>
    %24 = vector.shape_cast %23 : vector<4x8x4xbf16> to vector<32x4xbf16>
    %c3 = arith.constant 3 : index
    %c0_33 = arith.constant 0 : index
    %c0_34 = arith.constant 0 : index
    %25 = vector.load %arg4[%c3, %c0_33, %c0_34] : memref<9x4x64xbf16, #tpu.memory_space<vmem>>, vector<1x4x64xbf16>
    %26 = vector.shape_cast %25 : vector<1x4x64xbf16> to vector<4x64xbf16>
    %cst_35 = arith.constant dense<0.000000e+00> : vector<32x64xf32>
    %27 = tpu.matmul %24, %26, %cst_35 {dimension_numbers = #tpu.dot_dimension_numbers<[1], [0], [0], [1], [0, 0, 1, 1], [], []>} : vector<32x4xbf16>, vector<4x64xbf16>, vector<32x64xf32> -> vector<32x64xf32>
    %28 = arith.addf %22, %27 : vector<32x64xf32>
    %c1_36 = arith.constant 1 : index
    %c1_37 = arith.constant 1 : index
    %c0_38 = arith.constant 0 : index
    %29 = vector.load %arg8[%c1_36, %c1_37, %c0_38] : memref<6x10x4xbf16, #tpu.memory_space<vmem>>, vector<4x8x4xbf16>
    %30 = vector.shape_cast %29 : vector<4x8x4xbf16> to vector<32x4xbf16>
    %c4_39 = arith.constant 4 : index
    %c0_40 = arith.constant 0 : index
    %c0_41 = arith.constant 0 : index
    %31 = vector.load %arg4[%c4_39, %c0_40, %c0_41] : memref<9x4x64xbf16, #tpu.memory_space<vmem>>, vector<1x4x64xbf16>
    %32 = vector.shape_cast %31 : vector<1x4x64xbf16> to vector<4x64xbf16>
    %cst_42 = arith.constant dense<0.000000e+00> : vector<32x64xf32>
    %33 = tpu.matmul %30, %32, %cst_42 {dimension_numbers = #tpu.dot_dimension_numbers<[1], [0], [0], [1], [0, 0, 1, 1], [], []>} : vector<32x4xbf16>, vector<4x64xbf16>, vector<32x64xf32> -> vector<32x64xf32>
    %34 = arith.addf %28, %33 : vector<32x64xf32>
    %c1_43 = arith.constant 1 : index
    %c2_44 = arith.constant 2 : index
    %c0_45 = arith.constant 0 : index
    %35 = vector.load %arg8[%c1_43, %c2_44, %c0_45] : memref<6x10x4xbf16, #tpu.memory_space<vmem>>, vector<4x8x4xbf16>
    %36 = vector.shape_cast %35 : vector<4x8x4xbf16> to vector<32x4xbf16>
    %c5 = arith.constant 5 : index
    %c0_46 = arith.constant 0 : index
    %c0_47 = arith.constant 0 : index
    %37 = vector.load %arg4[%c5, %c0_46, %c0_47] : memref<9x4x64xbf16, #tpu.memory_space<vmem>>, vector<1x4x64xbf16>
    %38 = vector.shape_cast %37 : vector<1x4x64xbf16> to vector<4x64xbf16>
    %cst_48 = arith.constant dense<0.000000e+00> : vector<32x64xf32>
    %39 = tpu.matmul %36, %38, %cst_48 {dimension_numbers = #tpu.dot_dimension_numbers<[1], [0], [0], [1], [0, 0, 1, 1], [], []>} : vector<32x4xbf16>, vector<4x64xbf16>, vector<32x64xf32> -> vector<32x64xf32>
    %40 = arith.addf %34, %39 : vector<32x64xf32>
    %c2_49 = arith.constant 2 : index
    %c0_50 = arith.constant 0 : index
    %c0_51 = arith.constant 0 : index
    %41 = vector.load %arg8[%c2_49, %c0_50, %c0_51] : memref<6x10x4xbf16, #tpu.memory_space<vmem>>, vector<4x8x4xbf16>
    %42 = vector.shape_cast %41 : vector<4x8x4xbf16> to vector<32x4xbf16>
    %c6 = arith.constant 6 : index
    %c0_52 = arith.constant 0 : index
    %c0_53 = arith.constant 0 : index
    %43 = vector.load %arg4[%c6, %c0_52, %c0_53] : memref<9x4x64xbf16, #tpu.memory_space<vmem>>, vector<1x4x64xbf16>
    %44 = vector.shape_cast %43 : vector<1x4x64xbf16> to vector<4x64xbf16>
    %cst_54 = arith.constant dense<0.000000e+00> : vector<32x64xf32>
    %45 = tpu.matmul %42, %44, %cst_54 {dimension_numbers = #tpu.dot_dimension_numbers<[1], [0], [0], [1], [0, 0, 1, 1], [], []>} : vector<32x4xbf16>, vector<4x64xbf16>, vector<32x64xf32> -> vector<32x64xf32>
    %46 = arith.addf %40, %45 : vector<32x64xf32>
    %c2_55 = arith.constant 2 : index
    %c1_56 = arith.constant 1 : index
    %c0_57 = arith.constant 0 : index
    %47 = vector.load %arg8[%c2_55, %c1_56, %c0_57] : memref<6x10x4xbf16, #tpu.memory_space<vmem>>, vector<4x8x4xbf16>
    %48 = vector.shape_cast %47 : vector<4x8x4xbf16> to vector<32x4xbf16>
    %c7 = arith.constant 7 : index
    %c0_58 = arith.constant 0 : index
    %c0_59 = arith.constant 0 : index
    %49 = vector.load %arg4[%c7, %c0_58, %c0_59] : memref<9x4x64xbf16, #tpu.memory_space<vmem>>, vector<1x4x64xbf16>
    %50 = vector.shape_cast %49 : vector<1x4x64xbf16> to vector<4x64xbf16>
    %cst_60 = arith.constant dense<0.000000e+00> : vector<32x64xf32>
    %51 = tpu.matmul %48, %50, %cst_60 {dimension_numbers = #tpu.dot_dimension_numbers<[1], [0], [0], [1], [0, 0, 1, 1], [], []>} : vector<32x4xbf16>, vector<4x64xbf16>, vector<32x64xf32> -> vector<32x64xf32>
    %52 = arith.addf %46, %51 : vector<32x64xf32>
    %c2_61 = arith.constant 2 : index
    %c2_62 = arith.constant 2 : index
    %c0_63 = arith.constant 0 : index
    %53 = vector.load %arg8[%c2_61, %c2_62, %c0_63] : memref<6x10x4xbf16, #tpu.memory_space<vmem>>, vector<4x8x4xbf16>
    %54 = vector.shape_cast %53 : vector<4x8x4xbf16> to vector<32x4xbf16>
    %c8 = arith.constant 8 : index
    %c0_64 = arith.constant 0 : index
    %c0_65 = arith.constant 0 : index
    %55 = vector.load %arg4[%c8, %c0_64, %c0_65] : memref<9x4x64xbf16, #tpu.memory_space<vmem>>, vector<1x4x64xbf16>
    %56 = vector.shape_cast %55 : vector<1x4x64xbf16> to vector<4x64xbf16>
    %cst_66 = arith.constant dense<0.000000e+00> : vector<32x64xf32>
    %57 = tpu.matmul %54, %56, %cst_66 {dimension_numbers = #tpu.dot_dimension_numbers<[1], [0], [0], [1], [0, 0, 1, 1], [], []>} : vector<32x4xbf16>, vector<4x64xbf16>, vector<32x64xf32> -> vector<32x64xf32>
    %58 = arith.addf %52, %57 : vector<32x64xf32>
    %c0_67 = arith.constant 0 : index
    %c0_68 = arith.constant 0 : index
    %59 = vector.load %arg5[%c0_67, %c0_68] : memref<1x64xf32, #tpu.memory_space<vmem>>, vector<1x64xf32>
    %60 = vector.broadcast %59 : vector<1x64xf32> to vector<32x64xf32>
    %61 = arith.addf %58, %60 : vector<32x64xf32>
    %c0_69 = arith.constant 0 : index
    %62 = memref.load %arg6[%c0_69] : memref<1xf32, #tpu.memory_space<smem>>
    %cst_70 = arith.constant 0.000000e+00 : f32
    %63 = vector.broadcast %cst_70 : f32 to vector<32x64xf32>
    %64 = arith.cmpf oge, %61, %63 : vector<32x64xf32>
    %65 = vector.broadcast %62 : f32 to vector<32x64xf32>
    %66 = arith.mulf %65, %61 : vector<32x64xf32>
    %67 = arith.select %64, %61, %66 : vector<32x64xi1>, vector<32x64xf32>
    %68 = vector.shape_cast %67 : vector<32x64xf32> to vector<4x8x64xf32>
    %69 = arith.truncf %68 : vector<4x8x64xf32> to vector<4x8x64xbf16>
    %c0_71 = arith.constant 0 : index
    %c0_72 = arith.constant 0 : index
    %c0_73 = arith.constant 0 : index
    %c0_74 = arith.constant 0 : index
    %70 = vector.load %arg7[%c0_71, %c0_72, %c0_73, %c0_74] : memref<1x4x8x64xbf16, #tpu.memory_space<vmem>>, vector<1x4x8x64xbf16>
    %71 = vector.shape_cast %70 : vector<1x4x8x64xbf16> to vector<4x8x64xbf16>
    %72 = vector.shape_cast %69 : vector<4x8x64xbf16> to vector<1x4x8x64xbf16>
    tpu.vector_store %arg7[%c0_71, %c0_72, %c0_73, %c0_74], %72 {strides = array<i32>} : memref<1x4x8x64xbf16, #tpu.memory_space<vmem>>, vector<1x4x8x64xbf16>,
    return
  }
  func.func @transform_0(%arg0: i32, %arg1: i32) -> (i32, i32, i32, i32) {
    %c0_i32 = arith.constant 0 : i32
    %c0_i32_0 = arith.constant 0 : i32
    %c0_i32_1 = arith.constant 0 : i32
    return %arg0, %arg1, %c0_i32, %c0_i32_0 : i32, i32, i32, i32
  }
  func.func @transform_1(%arg0: i32, %arg1: i32) -> (i32, i32, i32, i32) {
    %c1_i32 = arith.constant 1 : i32
    %0 = arith.addi %arg1, %c1_i32 : i32
    %c2_i32 = arith.constant 2 : i32
    %1 = arith.muli %0, %c2_i32 : i32
    %c0_i32 = arith.constant 0 : i32
    %c0_i32_0 = arith.constant 0 : i32
    %c0_i32_1 = arith.constant 0 : i32
    return %arg0, %1, %c0_i32, %c0_i32_0 : i32, i32, i32, i32
  }
  func.func @transform_2(%arg0: i32, %arg1: i32) -> (i32, i32, i32) {
    %c0_i32 = arith.constant 0 : i32
    %c0_i32_0 = arith.constant 0 : i32
    %c0_i32_1 = arith.constant 0 : i32
    %c0_i32_2 = arith.constant 0 : i32
    return %c0_i32, %c0_i32_0, %c0_i32_1 : i32, i32, i32
  }
  func.func @transform_3(%arg0: i32, %arg1: i32) -> (i32, i32) {
    %c0_i32 = arith.constant 0 : i32
    %c0_i32_0 = arith.constant 0 : i32
    %c0_i32_1 = arith.constant 0 : i32
    return %c0_i32, %c0_i32_0 : i32, i32
  }
  func.func @transform_4(%arg0: i32, %arg1: i32) -> i32 {
    %c0_i32 = arith.constant 0 : i32
    %c0_i32_0 = arith.constant 0 : i32
    return %c0_i32 : i32
  }
  func.func @transform_5(%arg0: i32, %arg1: i32) -> (i32, i32, i32, i32) {
    %c0_i32 = arith.constant 0 : i32
    %c0_i32_0 = arith.constant 0 : i32
    %c0_i32_1 = arith.constant 0 : i32
    return %arg0, %arg1, %c0_i32, %c0_i32_0 : i32, i32, i32, i32
  }
}

module attributes {stable_mosaic.version = 11 : i64} {
  func.func @kernel(%arg0: i32, %arg1: i32, %arg2: memref<1x4x10x64xbf16, #tpu.memory_space<vmem>>, %arg3: memref<1x2x10x64xbf16, #tpu.memory_space<vmem>>, %arg4: memref<9x64x4xbf16, #tpu.memory_space<vmem>>, %arg5: memref<1x4xf32, #tpu.memory_space<vmem>>, %arg6: memref<1x4x8x4xbf16, #tpu.memory_space<vmem>>, %arg7: memref<1xf32, #tpu.memory_space<smem>>, %arg8: memref<1x4x8x4xbf16, #tpu.memory_space<vmem>>, %arg9: memref<6x10x64xbf16, #tpu.memory_space<vmem>>) attributes {dimension_semantics = [#tpu.dimension_semantics<parallel>, #tpu.dimension_semantics<parallel>], iteration_bounds = array<i64: 2, 2>, scalar_prefetch = 0 : i64, scratch_operands = 1 : i64, tpu.core_type = #tpu.core_type<tc>, window_params = [{transform_indices = @transform_0, window_bounds = array<i64: 1, 4, 10, 64>}, {transform_indices = @transform_1, window_bounds = array<i64: 1, 2, 10, 64>}, {pipeline_mode = #tpu.pipeline_mode<synchronous>, transform_indices = @transform_2, window_bounds = array<i64: 9, 64, 4>}, {pipeline_mode = #tpu.pipeline_mode<synchronous>, transform_indices = @transform_3, window_bounds = array<i64: 1, 4>}, {transform_indices = @transform_4, window_bounds = array<i64: 1, 4, 8, 4>}, {transform_indices = @transform_5, window_bounds = array<i64: 1>}, {transform_indices = @transform_6, window_bounds = array<i64: 1, 4, 8, 4>}]} {
    %c0 = arith.constant 0 : index
    %c0_0 = arith.constant 0 : index
    %c0_1 = arith.constant 0 : index
    %c0_2 = arith.constant 0 : index
    %0 = vector.load %arg2[%c0, %c0_0, %c0_1, %c0_2] : memref<1x4x10x64xbf16, #tpu.memory_space<vmem>>, vector<1x4x10x64xbf16>
    %1 = vector.shape_cast %0 : vector<1x4x10x64xbf16> to vector<4x10x64xbf16>
    %c0_3 = arith.constant 0 : index
    %c0_4 = arith.constant 0 : index
    %c0_5 = arith.constant 0 : index
    %2 = vector.load %arg9[%c0_3, %c0_4, %c0_5] : memref<6x10x64xbf16, #tpu.memory_space<vmem>>, vector<4x10x64xbf16>
    tpu.vector_store %arg9[%c0_3, %c0_4, %c0_5], %1 {strides = array<i32>} : memref<6x10x64xbf16, #tpu.memory_space<vmem>>, vector<4x10x64xbf16>,
    %c0_6 = arith.constant 0 : index
    %c0_7 = arith.constant 0 : index
    %c0_8 = arith.constant 0 : index
    %c0_9 = arith.constant 0 : index
    %3 = vector.load %arg3[%c0_6, %c0_7, %c0_8, %c0_9] : memref<1x2x10x64xbf16, #tpu.memory_space<vmem>>, vector<1x2x10x64xbf16>
    %4 = vector.shape_cast %3 : vector<1x2x10x64xbf16> to vector<2x10x64xbf16>
    %c4 = arith.constant 4 : index
    %c0_10 = arith.constant 0 : index
    %c0_11 = arith.constant 0 : index
    %5 = vector.load %arg9[%c4, %c0_10, %c0_11] : memref<6x10x64xbf16, #tpu.memory_space<vmem>>, vector<2x10x64xbf16>
    tpu.vector_store %arg9[%c4, %c0_10, %c0_11], %4 {strides = array<i32>} : memref<6x10x64xbf16, #tpu.memory_space<vmem>>, vector<2x10x64xbf16>,
    %c0_12 = arith.constant 0 : index
    %c0_13 = arith.constant 0 : index
    %c0_14 = arith.constant 0 : index
    %6 = vector.load %arg9[%c0_12, %c0_13, %c0_14] : memref<6x10x64xbf16, #tpu.memory_space<vmem>>, vector<4x8x64xbf16>
    %7 = vector.shape_cast %6 : vector<4x8x64xbf16> to vector<32x64xbf16>
    %c0_15 = arith.constant 0 : index
    %c0_16 = arith.constant 0 : index
    %c0_17 = arith.constant 0 : index
    %8 = vector.load %arg4[%c0_15, %c0_16, %c0_17] : memref<9x64x4xbf16, #tpu.memory_space<vmem>>, vector<1x64x4xbf16>
    %9 = vector.shape_cast %8 : vector<1x64x4xbf16> to vector<64x4xbf16>
    %cst = arith.constant dense<0.000000e+00> : vector<32x4xf32>
    %10 = tpu.matmul %7, %9, %cst {dimension_numbers = #tpu.dot_dimension_numbers<[1], [0], [0], [1], [0, 0, 1, 1], [], []>} : vector<32x64xbf16>, vector<64x4xbf16>, vector<32x4xf32> -> vector<32x4xf32>
    %c0_18 = arith.constant 0 : index
    %c1 = arith.constant 1 : index
    %c0_19 = arith.constant 0 : index
    %11 = vector.load %arg9[%c0_18, %c1, %c0_19] : memref<6x10x64xbf16, #tpu.memory_space<vmem>>, vector<4x8x64xbf16>
    %12 = vector.shape_cast %11 : vector<4x8x64xbf16> to vector<32x64xbf16>
    %c1_20 = arith.constant 1 : index
    %c0_21 = arith.constant 0 : index
    %c0_22 = arith.constant 0 : index
    %13 = vector.load %arg4[%c1_20, %c0_21, %c0_22] : memref<9x64x4xbf16, #tpu.memory_space<vmem>>, vector<1x64x4xbf16>
    %14 = vector.shape_cast %13 : vector<1x64x4xbf16> to vector<64x4xbf16>
    %cst_23 = arith.constant dense<0.000000e+00> : vector<32x4xf32>
    %15 = tpu.matmul %12, %14, %cst_23 {dimension_numbers = #tpu.dot_dimension_numbers<[1], [0], [0], [1], [0, 0, 1, 1], [], []>} : vector<32x64xbf16>, vector<64x4xbf16>, vector<32x4xf32> -> vector<32x4xf32>
    %16 = arith.addf %10, %15 : vector<32x4xf32>
    %c0_24 = arith.constant 0 : index
    %c2 = arith.constant 2 : index
    %c0_25 = arith.constant 0 : index
    %17 = vector.load %arg9[%c0_24, %c2, %c0_25] : memref<6x10x64xbf16, #tpu.memory_space<vmem>>, vector<4x8x64xbf16>
    %18 = vector.shape_cast %17 : vector<4x8x64xbf16> to vector<32x64xbf16>
    %c2_26 = arith.constant 2 : index
    %c0_27 = arith.constant 0 : index
    %c0_28 = arith.constant 0 : index
    %19 = vector.load %arg4[%c2_26, %c0_27, %c0_28] : memref<9x64x4xbf16, #tpu.memory_space<vmem>>, vector<1x64x4xbf16>
    %20 = vector.shape_cast %19 : vector<1x64x4xbf16> to vector<64x4xbf16>
    %cst_29 = arith.constant dense<0.000000e+00> : vector<32x4xf32>
    %21 = tpu.matmul %18, %20, %cst_29 {dimension_numbers = #tpu.dot_dimension_numbers<[1], [0], [0], [1], [0, 0, 1, 1], [], []>} : vector<32x64xbf16>, vector<64x4xbf16>, vector<32x4xf32> -> vector<32x4xf32>
    %22 = arith.addf %16, %21 : vector<32x4xf32>
    %c1_30 = arith.constant 1 : index
    %c0_31 = arith.constant 0 : index
    %c0_32 = arith.constant 0 : index
    %23 = vector.load %arg9[%c1_30, %c0_31, %c0_32] : memref<6x10x64xbf16, #tpu.memory_space<vmem>>, vector<4x8x64xbf16>
    %24 = vector.shape_cast %23 : vector<4x8x64xbf16> to vector<32x64xbf16>
    %c3 = arith.constant 3 : index
    %c0_33 = arith.constant 0 : index
    %c0_34 = arith.constant 0 : index
    %25 = vector.load %arg4[%c3, %c0_33, %c0_34] : memref<9x64x4xbf16, #tpu.memory_space<vmem>>, vector<1x64x4xbf16>
    %26 = vector.shape_cast %25 : vector<1x64x4xbf16> to vector<64x4xbf16>
    %cst_35 = arith.constant dense<0.000000e+00> : vector<32x4xf32>
    %27 = tpu.matmul %24, %26, %cst_35 {dimension_numbers = #tpu.dot_dimension_numbers<[1], [0], [0], [1], [0, 0, 1, 1], [], []>} : vector<32x64xbf16>, vector<64x4xbf16>, vector<32x4xf32> -> vector<32x4xf32>
    %28 = arith.addf %22, %27 : vector<32x4xf32>
    %c1_36 = arith.constant 1 : index
    %c1_37 = arith.constant 1 : index
    %c0_38 = arith.constant 0 : index
    %29 = vector.load %arg9[%c1_36, %c1_37, %c0_38] : memref<6x10x64xbf16, #tpu.memory_space<vmem>>, vector<4x8x64xbf16>
    %30 = vector.shape_cast %29 : vector<4x8x64xbf16> to vector<32x64xbf16>
    %c4_39 = arith.constant 4 : index
    %c0_40 = arith.constant 0 : index
    %c0_41 = arith.constant 0 : index
    %31 = vector.load %arg4[%c4_39, %c0_40, %c0_41] : memref<9x64x4xbf16, #tpu.memory_space<vmem>>, vector<1x64x4xbf16>
    %32 = vector.shape_cast %31 : vector<1x64x4xbf16> to vector<64x4xbf16>
    %cst_42 = arith.constant dense<0.000000e+00> : vector<32x4xf32>
    %33 = tpu.matmul %30, %32, %cst_42 {dimension_numbers = #tpu.dot_dimension_numbers<[1], [0], [0], [1], [0, 0, 1, 1], [], []>} : vector<32x64xbf16>, vector<64x4xbf16>, vector<32x4xf32> -> vector<32x4xf32>
    %34 = arith.addf %28, %33 : vector<32x4xf32>
    %c1_43 = arith.constant 1 : index
    %c2_44 = arith.constant 2 : index
    %c0_45 = arith.constant 0 : index
    %35 = vector.load %arg9[%c1_43, %c2_44, %c0_45] : memref<6x10x64xbf16, #tpu.memory_space<vmem>>, vector<4x8x64xbf16>
    %36 = vector.shape_cast %35 : vector<4x8x64xbf16> to vector<32x64xbf16>
    %c5 = arith.constant 5 : index
    %c0_46 = arith.constant 0 : index
    %c0_47 = arith.constant 0 : index
    %37 = vector.load %arg4[%c5, %c0_46, %c0_47] : memref<9x64x4xbf16, #tpu.memory_space<vmem>>, vector<1x64x4xbf16>
    %38 = vector.shape_cast %37 : vector<1x64x4xbf16> to vector<64x4xbf16>
    %cst_48 = arith.constant dense<0.000000e+00> : vector<32x4xf32>
    %39 = tpu.matmul %36, %38, %cst_48 {dimension_numbers = #tpu.dot_dimension_numbers<[1], [0], [0], [1], [0, 0, 1, 1], [], []>} : vector<32x64xbf16>, vector<64x4xbf16>, vector<32x4xf32> -> vector<32x4xf32>
    %40 = arith.addf %34, %39 : vector<32x4xf32>
    %c2_49 = arith.constant 2 : index
    %c0_50 = arith.constant 0 : index
    %c0_51 = arith.constant 0 : index
    %41 = vector.load %arg9[%c2_49, %c0_50, %c0_51] : memref<6x10x64xbf16, #tpu.memory_space<vmem>>, vector<4x8x64xbf16>
    %42 = vector.shape_cast %41 : vector<4x8x64xbf16> to vector<32x64xbf16>
    %c6 = arith.constant 6 : index
    %c0_52 = arith.constant 0 : index
    %c0_53 = arith.constant 0 : index
    %43 = vector.load %arg4[%c6, %c0_52, %c0_53] : memref<9x64x4xbf16, #tpu.memory_space<vmem>>, vector<1x64x4xbf16>
    %44 = vector.shape_cast %43 : vector<1x64x4xbf16> to vector<64x4xbf16>
    %cst_54 = arith.constant dense<0.000000e+00> : vector<32x4xf32>
    %45 = tpu.matmul %42, %44, %cst_54 {dimension_numbers = #tpu.dot_dimension_numbers<[1], [0], [0], [1], [0, 0, 1, 1], [], []>} : vector<32x64xbf16>, vector<64x4xbf16>, vector<32x4xf32> -> vector<32x4xf32>
    %46 = arith.addf %40, %45 : vector<32x4xf32>
    %c2_55 = arith.constant 2 : index
    %c1_56 = arith.constant 1 : index
    %c0_57 = arith.constant 0 : index
    %47 = vector.load %arg9[%c2_55, %c1_56, %c0_57] : memref<6x10x64xbf16, #tpu.memory_space<vmem>>, vector<4x8x64xbf16>
    %48 = vector.shape_cast %47 : vector<4x8x64xbf16> to vector<32x64xbf16>
    %c7 = arith.constant 7 : index
    %c0_58 = arith.constant 0 : index
    %c0_59 = arith.constant 0 : index
    %49 = vector.load %arg4[%c7, %c0_58, %c0_59] : memref<9x64x4xbf16, #tpu.memory_space<vmem>>, vector<1x64x4xbf16>
    %50 = vector.shape_cast %49 : vector<1x64x4xbf16> to vector<64x4xbf16>
    %cst_60 = arith.constant dense<0.000000e+00> : vector<32x4xf32>
    %51 = tpu.matmul %48, %50, %cst_60 {dimension_numbers = #tpu.dot_dimension_numbers<[1], [0], [0], [1], [0, 0, 1, 1], [], []>} : vector<32x64xbf16>, vector<64x4xbf16>, vector<32x4xf32> -> vector<32x4xf32>
    %52 = arith.addf %46, %51 : vector<32x4xf32>
    %c2_61 = arith.constant 2 : index
    %c2_62 = arith.constant 2 : index
    %c0_63 = arith.constant 0 : index
    %53 = vector.load %arg9[%c2_61, %c2_62, %c0_63] : memref<6x10x64xbf16, #tpu.memory_space<vmem>>, vector<4x8x64xbf16>
    %54 = vector.shape_cast %53 : vector<4x8x64xbf16> to vector<32x64xbf16>
    %c8 = arith.constant 8 : index
    %c0_64 = arith.constant 0 : index
    %c0_65 = arith.constant 0 : index
    %55 = vector.load %arg4[%c8, %c0_64, %c0_65] : memref<9x64x4xbf16, #tpu.memory_space<vmem>>, vector<1x64x4xbf16>
    %56 = vector.shape_cast %55 : vector<1x64x4xbf16> to vector<64x4xbf16>
    %cst_66 = arith.constant dense<0.000000e+00> : vector<32x4xf32>
    %57 = tpu.matmul %54, %56, %cst_66 {dimension_numbers = #tpu.dot_dimension_numbers<[1], [0], [0], [1], [0, 0, 1, 1], [], []>} : vector<32x64xbf16>, vector<64x4xbf16>, vector<32x4xf32> -> vector<32x4xf32>
    %58 = arith.addf %52, %57 : vector<32x4xf32>
    %c0_67 = arith.constant 0 : index
    %c0_68 = arith.constant 0 : index
    %59 = vector.load %arg5[%c0_67, %c0_68] : memref<1x4xf32, #tpu.memory_space<vmem>>, vector<1x4xf32>
    %60 = vector.broadcast %59 : vector<1x4xf32> to vector<32x4xf32>
    %61 = arith.addf %58, %60 : vector<32x4xf32>
    %c0_69 = arith.constant 0 : index
    %62 = memref.load %arg7[%c0_69] : memref<1xf32, #tpu.memory_space<smem>>
    %cst_70 = arith.constant 0.000000e+00 : f32
    %63 = vector.broadcast %cst_70 : f32 to vector<32x4xf32>
    %64 = arith.cmpf oge, %61, %63 : vector<32x4xf32>
    %65 = vector.broadcast %62 : f32 to vector<32x4xf32>
    %66 = arith.mulf %65, %61 : vector<32x4xf32>
    %67 = arith.select %64, %61, %66 : vector<32x4xi1>, vector<32x4xf32>
    %68 = vector.shape_cast %67 : vector<32x4xf32> to vector<4x8x4xf32>
    %c0_71 = arith.constant 0 : index
    %c0_72 = arith.constant 0 : index
    %c0_73 = arith.constant 0 : index
    %c0_74 = arith.constant 0 : index
    %69 = vector.load %arg6[%c0_71, %c0_72, %c0_73, %c0_74] : memref<1x4x8x4xbf16, #tpu.memory_space<vmem>>, vector<1x4x8x4xbf16>
    %70 = vector.shape_cast %69 : vector<1x4x8x4xbf16> to vector<4x8x4xbf16>
    %71 = arith.extf %70 : vector<4x8x4xbf16> to vector<4x8x4xf32>
    %72 = arith.subf %68, %71 : vector<4x8x4xf32>
    %73 = arith.truncf %72 : vector<4x8x4xf32> to vector<4x8x4xbf16>
    %c0_75 = arith.constant 0 : index
    %c0_76 = arith.constant 0 : index
    %c0_77 = arith.constant 0 : index
    %c0_78 = arith.constant 0 : index
    %74 = vector.load %arg8[%c0_75, %c0_76, %c0_77, %c0_78] : memref<1x4x8x4xbf16, #tpu.memory_space<vmem>>, vector<1x4x8x4xbf16>
    %75 = vector.shape_cast %74 : vector<1x4x8x4xbf16> to vector<4x8x4xbf16>
    %76 = vector.shape_cast %73 : vector<4x8x4xbf16> to vector<1x4x8x4xbf16>
    tpu.vector_store %arg8[%c0_75, %c0_76, %c0_77, %c0_78], %76 {strides = array<i32>} : memref<1x4x8x4xbf16, #tpu.memory_space<vmem>>, vector<1x4x8x4xbf16>,
    return
  }
  func.func @transform_0(%arg0: i32, %arg1: i32) -> (i32, i32, i32, i32) {
    %c0_i32 = arith.constant 0 : i32
    %c0_i32_0 = arith.constant 0 : i32
    %c0_i32_1 = arith.constant 0 : i32
    return %arg0, %arg1, %c0_i32, %c0_i32_0 : i32, i32, i32, i32
  }
  func.func @transform_1(%arg0: i32, %arg1: i32) -> (i32, i32, i32, i32) {
    %c1_i32 = arith.constant 1 : i32
    %0 = arith.addi %arg1, %c1_i32 : i32
    %c2_i32 = arith.constant 2 : i32
    %1 = arith.muli %0, %c2_i32 : i32
    %c0_i32 = arith.constant 0 : i32
    %c0_i32_0 = arith.constant 0 : i32
    %c0_i32_1 = arith.constant 0 : i32
    return %arg0, %1, %c0_i32, %c0_i32_0 : i32, i32, i32, i32
  }
  func.func @transform_2(%arg0: i32, %arg1: i32) -> (i32, i32, i32) {
    %c0_i32 = arith.constant 0 : i32
    %c0_i32_0 = arith.constant 0 : i32
    %c0_i32_1 = arith.constant 0 : i32
    %c0_i32_2 = arith.constant 0 : i32
    return %c0_i32, %c0_i32_0, %c0_i32_1 : i32, i32, i32
  }
  func.func @transform_3(%arg0: i32, %arg1: i32) -> (i32, i32) {
    %c0_i32 = arith.constant 0 : i32
    %c0_i32_0 = arith.constant 0 : i32
    %c0_i32_1 = arith.constant 0 : i32
    return %c0_i32, %c0_i32_0 : i32, i32
  }
  func.func @transform_4(%arg0: i32, %arg1: i32) -> (i32, i32, i32, i32) {
    %c0_i32 = arith.constant 0 : i32
    %c0_i32_0 = arith.constant 0 : i32
    %c0_i32_1 = arith.constant 0 : i32
    return %arg0, %arg1, %c0_i32, %c0_i32_0 : i32, i32, i32, i32
  }
  func.func @transform_5(%arg0: i32, %arg1: i32) -> i32 {
    %c0_i32 = arith.constant 0 : i32
    %c0_i32_0 = arith.constant 0 : i32
    return %c0_i32 : i32
  }
  func.func @transform_6(%arg0: i32, %arg1: i32) -> (i32, i32, i32, i32) {
    %c0_i32 = arith.constant 0 : i32
    %c0_i32_0 = arith.constant 0 : i32
    %c0_i32_1 = arith.constant 0 : i32
    return %arg0, %arg1, %c0_i32, %c0_i32_0 : i32, i32, i32, i32
  }
}

module attributes {stable_mosaic.version = 11 : i64} {
  func.func @kernel(%arg0: i32, %arg1: i32, %arg2: memref<1x4x10x4xbf16, #tpu.memory_space<vmem>>, %arg3: memref<1x2x10x4xbf16, #tpu.memory_space<vmem>>, %arg4: memref<9x4x64xbf16, #tpu.memory_space<vmem>>, %arg5: memref<1x64xf32, #tpu.memory_space<vmem>>, %arg6: memref<1x4x8x64xbf16, #tpu.memory_space<vmem>>, %arg7: memref<1xf32, #tpu.memory_space<smem>>, %arg8: memref<1x4x8x64xf32, #tpu.memory_space<vmem>>, %arg9: memref<6x10x4xbf16, #tpu.memory_space<vmem>>) attributes {dimension_semantics = [#tpu.dimension_semantics<parallel>, #tpu.dimension_semantics<parallel>], iteration_bounds = array<i64: 2, 2>, scalar_prefetch = 0 : i64, scratch_operands = 1 : i64, tpu.core_type = #tpu.core_type<tc>, window_params = [{transform_indices = @transform_0, window_bounds = array<i64: 1, 4, 10, 4>}, {transform_indices = @transform_1, window_bounds = array<i64: 1, 2, 10, 4>}, {pipeline_mode = #tpu.pipeline_mode<synchronous>, transform_indices = @transform_2, window_bounds = array<i64: 9, 4, 64>}, {pipeline_mode = #tpu.pipeline_mode<synchronous>, transform_indices = @transform_3, window_bounds = array<i64: 1, 64>}, {transform_indices = @transform_4, window_bounds = array<i64: 1, 4, 8, 64>}, {transform_indices = @transform_5, window_bounds = array<i64: 1>}, {transform_indices = @transform_6, window_bounds = array<i64: 1, 4, 8, 64>}]} {
    %c0 = arith.constant 0 : index
    %c0_0 = arith.constant 0 : index
    %c0_1 = arith.constant 0 : index
    %c0_2 = arith.constant 0 : index
    %0 = vector.load %arg2[%c0, %c0_0, %c0_1, %c0_2] : memref<1x4x10x4xbf16, #tpu.memory_space<vmem>>, vector<1x4x10x4xbf16>
    %1 = vector.shape_cast %0 : vector<1x4x10x4xbf16> to vector<4x10x4xbf16>
    %c0_3 = arith.constant 0 : index
    %c0_4 = arith.constant 0 : index
    %c0_5 = arith.constant 0 : index
    %2 = vector.load %arg9[%c0_3, %c0_4, %c0_5] : memref<6x10x4xbf16, #tpu.memory_space<vmem>>, vector<4x10x4xbf16>
    tpu.vector_store %arg9[%c0_3, %c0_4, %c0_5], %1 {strides = array<i32>} : memref<6x10x4xbf16, #tpu.memory_space<vmem>>, vector<4x10x4xbf16>,
    %c0_6 = arith.constant 0 : index
    %c0_7 = arith.constant 0 : index
    %c0_8 = arith.constant 0 : index
    %c0_9 = arith.constant 0 : index
    %3 = vector.load %arg3[%c0_6, %c0_7, %c0_8, %c0_9] : memref<1x2x10x4xbf16, #tpu.memory_space<vmem>>, vector<1x2x10x4xbf16>
    %4 = vector.shape_cast %3 : vector<1x2x10x4xbf16> to vector<2x10x4xbf16>
    %c4 = arith.constant 4 : index
    %c0_10 = arith.constant 0 : index
    %c0_11 = arith.constant 0 : index
    %5 = vector.load %arg9[%c4, %c0_10, %c0_11] : memref<6x10x4xbf16, #tpu.memory_space<vmem>>, vector<2x10x4xbf16>
    tpu.vector_store %arg9[%c4, %c0_10, %c0_11], %4 {strides = array<i32>} : memref<6x10x4xbf16, #tpu.memory_space<vmem>>, vector<2x10x4xbf16>,
    %c0_12 = arith.constant 0 : index
    %c0_13 = arith.constant 0 : index
    %c0_14 = arith.constant 0 : index
    %6 = vector.load %arg9[%c0_12, %c0_13, %c0_14] : memref<6x10x4xbf16, #tpu.memory_space<vmem>>, vector<4x8x4xbf16>
    %7 = vector.shape_cast %6 : vector<4x8x4xbf16> to vector<32x4xbf16>
    %c0_15 = arith.constant 0 : index
    %c0_16 = arith.constant 0 : index
    %c0_17 = arith.constant 0 : index
    %8 = vector.load %arg4[%c0_15, %c0_16, %c0_17] : memref<9x4x64xbf16, #tpu.memory_space<vmem>>, vector<1x4x64xbf16>
    %9 = vector.shape_cast %8 : vector<1x4x64xbf16> to vector<4x64xbf16>
    %cst = arith.constant dense<0.000000e+00> : vector<32x64xf32>
    %10 = tpu.matmul %7, %9, %cst {dimension_numbers = #tpu.dot_dimension_numbers<[1], [0], [0], [1], [0, 0, 1, 1], [], []>} : vector<32x4xbf16>, vector<4x64xbf16>, vector<32x64xf32> -> vector<32x64xf32>
    %c0_18 = arith.constant 0 : index
    %c1 = arith.constant 1 : index
    %c0_19 = arith.constant 0 : index
    %11 = vector.load %arg9[%c0_18, %c1, %c0_19] : memref<6x10x4xbf16, #tpu.memory_space<vmem>>, vector<4x8x4xbf16>
    %12 = vector.shape_cast %11 : vector<4x8x4xbf16> to vector<32x4xbf16>
    %c1_20 = arith.constant 1 : index
    %c0_21 = arith.constant 0 : index
    %c0_22 = arith.constant 0 : index
    %13 = vector.load %arg4[%c1_20, %c0_21, %c0_22] : memref<9x4x64xbf16, #tpu.memory_space<vmem>>, vector<1x4x64xbf16>
    %14 = vector.shape_cast %13 : vector<1x4x64xbf16> to vector<4x64xbf16>
    %cst_23 = arith.constant dense<0.000000e+00> : vector<32x64xf32>
    %15 = tpu.matmul %12, %14, %cst_23 {dimension_numbers = #tpu.dot_dimension_numbers<[1], [0], [0], [1], [0, 0, 1, 1], [], []>} : vector<32x4xbf16>, vector<4x64xbf16>, vector<32x64xf32> -> vector<32x64xf32>
    %16 = arith.addf %10, %15 : vector<32x64xf32>
    %c0_24 = arith.constant 0 : index
    %c2 = arith.constant 2 : index
    %c0_25 = arith.constant 0 : index
    %17 = vector.load %arg9[%c0_24, %c2, %c0_25] : memref<6x10x4xbf16, #tpu.memory_space<vmem>>, vector<4x8x4xbf16>
    %18 = vector.shape_cast %17 : vector<4x8x4xbf16> to vector<32x4xbf16>
    %c2_26 = arith.constant 2 : index
    %c0_27 = arith.constant 0 : index
    %c0_28 = arith.constant 0 : index
    %19 = vector.load %arg4[%c2_26, %c0_27, %c0_28] : memref<9x4x64xbf16, #tpu.memory_space<vmem>>, vector<1x4x64xbf16>
    %20 = vector.shape_cast %19 : vector<1x4x64xbf16> to vector<4x64xbf16>
    %cst_29 = arith.constant dense<0.000000e+00> : vector<32x64xf32>
    %21 = tpu.matmul %18, %20, %cst_29 {dimension_numbers = #tpu.dot_dimension_numbers<[1], [0], [0], [1], [0, 0, 1, 1], [], []>} : vector<32x4xbf16>, vector<4x64xbf16>, vector<32x64xf32> -> vector<32x64xf32>
    %22 = arith.addf %16, %21 : vector<32x64xf32>
    %c1_30 = arith.constant 1 : index
    %c0_31 = arith.constant 0 : index
    %c0_32 = arith.constant 0 : index
    %23 = vector.load %arg9[%c1_30, %c0_31, %c0_32] : memref<6x10x4xbf16, #tpu.memory_space<vmem>>, vector<4x8x4xbf16>
    %24 = vector.shape_cast %23 : vector<4x8x4xbf16> to vector<32x4xbf16>
    %c3 = arith.constant 3 : index
    %c0_33 = arith.constant 0 : index
    %c0_34 = arith.constant 0 : index
    %25 = vector.load %arg4[%c3, %c0_33, %c0_34] : memref<9x4x64xbf16, #tpu.memory_space<vmem>>, vector<1x4x64xbf16>
    %26 = vector.shape_cast %25 : vector<1x4x64xbf16> to vector<4x64xbf16>
    %cst_35 = arith.constant dense<0.000000e+00> : vector<32x64xf32>
    %27 = tpu.matmul %24, %26, %cst_35 {dimension_numbers = #tpu.dot_dimension_numbers<[1], [0], [0], [1], [0, 0, 1, 1], [], []>} : vector<32x4xbf16>, vector<4x64xbf16>, vector<32x64xf32> -> vector<32x64xf32>
    %28 = arith.addf %22, %27 : vector<32x64xf32>
    %c1_36 = arith.constant 1 : index
    %c1_37 = arith.constant 1 : index
    %c0_38 = arith.constant 0 : index
    %29 = vector.load %arg9[%c1_36, %c1_37, %c0_38] : memref<6x10x4xbf16, #tpu.memory_space<vmem>>, vector<4x8x4xbf16>
    %30 = vector.shape_cast %29 : vector<4x8x4xbf16> to vector<32x4xbf16>
    %c4_39 = arith.constant 4 : index
    %c0_40 = arith.constant 0 : index
    %c0_41 = arith.constant 0 : index
    %31 = vector.load %arg4[%c4_39, %c0_40, %c0_41] : memref<9x4x64xbf16, #tpu.memory_space<vmem>>, vector<1x4x64xbf16>
    %32 = vector.shape_cast %31 : vector<1x4x64xbf16> to vector<4x64xbf16>
    %cst_42 = arith.constant dense<0.000000e+00> : vector<32x64xf32>
    %33 = tpu.matmul %30, %32, %cst_42 {dimension_numbers = #tpu.dot_dimension_numbers<[1], [0], [0], [1], [0, 0, 1, 1], [], []>} : vector<32x4xbf16>, vector<4x64xbf16>, vector<32x64xf32> -> vector<32x64xf32>
    %34 = arith.addf %28, %33 : vector<32x64xf32>
    %c1_43 = arith.constant 1 : index
    %c2_44 = arith.constant 2 : index
    %c0_45 = arith.constant 0 : index
    %35 = vector.load %arg9[%c1_43, %c2_44, %c0_45] : memref<6x10x4xbf16, #tpu.memory_space<vmem>>, vector<4x8x4xbf16>
    %36 = vector.shape_cast %35 : vector<4x8x4xbf16> to vector<32x4xbf16>
    %c5 = arith.constant 5 : index
    %c0_46 = arith.constant 0 : index
    %c0_47 = arith.constant 0 : index
    %37 = vector.load %arg4[%c5, %c0_46, %c0_47] : memref<9x4x64xbf16, #tpu.memory_space<vmem>>, vector<1x4x64xbf16>
    %38 = vector.shape_cast %37 : vector<1x4x64xbf16> to vector<4x64xbf16>
    %cst_48 = arith.constant dense<0.000000e+00> : vector<32x64xf32>
    %39 = tpu.matmul %36, %38, %cst_48 {dimension_numbers = #tpu.dot_dimension_numbers<[1], [0], [0], [1], [0, 0, 1, 1], [], []>} : vector<32x4xbf16>, vector<4x64xbf16>, vector<32x64xf32> -> vector<32x64xf32>
    %40 = arith.addf %34, %39 : vector<32x64xf32>
    %c2_49 = arith.constant 2 : index
    %c0_50 = arith.constant 0 : index
    %c0_51 = arith.constant 0 : index
    %41 = vector.load %arg9[%c2_49, %c0_50, %c0_51] : memref<6x10x4xbf16, #tpu.memory_space<vmem>>, vector<4x8x4xbf16>
    %42 = vector.shape_cast %41 : vector<4x8x4xbf16> to vector<32x4xbf16>
    %c6 = arith.constant 6 : index
    %c0_52 = arith.constant 0 : index
    %c0_53 = arith.constant 0 : index
    %43 = vector.load %arg4[%c6, %c0_52, %c0_53] : memref<9x4x64xbf16, #tpu.memory_space<vmem>>, vector<1x4x64xbf16>
    %44 = vector.shape_cast %43 : vector<1x4x64xbf16> to vector<4x64xbf16>
    %cst_54 = arith.constant dense<0.000000e+00> : vector<32x64xf32>
    %45 = tpu.matmul %42, %44, %cst_54 {dimension_numbers = #tpu.dot_dimension_numbers<[1], [0], [0], [1], [0, 0, 1, 1], [], []>} : vector<32x4xbf16>, vector<4x64xbf16>, vector<32x64xf32> -> vector<32x64xf32>
    %46 = arith.addf %40, %45 : vector<32x64xf32>
    %c2_55 = arith.constant 2 : index
    %c1_56 = arith.constant 1 : index
    %c0_57 = arith.constant 0 : index
    %47 = vector.load %arg9[%c2_55, %c1_56, %c0_57] : memref<6x10x4xbf16, #tpu.memory_space<vmem>>, vector<4x8x4xbf16>
    %48 = vector.shape_cast %47 : vector<4x8x4xbf16> to vector<32x4xbf16>
    %c7 = arith.constant 7 : index
    %c0_58 = arith.constant 0 : index
    %c0_59 = arith.constant 0 : index
    %49 = vector.load %arg4[%c7, %c0_58, %c0_59] : memref<9x4x64xbf16, #tpu.memory_space<vmem>>, vector<1x4x64xbf16>
    %50 = vector.shape_cast %49 : vector<1x4x64xbf16> to vector<4x64xbf16>
    %cst_60 = arith.constant dense<0.000000e+00> : vector<32x64xf32>
    %51 = tpu.matmul %48, %50, %cst_60 {dimension_numbers = #tpu.dot_dimension_numbers<[1], [0], [0], [1], [0, 0, 1, 1], [], []>} : vector<32x4xbf16>, vector<4x64xbf16>, vector<32x64xf32> -> vector<32x64xf32>
    %52 = arith.addf %46, %51 : vector<32x64xf32>
    %c2_61 = arith.constant 2 : index
    %c2_62 = arith.constant 2 : index
    %c0_63 = arith.constant 0 : index
    %53 = vector.load %arg9[%c2_61, %c2_62, %c0_63] : memref<6x10x4xbf16, #tpu.memory_space<vmem>>, vector<4x8x4xbf16>
    %54 = vector.shape_cast %53 : vector<4x8x4xbf16> to vector<32x4xbf16>
    %c8 = arith.constant 8 : index
    %c0_64 = arith.constant 0 : index
    %c0_65 = arith.constant 0 : index
    %55 = vector.load %arg4[%c8, %c0_64, %c0_65] : memref<9x4x64xbf16, #tpu.memory_space<vmem>>, vector<1x4x64xbf16>
    %56 = vector.shape_cast %55 : vector<1x4x64xbf16> to vector<4x64xbf16>
    %cst_66 = arith.constant dense<0.000000e+00> : vector<32x64xf32>
    %57 = tpu.matmul %54, %56, %cst_66 {dimension_numbers = #tpu.dot_dimension_numbers<[1], [0], [0], [1], [0, 0, 1, 1], [], []>} : vector<32x4xbf16>, vector<4x64xbf16>, vector<32x64xf32> -> vector<32x64xf32>
    %58 = arith.addf %52, %57 : vector<32x64xf32>
    %c0_67 = arith.constant 0 : index
    %c0_68 = arith.constant 0 : index
    %59 = vector.load %arg5[%c0_67, %c0_68] : memref<1x64xf32, #tpu.memory_space<vmem>>, vector<1x64xf32>
    %60 = vector.broadcast %59 : vector<1x64xf32> to vector<32x64xf32>
    %61 = arith.addf %58, %60 : vector<32x64xf32>
    %c0_69 = arith.constant 0 : index
    %62 = memref.load %arg7[%c0_69] : memref<1xf32, #tpu.memory_space<smem>>
    %cst_70 = arith.constant 0.000000e+00 : f32
    %63 = vector.broadcast %cst_70 : f32 to vector<32x64xf32>
    %64 = arith.cmpf oge, %61, %63 : vector<32x64xf32>
    %65 = vector.broadcast %62 : f32 to vector<32x64xf32>
    %66 = arith.mulf %65, %61 : vector<32x64xf32>
    %67 = arith.select %64, %61, %66 : vector<32x64xi1>, vector<32x64xf32>
    %68 = vector.shape_cast %67 : vector<32x64xf32> to vector<4x8x64xf32>
    %c0_71 = arith.constant 0 : index
    %c0_72 = arith.constant 0 : index
    %c0_73 = arith.constant 0 : index
    %c0_74 = arith.constant 0 : index
    %69 = vector.load %arg6[%c0_71, %c0_72, %c0_73, %c0_74] : memref<1x4x8x64xbf16, #tpu.memory_space<vmem>>, vector<1x4x8x64xbf16>
    %70 = vector.shape_cast %69 : vector<1x4x8x64xbf16> to vector<4x8x64xbf16>
    %71 = arith.extf %70 : vector<4x8x64xbf16> to vector<4x8x64xf32>
    %72 = arith.addf %68, %71 : vector<4x8x64xf32>
    %c0_75 = arith.constant 0 : index
    %c0_76 = arith.constant 0 : index
    %c0_77 = arith.constant 0 : index
    %c0_78 = arith.constant 0 : index
    %73 = vector.load %arg8[%c0_75, %c0_76, %c0_77, %c0_78] : memref<1x4x8x64xf32, #tpu.memory_space<vmem>>, vector<1x4x8x64xf32>
    %74 = vector.shape_cast %73 : vector<1x4x8x64xf32> to vector<4x8x64xf32>
    %75 = vector.shape_cast %72 : vector<4x8x64xf32> to vector<1x4x8x64xf32>
    tpu.vector_store %arg8[%c0_75, %c0_76, %c0_77, %c0_78], %75 {strides = array<i32>} : memref<1x4x8x64xf32, #tpu.memory_space<vmem>>, vector<1x4x8x64xf32>,
    return
  }
  func.func @transform_0(%arg0: i32, %arg1: i32) -> (i32, i32, i32, i32) {
    %c0_i32 = arith.constant 0 : i32
    %c0_i32_0 = arith.constant 0 : i32
    %c0_i32_1 = arith.constant 0 : i32
    return %arg0, %arg1, %c0_i32, %c0_i32_0 : i32, i32, i32, i32
  }
  func.func @transform_1(%arg0: i32, %arg1: i32) -> (i32, i32, i32, i32) {
    %c1_i32 = arith.constant 1 : i32
    %0 = arith.addi %arg1, %c1_i32 : i32
    %c2_i32 = arith.constant 2 : i32
    %1 = arith.muli %0, %c2_i32 : i32
    %c0_i32 = arith.constant 0 : i32
    %c0_i32_0 = arith.constant 0 : i32
    %c0_i32_1 = arith.constant 0 : i32
    return %arg0, %1, %c0_i32, %c0_i32_0 : i32, i32, i32, i32
  }
  func.func @transform_2(%arg0: i32, %arg1: i32) -> (i32, i32, i32) {
    %c0_i32 = arith.constant 0 : i32
    %c0_i32_0 = arith.constant 0 : i32
    %c0_i32_1 = arith.constant 0 : i32
    %c0_i32_2 = arith.constant 0 : i32
    return %c0_i32, %c0_i32_0, %c0_i32_1 : i32, i32, i32
  }
  func.func @transform_3(%arg0: i32, %arg1: i32) -> (i32, i32) {
    %c0_i32 = arith.constant 0 : i32
    %c0_i32_0 = arith.constant 0 : i32
    %c0_i32_1 = arith.constant 0 : i32
    return %c0_i32, %c0_i32_0 : i32, i32
  }
  func.func @transform_4(%arg0: i32, %arg1: i32) -> (i32, i32, i32, i32) {
    %c0_i32 = arith.constant 0 : i32
    %c0_i32_0 = arith.constant 0 : i32
    %c0_i32_1 = arith.constant 0 : i32
    return %arg0, %arg1, %c0_i32, %c0_i32_0 : i32, i32, i32, i32
  }
  func.func @transform_5(%arg0: i32, %arg1: i32) -> i32 {
    %c0_i32 = arith.constant 0 : i32
    %c0_i32_0 = arith.constant 0 : i32
    return %c0_i32 : i32
  }
  func.func @transform_6(%arg0: i32, %arg1: i32) -> (i32, i32, i32, i32) {
    %c0_i32 = arith.constant 0 : i32
    %c0_i32_0 = arith.constant 0 : i32
    %c0_i32_1 = arith.constant 0 : i32
    return %arg0, %arg1, %c0_i32, %c0_i32_0 : i32, i32, i32, i32
  }
}

</mosaic_0001>

<llo_original>
// kernel: tile.13
$region0: #{tile.13}
  #allocation0 [shape = 's32[1]{0}', space=sflag, size = 0x4, scoped, tag = 'scoped memory for tile.13']
  %s0 = inlined_call_operand.vmem [shape: f32[4], index: 0, kind: input, shape index: {}]
  %s1 = inlined_call_operand.vmem [shape: f32[16,4], index: 1, kind: output, shape index: {}]
  // Predicated region
  $region2: #{tile.13} parent=0 // pred_check
    _
  $region3: #{tile.13} parent=0 // pred_check_branch
    %3 = sbr.rel (0) target = $region5
  $region4: #{tile.13} parent=0 // pred_region
    _
  $region5: #{tile.13} parent=0 // pred_fallthru
    _
  %v4 = vld [vmem:[%s0] ss:$0 sm:$0xff]
  %5 = vst [vmem:[%s1] sm:$0xff] %v4
  %s6 = scalar_lea.vmem %s1, 8
  %7 = vst [vmem:[%s6] sm:$0xff] %v4

// kernel: tile.14
$region0: #{tile.14}
  %s0 = inlined_call_operand.vmem [shape: f32[16,4], index: 0, kind: input, shape index: {}]
  %s1 = inlined_call_operand.vmem [shape: f32[1,64], index: 1, kind: output, shape index: {}]
  $region1: #{tile.14} parent=0
    #allocation0 [shape = 'u8[4096]{0}', space=vmem, size = 0x1000, scoped, tag = 'scoped mem for output reshape']
    %v2 = vld [vmem:[%s0] sm:$0x1]
    %vm3 = vcmask 31744
    %4 = vst.msk [vmem:[#allocation0] sm:$0x1] %vm3, %v2
    %s5 = scalar_lea.vmem %s0, 15
    %v6 = vld [vmem:[%s5] sm:$0x1]
    %7 = vrot.lane.b32.xlu0 %v6, 60
    %v8 = vpop.permute.xlu0 %7
    %vm9 = vcmask 523744
    %10 = vst.msk [vmem:[#allocation0] sm:$0x1] %vm9, %v8
    %s11 = scalar_lea.vmem %s0, 14
    %v12 = vld [vmem:[%s11] sm:$0x1]
    %13 = vrot.lane.b32.xlu0 %v12, 56
    %v14 = vpop.permute.xlu0 %13
    %vm15 = vcmask 490944
    %16 = vst.msk [vmem:[#allocation0] sm:$0x1] %vm15, %v14
    %s17 = scalar_lea.vmem %s0, 13
    %v18 = vld [vmem:[%s17] sm:$0x1]
    %19 = vrot.lane.b32.xlu0 %v18, 52
    %v20 = vpop.permute.xlu0 %19
    %vm21 = vcmask 458144
    %22 = vst.msk [vmem:[#allocation0] sm:$0x1] %vm21, %v20
    %s23 = scalar_lea.vmem %s0, 12
    %v24 = vld [vmem:[%s23] sm:$0x1]
    %25 = vrot.lane.b32.xlu0 %v24, 48
    %v26 = vpop.permute.xlu0 %25
    %vm27 = vcmask 425344
    %28 = vst.msk [vmem:[#allocation0] sm:$0x1] %vm27, %v26
    %s29 = scalar_lea.vmem %s0, 11
    %v30 = vld [vmem:[%s29] sm:$0x1]
    %31 = vrot.lane.b32.xlu0 %v30, 44
    %v32 = vpop.permute.xlu0 %31
    %vm33 = vcmask 392544
    %34 = vst.msk [vmem:[#allocation0] sm:$0x1] %vm33, %v32
    %s35 = scalar_lea.vmem %s0, 10
    %v36 = vld [vmem:[%s35] sm:$0x1]
    %37 = vrot.lane.b32.xlu0 %v36, 40
    %v38 = vpop.permute.xlu0 %37
    %vm39 = vcmask 359744
    %40 = vst.msk [vmem:[#allocation0] sm:$0x1] %vm39, %v38
    %s41 = scalar_lea.vmem %s0, 9
    %v42 = vld [vmem:[%s41] sm:$0x1]
    %43 = vrot.lane.b32.xlu0 %v42, 36
    %v44 = vpop.permute.xlu0 %43
    %vm45 = vcmask 326944
    %46 = vst.msk [vmem:[#allocation0] sm:$0x1] %vm45, %v44
    %s47 = scalar_lea.vmem %s0, 8
    %v48 = vld [vmem:[%s47] sm:$0x1]
    %49 = vrot.lane.b32.xlu0 %v48, 32
    %v50 = vpop.permute.xlu0 %49
    %vm51 = vcmask 294144
    %52 = vst.msk [vmem:[#allocation0] sm:$0x1] %vm51, %v50
    %s53 = scalar_lea.vmem %s0, 7
    %v54 = vld [vmem:[%s53] sm:$0x1]
    %55 = vrot.lane.b32.xlu0 %v54, 28
    %v56 = vpop.permute.xlu0 %55
    %vm57 = vcmask 261344
    %58 = vst.msk [vmem:[#allocation0] sm:$0x1] %vm57, %v56
    %s59 = scalar_lea.vmem %s0, 6
    %v60 = vld [vmem:[%s59] sm:$0x1]
    %61 = vrot.lane.b32.xlu0 %v60, 24
    %v62 = vpop.permute.xlu0 %61
    %vm63 = vcmask 228544
    %64 = vst.msk [vmem:[#allocation0] sm:$0x1] %vm63, %v62
    %s65 = scalar_lea.vmem %s0, 5
    %v66 = vld [vmem:[%s65] sm:$0x1]
    %67 = vrot.lane.b32.xlu0 %v66, 20
    %v68 = vpop.permute.xlu0 %67
    %vm69 = vcmask 195744
    %70 = vst.msk [vmem:[#allocation0] sm:$0x1] %vm69, %v68
    %s71 = scalar_lea.vmem %s0, 4
    %v72 = vld [vmem:[%s71] sm:$0x1]
    %73 = vrot.lane.b32.xlu0 %v72, 16
    %v74 = vpop.permute.xlu0 %73
    %vm75 = vcmask 162944
    %76 = vst.msk [vmem:[#allocation0] sm:$0x1] %vm75, %v74
    %s77 = scalar_lea.vmem %s0, 3
    %v78 = vld [vmem:[%s77] sm:$0x1]
    %79 = vrot.lane.b32.xlu0 %v78, 12
    %v80 = vpop.permute.xlu0 %79
    %vm81 = vcmask 130144
    %82 = vst.msk [vmem:[#allocation0] sm:$0x1] %vm81, %v80
    %s83 = scalar_lea.vmem %s0, 2
    %v84 = vld [vmem:[%s83] sm:$0x1]
    %85 = vrot.lane.b32.xlu0 %v84, 8
    %v86 = vpop.permute.xlu0 %85
    %vm87 = vcmask 97344
    %88 = vst.msk [vmem:[#allocation0] sm:$0x1] %vm87, %v86
    %s89 = scalar_lea.vmem %s0, 1
    %v90 = vld [vmem:[%s89] sm:$0x1]
    %91 = vrot.lane.b32.xlu0 %v90, 4
    %v92 = vpop.permute.xlu0 %91
    %vm93 = vcmask 64544
    %94 = vst.msk [vmem:[#allocation0] sm:$0x1] %vm93, %v92
    %s96 = sshllo.u32 0, 1
    %v98 = vld [vmem:[#allocation0] sm:%s96]
    %s99 = sshllo.u32 0, 1
    %100 = vst [vmem:[%s1] sm:%s99] %v98

// kernel: d_upblock_forward.4
$region0: #{d_upblock_forward.4}
  #allocation0 [shape = 'u32[]', space=smem, size = 0x4, offset = 0x4, fixed_abs, tag = 'smem constant byte address 0x4 - core index']
  #allocation1 [shape = 'u32[144,128]{1,0:T(1,128)}', space=vmem, size = 0x12000, scoped, tag = 'internal scratch']
  #allocation2 [shape = 'f32[1]{0:T(128)S(6)}', space=smem, size = 0x200, scoped, tag = 'scoped memory for d_upblock_forward.4']
  %s0 = inlined_call_operand.vmem [shape: bf16[1,16,8,4], index: 0, kind: input, shape index: {}]
  %s1 = inlined_call_operand.vmem [shape: bf16[1,4,4], index: 1, kind: input, shape index: {}]
  %s2 = inlined_call_operand.vmem [shape: f32[1,4], index: 2, kind: input, shape index: {}]
  %s3 = inlined_call_operand.<no memory space> [shape: f32[1], index: 3, kind: input, shape index: {}]
  %s4 = inlined_call_operand.vmem [shape: bf16[1,16,8,4], index: 4, kind: output, shape index: {}]
  %s5 = sld [smem:[#allocation0]]
  $region49: #{d_upblock_forward.4} parent=0
    _
  %s7 = ssub.s32 1, %s5
  %s8 = scalar_select 0, %s7, %s5
  %9 = sst [smem:[#allocation2]] %s3
  loop: start=0, step=1, limit=6
  $region2: #{d_upblock_forward.4} parent=0 // loop_pre_header
    _
  $region3: #{d_upblock_forward.4} parent=0 // loop_header
    %s11 = sphi 0, %s15
    %p12 = scmp.ge.s32.totalorder %s11, 6
    %s18 = sphi 0, %s30
    %s19 = sphi 0, %s26
    %s20 = sphi 0, %s18
    %s21 = sphi 0, %s19
    %s22 = sphi 0, %s20
    %s23 = sphi 0, %s21
    %s35 = sphi 0, %s37
    %s38 = sphi 0, %s35
    %s39 = sphi 0, %s38
    %s55 = sphi 0, %s39
    %s59 = sphi 0, %s59
    %s61 = sphi 0, %s59
    %s62 = sphi 0, %s61
    %s76 = sphi 0, %s62
    %s80 = sphi 0, %s80
    %s82 = sphi 0, %s80
    %s83 = sphi 0, %s82
    %s97 = sphi 0, %s83
    %s101 = sphi 0, %s101
    %s103 = sphi 0, %s101
    %s104 = sphi 0, %s103
    %s118 = sphi 0, %s104
    %s126 = sphi 0, %s128
    %s129 = sphi 0, %s126
    %s130 = sphi 0, %s129
    %s146 = sphi 0, %s130
  $region4: #{d_upblock_forward.4} parent=0 // loop_header_branch
    %14 = sbr.rel (%p12) target = $region8
  $region5: #{d_upblock_forward.4} parent=0 // loop_body
    %s16 = ssub.s32 %s11, 1
    %s17 = ssub.s32 %s11, 2
    %s24 = sadd.s32 1, %s19
    %p25 = scmp.ge.s32.totalorder %s24, 4
    %s26 = scalar_select %p25, 0, %s24
    %s27 = sadd.s32 1, %s18
    %s28 = scalar_select %p25, %s27, %s18
    %p29 = scmp.ge.s32.totalorder %s28, 1
    %s30 = scalar_select %p29, 0, %s28
    %s31 = ssub.s32 %s18, %s30
    %s32 = ssub.s32 %s19, %s26
    %s33 = sor.u32 %s31, %s32
    %p34 = scmp.eq.s32.totalorder %s33, 0
    %s36 = sadd.s32 %s35, 1
    %s37 = scalar_select %p34, %s35, %s36
    %p40 = pneg %p34
    %p41 = scmp.eq.s32.totalorder %s11, 3
    %p42 = por %p40, %p41
    %p43 = scmp.ne.s32.totalorder %s35, %s38
    %p44 = scmp.eq.s32.totalorder %s11, 0
    %p45 = por %p43, %p44
    %p46 = scmp.ne.s32.totalorder %s35, %s38
    %p47 = scmp.eq.s32.totalorder %s16, 3
    %p48 = por %p46, %p47
    %p49 = scmp.ne.s32.totalorder %s38, %s39
    %p50 = scmp.eq.s32.totalorder %s16, 0
    %p51 = por %p49, %p50
    %p52 = scmp.ne.s32.totalorder %s38, %s39
    %p53 = scmp.eq.s32.totalorder %s17, 3
    %p54 = por %p52, %p53
    %p56 = scmp.ne.s32.totalorder %s39, %s55
    %p57 = scmp.eq.s32.totalorder %s17, 0
    %p58 = por %p56, %p57
    %s60 = sadd.s32 %s59, 1
    %p63 = scmp.eq.s32.totalorder %s11, 3
    %p64 = scmp.ne.s32.totalorder %s59, %s61
    %p65 = scmp.eq.s32.totalorder %s11, 0
    %p66 = por %p64, %p65
    %p67 = scmp.ne.s32.totalorder %s59, %s61
    %p68 = scmp.eq.s32.totalorder %s16, 3
    %p69 = por %p67, %p68
    %p70 = scmp.ne.s32.totalorder %s61, %s62
    %p71 = scmp.eq.s32.totalorder %s16, 0
    %p72 = por %p70, %p71
    %p73 = scmp.ne.s32.totalorder %s61, %s62
    %p74 = scmp.eq.s32.totalorder %s17, 3
    %p75 = por %p73, %p74
    %p77 = scmp.ne.s32.totalorder %s62, %s76
    %p78 = scmp.eq.s32.totalorder %s17, 0
    %p79 = por %p77, %p78
    %s81 = sadd.s32 %s80, 1
    %p84 = scmp.eq.s32.totalorder %s11, 3
    %p85 = scmp.ne.s32.totalorder %s80, %s82
    %p86 = scmp.eq.s32.totalorder %s11, 0
    %p87 = por %p85, %p86
    %p88 = scmp.ne.s32.totalorder %s80, %s82
    %p89 = scmp.eq.s32.totalorder %s16, 3
    %p90 = por %p88, %p89
    %p91 = scmp.ne.s32.totalorder %s82, %s83
    %p92 = scmp.eq.s32.totalorder %s16, 0
    %p93 = por %p91, %p92
    %p94 = scmp.ne.s32.totalorder %s82, %s83
    %p95 = scmp.eq.s32.totalorder %s17, 3
    %p96 = por %p94, %p95
    %p98 = scmp.ne.s32.totalorder %s83, %s97
    %p99 = scmp.eq.s32.totalorder %s17, 0
    %p100 = por %p98, %p99
    %s102 = sadd.s32 %s101, 1
    %p105 = scmp.eq.s32.totalorder %s11, 3
    %p106 = scmp.ne.s32.totalorder %s101, %s103
    %p107 = scmp.eq.s32.totalorder %s11, 0
    %p108 = por %p106, %p107
    %p109 = scmp.ne.s32.totalorder %s101, %s103
    %p110 = scmp.eq.s32.totalorder %s16, 3
    %p111 = por %p109, %p110
    %p112 = scmp.ne.s32.totalorder %s103, %s104
    %p113 = scmp.eq.s32.totalorder %s16, 0
    %p114 = por %p112, %p113
    %p115 = scmp.ne.s32.totalorder %s103, %s104
    %p116 = scmp.eq.s32.totalorder %s17, 3
    %p117 = por %p115, %p116
    %p119 = scmp.ne.s32.totalorder %s104, %s118
    %p120 = scmp.eq.s32.totalorder %s17, 0
    %p121 = por %p119, %p120
    %s122 = ssub.s32 %s18, %s30
    %s123 = ssub.s32 %s19, %s26
    %s124 = sor.u32 %s122, %s123
    %p125 = scmp.eq.s32.totalorder %s124, 0
    %s127 = sadd.s32 %s126, 1
    %s128 = scalar_select %p125, %s126, %s127
    %p131 = pneg %p125
    %p132 = scmp.eq.s32.totalorder %s11, 3
    %p133 = por %p131, %p132
    %p134 = scmp.ne.s32.totalorder %s126, %s129
    %p135 = scmp.eq.s32.totalorder %s11, 0
    %p136 = por %p134, %p135
    %p137 = scmp.ne.s32.totalorder %s126, %s129
    %p138 = scmp.eq.s32.totalorder %s16, 3
    %p139 = por %p137, %p138
    %p140 = scmp.ne.s32.totalorder %s129, %s130
    %p141 = scmp.eq.s32.totalorder %s16, 0
    %p142 = por %p140, %p141
    %p143 = scmp.ne.s32.totalorder %s129, %s130
    %p144 = scmp.eq.s32.totalorder %s17, 3
    %p145 = por %p143, %p144
    %p147 = scmp.ne.s32.totalorder %s130, %s146
    %p148 = scmp.eq.s32.totalorder %s17, 0
    %p149 = por %p147, %p148
    %p150 = scmp.le.s32.totalorder 1, %s11
    %p151 = scmp.lt.s32.totalorder %s11, 5
    %p152 = pnand %p150, %p151
    %p153 = pneg %p152
    // Predicated region
    $region9: #{d_upblock_forward.4} parent=5 // pred_check
      _
    $region10: #{d_upblock_forward.4} parent=5 // pred_check_branch
      %155 = sbr.rel (%p152) target = $region12
    $region11: #{d_upblock_forward.4} parent=5 // pred_region
      %s156 = ssub.s32 %s11, 1
      // Predicated region
      $region13: #{d_upblock_forward.4} parent=11 // pred_check
        %p157 = pneg %p72
      $region14: #{d_upblock_forward.4} parent=11 // pred_check_branch
        %159 = sbr.rel (%p157) target = $region16
      $region15: #{d_upblock_forward.4} parent=11 // pred_region
        _
      $region16: #{d_upblock_forward.4} parent=11 // pred_fallthru
        _
      // Predicated region
      $region17: #{d_upblock_forward.4} parent=11 // pred_check
        %p160 = pneg %p93
      $region18: #{d_upblock_forward.4} parent=11 // pred_check_branch
        %162 = sbr.rel (%p160) target = $region20
      $region19: #{d_upblock_forward.4} parent=11 // pred_region
        _
      $region20: #{d_upblock_forward.4} parent=11 // pred_fallthru
        _
      // Predicated region
      $region21: #{d_upblock_forward.4} parent=11 // pred_check
        %p163 = pneg %p114
      $region22: #{d_upblock_forward.4} parent=11 // pred_check_branch
        %165 = sbr.rel (%p163) target = $region24
      $region23: #{d_upblock_forward.4} parent=11 // pred_region
        _
      $region24: #{d_upblock_forward.4} parent=11 // pred_fallthru
        _
    $region12: #{d_upblock_forward.4} parent=5 // pred_fallthru
      _
    %p166 = scmp.lt.s32.totalorder %s11, 4
    // Predicated region
    $region25: #{d_upblock_forward.4} parent=5 // pred_check
      %p167 = pneg %p166
    $region26: #{d_upblock_forward.4} parent=5 // pred_check_branch
      %169 = sbr.rel (%p167) target = $region28
    $region27: #{d_upblock_forward.4} parent=5 // pred_region
      // Predicated region
      $region29: #{d_upblock_forward.4} parent=27 // pred_check
        %p170 = pneg %p45
      $region30: #{d_upblock_forward.4} parent=27 // pred_check_branch
        %172 = sbr.rel (%p170) target = $region32
      $region31: #{d_upblock_forward.4} parent=27 // pred_region
        %s173 = smul.u32 4, %s19
        %p174 = scmp.lt.s32.totalorder %s18, 0
        %s175 = scalar_select %p174, %s18, 0
        %p176 = scmp.lt.s32.totalorder %s173, 15
        %s177 = scalar_select %p176, %s173, 15
        %s178 = smul.addr %s175, 16
        %s179 = sadd.s32 %s177, %s178
        %s180 = smul.addr %s179, 4
        %s181 = scalar_lea.vmem %s0, %s180
        %s182 = smul.u32 4, %s19
      $region32: #{d_upblock_forward.4} parent=27 // pred_fallthru
        _
    $region28: #{d_upblock_forward.4} parent=5 // pred_fallthru
      _
    %p183 = scmp.le.s32.totalorder 1, %s11
    %p184 = scmp.lt.s32.totalorder %s11, 5
    %p185 = pnand %p183, %p184
    %p186 = pneg %p185
    // Predicated region
    $region33: #{d_upblock_forward.4} parent=5 // pred_check
      _
    $region34: #{d_upblock_forward.4} parent=5 // pred_check_branch
      %188 = sbr.rel (%p185) target = $region36
    $region35: #{d_upblock_forward.4} parent=5 // pred_region
      %s189 = ssub.s32 %s11, 1
      %s190 = smul.u32 4, %s21
      %p191 = scmp.lt.s32.totalorder %s20, 0
      %s192 = scalar_select %p191, %s20, 0
      %p193 = scmp.lt.s32.totalorder %s190, 15
      %s194 = scalar_select %p193, %s190, 15
      %s195 = smul.addr %s192, 16
      %s196 = sadd.s32 %s194, %s195
      %s197 = smul.addr %s196, 4
      %s198 = scalar_lea.vmem %s0, %s197
      %p199 = pneg %p51
      %p200 = pneg %p48
      %p201 = pneg %p72
      %p202 = pneg %p69
      %p203 = pneg %p93
      %p204 = pneg %p90
      %p205 = pneg %p114
      %p206 = pneg %p111
      %p207 = pneg %p142
      %p208 = pneg %p139
      %s209 = smul.u32 4, %s21
      %p210 = scmp.lt.s32.totalorder %s20, 0
      %s211 = scalar_select %p210, %s20, 0
      %p212 = scmp.lt.s32.totalorder %s209, 15
      %s213 = scalar_select %p212, %s209, 15
      %s214 = smul.addr %s211, 16
      %s215 = sadd.s32 %s213, %s214
      %s216 = smul.addr %s215, 4
      %s217 = scalar_lea.vmem %s4, %s216
      %s218 = smul.u32 4, %s21
      %p219 = scmp.lt.s32.totalorder %s20, 0
      %s220 = scalar_select %p219, %s20, 0
      %p221 = scmp.lt.s32.totalorder %s218, 15
      %s222 = scalar_select %p221, %s218, 15
      %s223 = smul.addr %s220, 16
      %s224 = sadd.s32 %s222, %s223
      %s225 = smul.addr %s224, 4
      %s226 = scalar_lea.vmem %s0, %s225
      %s227 = smul.u32 4, %s21
      %s228 = smul.u32 4, %s21
      %p229 = scmp.lt.s32.totalorder %s20, 0
      %s230 = scalar_select %p229, %s20, 0
      %p231 = scmp.lt.s32.totalorder %s228, 15
      %s232 = scalar_select %p231, %s228, 15
      %s233 = smul.addr %s230, 16
      %s234 = sadd.s32 %s232, %s233
      %s235 = smul.addr %s234, 4
      %s236 = scalar_lea.vmem %s4, %s235
      %s237 = smul.u32 4, %s21
      %v239 = vld [vmem:[%s226] sm:$0xf]
      %v240 = vld [vmem:[%s226 + $0x4] sm:$0xf]
      %v241 = vld [vmem:[%s226 + $0x8] sm:$0xf]
      %v242 = vld [vmem:[%s226 + $0xc] sm:$0xf]
      %v243 = vld [vmem:[%s1] sm:$0x3]
      %v244 = vld [vmem:[%s2] sm:$0x1]
      %v246 = vlaneseq
      %v247 = vshrl.u32 %v246, 7
      %v248 = vsub.s32 0, %v247
      %v249 = vrot.slane %v244, %v248
      %v255 = vunpack.c.l.b16 %v239
      %v256 = vunpack.c.l.b16 %v240
      %v257 = vunpack.c.l.b16 %v241
      %v258 = vunpack.c.l.b16 %v242
      %v259 = vpack.c.b16 %v256, %v255
      %v260 = vpack.c.b16 %v258, %v257
      %vm261 = vcmask 31744
      %v263 = vsel %vm261, %v259, 0
      %v266 = vsel %vm261, %v260, 0
      %vm268 = vcmask 1041408
      %v270 = vsel %vm268, %v243, 0
      %272 = vmatprep.subr.bf16.mxu0 0
      %273 = vmatpush1.bf16.msra.mxu0 %v270
      %274 = vmatprep.subr.bf16.mxu0 0
      %275 = vmatpush1.bf16.msra.mxu0 0
      %276 = vmatprep.subr.bf16.mxu0 0
      %277 = vmatpush1.bf16.msra.mxu0 0
      %278 = vmatprep.subr.bf16.mxu0 0
      %279 = vmatpush1.bf16.msra.mxu0 0
      %280 = vmatprep.subr.bf16.mxu0 0
      %281 = vmatpush1.bf16.msra.mxu0 0
      %282 = vmatprep.subr.bf16.mxu0 0
      %283 = vmatpush1.bf16.msra.mxu0 0
      %284 = vmatprep.subr.bf16.mxu0 0
      %285 = vmatpush1.bf16.msra.mxu0 0
      %286 = vmatprep.subr.bf16.mxu0 0
      %287 = vmatpush1.bf16.msra.mxu0 0
      %288 = vmatprep.subr.bf16.mxu0 0
      %289 = vmatpush1.bf16.msra.mxu0 0
      %290 = vmatprep.subr.bf16.mxu0 0
      %291 = vmatpush1.bf16.msra.mxu0 0
      %292 = vmatprep.subr.bf16.mxu0 0
      %293 = vmatpush1.bf16.msra.mxu0 0
      %294 = vmatprep.subr.bf16.mxu0 0
      %295 = vmatpush1.bf16.msra.mxu0 0
      %296 = vmatprep.subr.bf16.mxu0 0
      %297 = vmatpush1.bf16.msra.mxu0 0
      %298 = vmatprep.subr.bf16.mxu0 0
      %299 = vmatpush1.bf16.msra.mxu0 0
      %300 = vmatprep.subr.bf16.mxu0 0
      %301 = vmatpush1.bf16.msra.mxu0 0
      %302 = vmatprep.subr.bf16.mxu0 0
      %303 = vmatpush1.bf16.msra.mxu0 0
      %304 = vmatprep.mubr.bf16.mxu0 0
      %305 = vmatmul.mubr.bf16.gmra.mrb[0].mxu0 %v263
      %v306 = vpop.f32.mrb[0].mxu0
      %v307 = vadd.f32 %v249, %v306
      %v308 = vpop.f32.mrb[0].mxu0
      %v309 = vpop.f32.mrb[0].mxu0
      %v310 = vadd.f32 %v249, %v309
      %v311 = vpop.f32.mrb[0].mxu0
      %312 = vmatprep.mubr.bf16.mxu0 0
      %313 = vmatmul.mubr.bf16.gmra.mrb[0].mxu0 %v266
      %v314 = vpop.f32.mrb[0].mxu0
      %v315 = vadd.f32 %v249, %v314
      %v316 = vpop.f32.mrb[0].mxu0
      %v317 = vpop.f32.mrb[0].mxu0
      %v318 = vadd.f32 %v249, %v317
      %v319 = vpop.f32.mrb[0].mxu0
      %320 = vdwg.mxu0
      %s321 = sld [smem:[#allocation2]]
      %vm322 = vcmp.ge.f32.partialorder %v307, 0.0
      %vm323 = vcmp.ge.f32.partialorder %v310, 0.0
      %vm324 = vcmp.ge.f32.partialorder %v315, 0.0
      %vm325 = vcmp.ge.f32.partialorder %v318, 0.0
      %v326 = vstv %s321
      %v327 = vmul.f32 %v326, %v307
      %v328 = vmul.f32 %v326, %v310
      %v329 = vmul.f32 %v326, %v315
      %v330 = vmul.f32 %v326, %v318
      %v331 = vsel %vm322, %v307, %v327
      %v332 = vsel %vm323, %v310, %v328
      %v333 = vsel %vm324, %v315, %v329
      %v334 = vsel %vm325, %v318, %v330
      %v335 = vpack.c.bf16 %v331, %v331
      %v336 = vpack.c.bf16 %v332, %v332
      %v337 = vpack.c.bf16 %v333, %v333
      %v338 = vpack.c.bf16 %v334, %v334
      %vm339 = vcmask 27648
      %340 = vst.msk [vmem:[%s236] sm:$0xf] %vm339, %v335
      %341 = vst.msk [vmem:[%s236 + $0x4] sm:$0xf] %vm339, %v336
      %342 = vst.msk [vmem:[%s236 + $0x8] sm:$0xf] %vm339, %v337
      %343 = vst.msk [vmem:[%s236 + $0xc] sm:$0xf] %vm339, %v338
      %s344 = smul.u32 4, %s21
      %p345 = scmp.lt.s32.totalorder %s20, 0
      %s346 = scalar_select %p345, %s20, 0
      %p347 = scmp.lt.s32.totalorder %s344, 15
      %s348 = scalar_select %p347, %s344, 15
      %s349 = smul.addr %s346, 16
      %s350 = sadd.s32 %s348, %s349
      %s351 = smul.addr %s350, 4
      %s352 = scalar_lea.vmem %s4, %s351
      // Predicated region
      $region37: #{d_upblock_forward.4} parent=35 // pred_check
        %p353 = pneg %p139
      $region38: #{d_upblock_forward.4} parent=35 // pred_check_branch
        %355 = sbr.rel (%p353) target = $region40
      $region39: #{d_upblock_forward.4} parent=35 // pred_region
        %s356 = smul.u32 4, %s21
      $region40: #{d_upblock_forward.4} parent=35 // pred_fallthru
        _
    $region36: #{d_upblock_forward.4} parent=5 // pred_fallthru
      _
    %p357 = scmp.le.s32.totalorder 2, %s11
    // Predicated region
    $region41: #{d_upblock_forward.4} parent=5 // pred_check
      %p358 = pneg %p357
    $region42: #{d_upblock_forward.4} parent=5 // pred_check_branch
      %360 = sbr.rel (%p358) target = $region44
    $region43: #{d_upblock_forward.4} parent=5 // pred_region
      %s361 = ssub.s32 %s11, 2
      // Predicated region
      $region45: #{d_upblock_forward.4} parent=43 // pred_check
        %p362 = pneg %p145
      $region46: #{d_upblock_forward.4} parent=43 // pred_check_branch
        %364 = sbr.rel (%p362) target = $region48
      $region47: #{d_upblock_forward.4} parent=43 // pred_region
        %s365 = smul.u32 4, %s23
        %p366 = scmp.lt.s32.totalorder %s22, 0
        %s367 = scalar_select %p366, %s22, 0
        %p368 = scmp.lt.s32.totalorder %s365, 15
        %s369 = scalar_select %p368, %s365, 15
        %s370 = smul.addr %s367, 16
        %s371 = sadd.s32 %s369, %s370
        %s372 = smul.addr %s371, 4
        %s373 = scalar_lea.vmem %s4, %s372
      $region48: #{d_upblock_forward.4} parent=43 // pred_fallthru
        _
    $region44: #{d_upblock_forward.4} parent=5 // pred_fallthru
      _
  $region6: #{d_upblock_forward.4} parent=0 // loop_footer
    %s15 = sadd.s32 1, %s11
  $region7: #{d_upblock_forward.4} parent=0 // loop_footer_branch
    %10 = sbr.rel target = $region3
  $region8: #{d_upblock_forward.4} parent=0 // loop_exit
    _

// kernel: d_upblock_forward.5
$region0: #{d_upblock_forward.5}
  #allocation0 [shape = 'u32[]', space=smem, size = 0x4, offset = 0x4, fixed_abs, tag = 'smem constant byte address 0x4 - core index']
  #allocation1 [shape = 'u32[144,128]{1,0:T(1,128)}', space=vmem, size = 0x12000, scoped, tag = 'internal scratch']
  #allocation2 [shape = 'bf16[6,10,4]{2,1,0:T(8,128)(2,1)}', space=vmem, size = 0x6000, scoped, tag = 'scratch operand']
  #allocation3 [shape = 'f32[1]{0:T(128)S(6)}', space=smem, size = 0x200, scoped, tag = 'scoped memory for d_upblock_forward.5']
  %s0 = inlined_call_operand.vmem [shape: bf16[2,10,10,4], index: 0, kind: input, shape index: {}, may-alias: {0,1}]
  %s1 = inlined_call_operand.vmem [shape: bf16[2,10,10,4], index: 1, kind: input, shape index: {}, may-alias: {0,1}]
  %s2 = inlined_call_operand.vmem [shape: bf16[9,4,64], index: 2, kind: input, shape index: {}]
  %s3 = inlined_call_operand.vmem [shape: f32[1,64], index: 3, kind: input, shape index: {}]
  %s4 = inlined_call_operand.<no memory space> [shape: f32[1], index: 4, kind: input, shape index: {}]
  %s5 = inlined_call_operand.vmem [shape: bf16[2,8,8,64], index: 5, kind: output, shape index: {}]
  %s6 = sld [smem:[#allocation0]]
  $region53: #{d_upblock_forward.5} parent=0
    _
  %s8 = ssub.s32 1, %s6
  %s9 = scalar_select 0, %s8, %s6
  %10 = sst [smem:[#allocation3]] %s4
  loop: start=0, step=1, limit=6
  $region2: #{d_upblock_forward.5} parent=0 // loop_pre_header
    _
  $region3: #{d_upblock_forward.5} parent=0 // loop_header
    %s12 = sphi 0, %s16
    %p13 = scmp.ge.s32.totalorder %s12, 6
    %s19 = sphi 0, %s31
    %s20 = sphi 0, %s27
    %s21 = sphi 0, %s19
    %s22 = sphi 0, %s20
    %s23 = sphi 0, %s21
    %s24 = sphi 0, %s22
    %s36 = sphi 0, %s38
    %s39 = sphi 0, %s36
    %s40 = sphi 0, %s39
    %s56 = sphi 0, %s40
    %s68 = sphi 0, %s70
    %s71 = sphi 0, %s68
    %s72 = sphi 0, %s71
    %s88 = sphi 0, %s72
    %s92 = sphi 0, %s92
    %s94 = sphi 0, %s92
    %s95 = sphi 0, %s94
    %s109 = sphi 0, %s95
    %s113 = sphi 0, %s113
    %s115 = sphi 0, %s113
    %s116 = sphi 0, %s115
    %s130 = sphi 0, %s116
    %s134 = sphi 0, %s134
    %s136 = sphi 0, %s134
    %s137 = sphi 0, %s136
    %s151 = sphi 0, %s137
    %s159 = sphi 0, %s161
    %s162 = sphi 0, %s159
    %s163 = sphi 0, %s162
    %s179 = sphi 0, %s163
  $region4: #{d_upblock_forward.5} parent=0 // loop_header_branch
    %15 = sbr.rel (%p13) target = $region8
  $region5: #{d_upblock_forward.5} parent=0 // loop_body
    %s17 = ssub.s32 %s12, 1
    %s18 = ssub.s32 %s12, 2
    %s25 = sadd.s32 1, %s20
    %p26 = scmp.ge.s32.totalorder %s25, 2
    %s27 = scalar_select %p26, 0, %s25
    %s28 = sadd.s32 1, %s19
    %s29 = scalar_select %p26, %s28, %s19
    %p30 = scmp.ge.s32.totalorder %s29, 2
    %s31 = scalar_select %p30, 0, %s29
    %s32 = ssub.s32 %s19, %s31
    %s33 = ssub.s32 %s20, %s27
    %s34 = sor.u32 %s32, %s33
    %p35 = scmp.eq.s32.totalorder %s34, 0
    %s37 = sadd.s32 %s36, 1
    %s38 = scalar_select %p35, %s36, %s37
    %p41 = pneg %p35
    %p42 = scmp.eq.s32.totalorder %s12, 3
    %p43 = por %p41, %p42
    %p44 = scmp.ne.s32.totalorder %s36, %s39
    %p45 = scmp.eq.s32.totalorder %s12, 0
    %p46 = por %p44, %p45
    %p47 = scmp.ne.s32.totalorder %s36, %s39
    %p48 = scmp.eq.s32.totalorder %s17, 3
    %p49 = por %p47, %p48
    %p50 = scmp.ne.s32.totalorder %s39, %s40
    %p51 = scmp.eq.s32.totalorder %s17, 0
    %p52 = por %p50, %p51
    %p53 = scmp.ne.s32.totalorder %s39, %s40
    %p54 = scmp.eq.s32.totalorder %s18, 3
    %p55 = por %p53, %p54
    %p57 = scmp.ne.s32.totalorder %s40, %s56
    %p58 = scmp.eq.s32.totalorder %s18, 0
    %p59 = por %p57, %p58
    %s60 = sadd.s32 %s20, 1
    %s61 = smul.u32 %s60, 2
    %s62 = sadd.s32 %s27, 1
    %s63 = smul.u32 %s62, 2
    %s64 = ssub.s32 %s19, %s31
    %s65 = ssub.s32 %s61, %s63
    %s66 = sor.u32 %s64, %s65
    %p67 = scmp.eq.s32.totalorder %s66, 0
    %s69 = sadd.s32 %s68, 1
    %s70 = scalar_select %p67, %s68, %s69
    %p73 = pneg %p67
    %p74 = scmp.eq.s32.totalorder %s12, 3
    %p75 = por %p73, %p74
    %p76 = scmp.ne.s32.totalorder %s68, %s71
    %p77 = scmp.eq.s32.totalorder %s12, 0
    %p78 = por %p76, %p77
    %p79 = scmp.ne.s32.totalorder %s68, %s71
    %p80 = scmp.eq.s32.totalorder %s17, 3
    %p81 = por %p79, %p80
    %p82 = scmp.ne.s32.totalorder %s71, %s72
    %p83 = scmp.eq.s32.totalorder %s17, 0
    %p84 = por %p82, %p83
    %p85 = scmp.ne.s32.totalorder %s71, %s72
    %p86 = scmp.eq.s32.totalorder %s18, 3
    %p87 = por %p85, %p86
    %p89 = scmp.ne.s32.totalorder %s72, %s88
    %p90 = scmp.eq.s32.totalorder %s18, 0
    %p91 = por %p89, %p90
    %s93 = sadd.s32 %s92, 1
    %p96 = scmp.eq.s32.totalorder %s12, 3
    %p97 = scmp.ne.s32.totalorder %s92, %s94
    %p98 = scmp.eq.s32.totalorder %s12, 0
    %p99 = por %p97, %p98
    %p100 = scmp.ne.s32.totalorder %s92, %s94
    %p101 = scmp.eq.s32.totalorder %s17, 3
    %p102 = por %p100, %p101
    %p103 = scmp.ne.s32.totalorder %s94, %s95
    %p104 = scmp.eq.s32.totalorder %s17, 0
    %p105 = por %p103, %p104
    %p106 = scmp.ne.s32.totalorder %s94, %s95
    %p107 = scmp.eq.s32.totalorder %s18, 3
    %p108 = por %p106, %p107
    %p110 = scmp.ne.s32.totalorder %s95, %s109
    %p111 = scmp.eq.s32.totalorder %s18, 0
    %p112 = por %p110, %p111
    %s114 = sadd.s32 %s113, 1
    %p117 = scmp.eq.s32.totalorder %s12, 3
    %p118 = scmp.ne.s32.totalorder %s113, %s115
    %p119 = scmp.eq.s32.totalorder %s12, 0
    %p120 = por %p118, %p119
    %p121 = scmp.ne.s32.totalorder %s113, %s115
    %p122 = scmp.eq.s32.totalorder %s17, 3
    %p123 = por %p121, %p122
    %p124 = scmp.ne.s32.totalorder %s115, %s116
    %p125 = scmp.eq.s32.totalorder %s17, 0
    %p126 = por %p124, %p125
    %p127 = scmp.ne.s32.totalorder %s115, %s116
    %p128 = scmp.eq.s32.totalorder %s18, 3
    %p129 = por %p127, %p128
    %p131 = scmp.ne.s32.totalorder %s116, %s130
    %p132 = scmp.eq.s32.totalorder %s18, 0
    %p133 = por %p131, %p132
    %s135 = sadd.s32 %s134, 1
    %p138 = scmp.eq.s32.totalorder %s12, 3
    %p139 = scmp.ne.s32.totalorder %s134, %s136
    %p140 = scmp.eq.s32.totalorder %s12, 0
    %p141 = por %p139, %p140
    %p142 = scmp.ne.s32.totalorder %s134, %s136
    %p143 = scmp.eq.s32.totalorder %s17, 3
    %p144 = por %p142, %p143
    %p145 = scmp.ne.s32.totalorder %s136, %s137
    %p146 = scmp.eq.s32.totalorder %s17, 0
    %p147 = por %p145, %p146
    %p148 = scmp.ne.s32.totalorder %s136, %s137
    %p149 = scmp.eq.s32.totalorder %s18, 3
    %p150 = por %p148, %p149
    %p152 = scmp.ne.s32.totalorder %s137, %s151
    %p153 = scmp.eq.s32.totalorder %s18, 0
    %p154 = por %p152, %p153
    %s155 = ssub.s32 %s19, %s31
    %s156 = ssub.s32 %s20, %s27
    %s157 = sor.u32 %s155, %s156
    %p158 = scmp.eq.s32.totalorder %s157, 0
    %s160 = sadd.s32 %s159, 1
    %s161 = scalar_select %p158, %s159, %s160
    %p164 = pneg %p158
    %p165 = scmp.eq.s32.totalorder %s12, 3
    %p166 = por %p164, %p165
    %p167 = scmp.ne.s32.totalorder %s159, %s162
    %p168 = scmp.eq.s32.totalorder %s12, 0
    %p169 = por %p167, %p168
    %p170 = scmp.ne.s32.totalorder %s159, %s162
    %p171 = scmp.eq.s32.totalorder %s17, 3
    %p172 = por %p170, %p171
    %p173 = scmp.ne.s32.totalorder %s162, %s163
    %p174 = scmp.eq.s32.totalorder %s17, 0
    %p175 = por %p173, %p174
    %p176 = scmp.ne.s32.totalorder %s162, %s163
    %p177 = scmp.eq.s32.totalorder %s18, 3
    %p178 = por %p176, %p177
    %p180 = scmp.ne.s32.totalorder %s163, %s179
    %p181 = scmp.eq.s32.totalorder %s18, 0
    %p182 = por %p180, %p181
    %p183 = scmp.le.s32.totalorder 1, %s12
    %p184 = scmp.lt.s32.totalorder %s12, 5
    %p185 = pnand %p183, %p184
    %p186 = pneg %p185
    // Predicated region
    $region9: #{d_upblock_forward.5} parent=5 // pred_check
      _
    $region10: #{d_upblock_forward.5} parent=5 // pred_check_branch
      %188 = sbr.rel (%p185) target = $region12
    $region11: #{d_upblock_forward.5} parent=5 // pred_region
      %s189 = ssub.s32 %s12, 1
      // Predicated region
      $region13: #{d_upblock_forward.5} parent=11 // pred_check
        %p190 = pneg %p105
      $region14: #{d_upblock_forward.5} parent=11 // pred_check_branch
        %192 = sbr.rel (%p190) target = $region16
      $region15: #{d_upblock_forward.5} parent=11 // pred_region
        _
      $region16: #{d_upblock_forward.5} parent=11 // pred_fallthru
        _
      // Predicated region
      $region17: #{d_upblock_forward.5} parent=11 // pred_check
        %p193 = pneg %p126
      $region18: #{d_upblock_forward.5} parent=11 // pred_check_branch
        %195 = sbr.rel (%p193) target = $region20
      $region19: #{d_upblock_forward.5} parent=11 // pred_region
        _
      $region20: #{d_upblock_forward.5} parent=11 // pred_fallthru
        _
      // Predicated region
      $region21: #{d_upblock_forward.5} parent=11 // pred_check
        %p196 = pneg %p147
      $region22: #{d_upblock_forward.5} parent=11 // pred_check_branch
        %198 = sbr.rel (%p196) target = $region24
      $region23: #{d_upblock_forward.5} parent=11 // pred_region
        _
      $region24: #{d_upblock_forward.5} parent=11 // pred_fallthru
        _
    $region12: #{d_upblock_forward.5} parent=5 // pred_fallthru
      _
    %p199 = scmp.lt.s32.totalorder %s12, 4
    // Predicated region
    $region25: #{d_upblock_forward.5} parent=5 // pred_check
      %p200 = pneg %p199
    $region26: #{d_upblock_forward.5} parent=5 // pred_check_branch
      %202 = sbr.rel (%p200) target = $region28
    $region27: #{d_upblock_forward.5} parent=5 // pred_region
      // Predicated region
      $region29: #{d_upblock_forward.5} parent=27 // pred_check
        %p203 = pneg %p46
      $region30: #{d_upblock_forward.5} parent=27 // pred_check_branch
        %205 = sbr.rel (%p203) target = $region32
      $region31: #{d_upblock_forward.5} parent=27 // pred_region
        %s206 = smul.u32 4, %s20
        %s207 = ssub.s32 10, %s206
        %p208 = scmp.lt.s32.totalorder %s207, 4
        %s209 = scalar_select %p208, %s207, 4
        %s210 = smul.u32 64, %s209
        %s211 = smul.u32 %s210, 2
        %p212 = scmp.lt.s32.totalorder %s19, 1
        %s213 = scalar_select %p212, %s19, 1
        %p214 = scmp.lt.s32.totalorder %s206, 9
        %s215 = scalar_select %p214, %s206, 9
        %s216 = smul.addr %s215, 2
        %s217 = smul.addr %s213, 20
        %s218 = sadd.s32 %s216, %s217
        %s219 = smul.addr %s218, 4
        %s220 = scalar_lea.vmem %s0, %s219
        %s221 = smul.u32 4, %s20
        %s222 = ssub.s32 10, %s221
        %p223 = scmp.lt.s32.totalorder %s222, 4
        %s224 = scalar_select %p223, %s222, 4
        %s225 = smul.u32 64, %s224
        %s226 = smul.u32 %s225, 2
      $region32: #{d_upblock_forward.5} parent=27 // pred_fallthru
        _
      // Predicated region
      $region33: #{d_upblock_forward.5} parent=27 // pred_check
        %p227 = pneg %p78
      $region34: #{d_upblock_forward.5} parent=27 // pred_check_branch
        %229 = sbr.rel (%p227) target = $region36
      $region35: #{d_upblock_forward.5} parent=27 // pred_region
        %s230 = sadd.s32 %s20, 1
        %s231 = smul.u32 %s230, 2
        %s232 = smul.u32 2, %s231
        %p233 = scmp.lt.s32.totalorder %s19, 1
        %s234 = scalar_select %p233, %s19, 1
        %p235 = scmp.lt.s32.totalorder %s232, 9
        %s236 = scalar_select %p235, %s232, 9
        %s237 = smul.addr %s236, 2
        %s238 = smul.addr %s234, 20
        %s239 = sadd.s32 %s237, %s238
        %s240 = smul.addr %s239, 4
        %s241 = scalar_lea.vmem %s1, %s240
        %s242 = sadd.s32 %s20, 1
        %s243 = smul.u32 %s242, 2
        %s244 = smul.u32 2, %s243
      $region36: #{d_upblock_forward.5} parent=27 // pred_fallthru
        _
    $region28: #{d_upblock_forward.5} parent=5 // pred_fallthru
      _
    %p245 = scmp.le.s32.totalorder 1, %s12
    %p246 = scmp.lt.s32.totalorder %s12, 5
    %p247 = pnand %p245, %p246
    %p248 = pneg %p247
    // Predicated region
    $region37: #{d_upblock_forward.5} parent=5 // pred_check
      _
    $region38: #{d_upblock_forward.5} parent=5 // pred_check_branch
      %250 = sbr.rel (%p247) target = $region40
    $region39: #{d_upblock_forward.5} parent=5 // pred_region
      %s251 = ssub.s32 %s12, 1
      %s252 = smul.u32 4, %s22
      %s253 = ssub.s32 10, %s252
      %p254 = scmp.lt.s32.totalorder %s253, 4
      %s255 = scalar_select %p254, %s253, 4
      %s256 = smul.u32 64, %s255
      %s257 = smul.u32 %s256, 2
      %p258 = scmp.lt.s32.totalorder %s21, 1
      %s259 = scalar_select %p258, %s21, 1
      %p260 = scmp.lt.s32.totalorder %s252, 9
      %s261 = scalar_select %p260, %s252, 9
      %s262 = smul.addr %s261, 2
      %s263 = smul.addr %s259, 20
      %s264 = sadd.s32 %s262, %s263
      %s265 = smul.addr %s264, 4
      %s266 = scalar_lea.vmem %s0, %s265
      %p267 = pneg %p52
      %p268 = pneg %p49
      %s269 = sadd.s32 %s22, 1
      %s270 = smul.u32 %s269, 2
      %s271 = smul.u32 2, %s270
      %p272 = scmp.lt.s32.totalorder %s21, 1
      %s273 = scalar_select %p272, %s21, 1
      %p274 = scmp.lt.s32.totalorder %s271, 9
      %s275 = scalar_select %p274, %s271, 9
      %s276 = smul.addr %s275, 2
      %s277 = smul.addr %s273, 20
      %s278 = sadd.s32 %s276, %s277
      %s279 = smul.addr %s278, 4
      %s280 = scalar_lea.vmem %s1, %s279
      %p281 = pneg %p84
      %p282 = pneg %p81
      %p283 = pneg %p105
      %p284 = pneg %p102
      %p285 = pneg %p126
      %p286 = pneg %p123
      %p287 = pneg %p147
      %p288 = pneg %p144
      %p289 = pneg %p175
      %p290 = pneg %p172
      %s291 = smul.u32 4, %s22
      %p292 = scmp.lt.s32.totalorder %s21, 1
      %s293 = scalar_select %p292, %s21, 1
      %p294 = scmp.lt.s32.totalorder %s291, 7
      %s295 = scalar_select %p294, %s291, 7
      %s296 = smul.addr %s293, 8
      %s297 = sadd.s32 %s295, %s296
      %s298 = smul.addr %s297, 4
      %s299 = scalar_lea.vmem %s5, %s298
      %s300 = smul.u32 4, %s22
      %s301 = ssub.s32 10, %s300
      %p302 = scmp.lt.s32.totalorder %s301, 4
      %s303 = scalar_select %p302, %s301, 4
      %s304 = smul.u32 64, %s303
      %s305 = smul.u32 %s304, 2
      %p306 = scmp.lt.s32.totalorder %s21, 1
      %s307 = scalar_select %p306, %s21, 1
      %p308 = scmp.lt.s32.totalorder %s300, 9
      %s309 = scalar_select %p308, %s300, 9
      %s310 = smul.addr %s309, 2
      %s311 = smul.addr %s307, 20
      %s312 = sadd.s32 %s310, %s311
      %s313 = smul.addr %s312, 4
      %s314 = scalar_lea.vmem %s0, %s313
      %s315 = smul.u32 4, %s22
      %s316 = ssub.s32 10, %s315
      %p317 = scmp.lt.s32.totalorder %s316, 4
      %s318 = scalar_select %p317, %s316, 4
      %s319 = smul.u32 64, %s318
      %s320 = smul.u32 %s319, 2
      %s321 = sadd.s32 %s22, 1
      %s322 = smul.u32 %s321, 2
      %s323 = smul.u32 2, %s322
      %p324 = scmp.lt.s32.totalorder %s21, 1
      %s325 = scalar_select %p324, %s21, 1
      %p326 = scmp.lt.s32.totalorder %s323, 9
      %s327 = scalar_select %p326, %s323, 9
      %s328 = smul.addr %s327, 2
      %s329 = smul.addr %s325, 20
      %s330 = sadd.s32 %s328, %s329
      %s331 = smul.addr %s330, 4
      %s332 = scalar_lea.vmem %s1, %s331
      %s333 = sadd.s32 %s22, 1
      %s334 = smul.u32 %s333, 2
      %s335 = smul.u32 2, %s334
      %s336 = smul.u32 4, %s22
      %p337 = scmp.lt.s32.totalorder %s21, 1
      %s338 = scalar_select %p337, %s21, 1
      %p339 = scmp.lt.s32.totalorder %s336, 7
      %s340 = scalar_select %p339, %s336, 7
      %s341 = smul.addr %s338, 8
      %s342 = sadd.s32 %s340, %s341
      %s343 = smul.addr %s342, 4
      %s344 = scalar_lea.vmem %s5, %s343
      %s345 = smul.u32 4, %s22
      %v347 = vld [vmem:[%s314] sm:$0xf]
      %v348 = vld [vmem:[%s314 + $0x4] sm:$0x1]
      %v349 = vld [vmem:[%s314 + $0x8] sm:$0xf]
      %v350 = vld [vmem:[%s314 + $0xc] sm:$0x1]
      %v351 = vld [vmem:[%s314 + $0x10] sm:$0xf]
      %v352 = vld [vmem:[%s314 + $0x14] sm:$0x1]
      %v353 = vld [vmem:[%s314 + $0x18] sm:$0xf]
      %v354 = vld [vmem:[%s314 + $0x1c] sm:$0x1]
      %vm355 = vcmask 27648
      %356 = vst.msk [vmem:[#allocation2] sm:$0xf] %vm355, %v347
      %vm357 = vcmask 24576
      %358 = vst.msk [vmem:[#allocation2 + $0x4] sm:$0x1] %vm357, %v348
      %359 = vst.msk [vmem:[#allocation2 + $0x8] sm:$0xf] %vm355, %v349
      %360 = vst.msk [vmem:[#allocation2 + $0xc] sm:$0x1] %vm357, %v350
      %361 = vst.msk [vmem:[#allocation2 + $0x10] sm:$0xf] %vm355, %v351
      %362 = vst.msk [vmem:[#allocation2 + $0x14] sm:$0x1] %vm357, %v352
      %363 = vst.msk [vmem:[#allocation2 + $0x18] sm:$0xf] %vm355, %v353
      %364 = vst.msk [vmem:[#allocation2 + $0x1c] sm:$0x1] %vm357, %v354
      %v365 = vld [vmem:[%s332] sm:$0xf]
      %v366 = vld [vmem:[%s332 + $0x4] sm:$0x1]
      %v367 = vld [vmem:[%s332 + $0x8] sm:$0xf]
      %v368 = vld [vmem:[%s332 + $0xc] sm:$0x1]
      %s369 = scalar_lea.vmem [#allocation2], 32
      %370 = vst.msk [vmem:[%s369] sm:$0xf] %vm355, %v365
      %371 = vst.msk [vmem:[%s369 + $0x4] sm:$0x1] %vm357, %v366
      %372 = vst.msk [vmem:[%s369 + $0x8] sm:$0xf] %vm355, %v367
      %373 = vst.msk [vmem:[%s369 + $0xc] sm:$0x1] %vm357, %v368
      %v374 = vld [vmem:[#allocation2] sm:$0xf]
      %v375 = vld [vmem:[#allocation2 + $0x8] sm:$0xf]
      %v376 = vld [vmem:[#allocation2 + $0x10] sm:$0xf]
      %v377 = vld [vmem:[#allocation2 + $0x18] sm:$0xf]
      %v378 = vld [vmem:[%s2] sm:$0x3]
      %v379 = vld [vmem:[#allocation2 + $0x4] sm:$0x1]
      %v380 = vld [vmem:[#allocation2 + $0xc] sm:$0x1]
      %v381 = vld [vmem:[#allocation2 + $0x14] sm:$0x1]
      %v382 = vld [vmem:[#allocation2 + $0x1c] sm:$0x1]
      %vm383 = vsmask.f32 3328
      %vm384 = vsmask.f32 7440
      %vm385 = vmor %vm383, %vm384
      %v387 = vshrl.u32 %v374, 16
      %v389 = vrot.slane %v387, 4
      %v390 = vshll.u32 %v374, 16
      %v392 = vrot.slane %v390, 5
      %v393 = vor.u32 %v389, %v392
      %v394 = vrot.slane %v393, 4
      %v396 = vshll.u32 %v379, 16
      %v398 = vrot.slane %v396, 5
      %v399 = vsel %vm385, %v394, %v398
      %v401 = vshrl.u32 %v375, 16
      %v403 = vrot.slane %v401, 4
      %v404 = vshll.u32 %v375, 16
      %v406 = vrot.slane %v404, 5
      %v407 = vor.u32 %v403, %v406
      %v408 = vrot.slane %v407, 4
      %v410 = vshll.u32 %v380, 16
      %v412 = vrot.slane %v410, 5
      %v413 = vsel %vm385, %v408, %v412
      %v415 = vshrl.u32 %v376, 16
      %v417 = vrot.slane %v415, 4
      %v418 = vshll.u32 %v376, 16
      %v420 = vrot.slane %v418, 5
      %v421 = vor.u32 %v417, %v420
      %v422 = vrot.slane %v421, 4
      %v424 = vshll.u32 %v381, 16
      %v426 = vrot.slane %v424, 5
      %v427 = vsel %vm385, %v422, %v426
      %v429 = vshrl.u32 %v377, 16
      %v431 = vrot.slane %v429, 4
      %v432 = vshll.u32 %v377, 16
      %v434 = vrot.slane %v432, 5
      %v435 = vor.u32 %v431, %v434
      %v436 = vrot.slane %v435, 4
      %v438 = vshll.u32 %v382, 16
      %v440 = vrot.slane %v438, 5
      %v441 = vsel %vm385, %v436, %v440
      %s442 = scalar_lea.vmem %s2, 2
      %v443 = vld [vmem:[%s442] sm:$0x3]
      %v444 = vunpack.c.l.b16 %v399
      %v445 = vunpack.c.l.b16 %v413
      %v446 = vunpack.c.l.b16 %v427
      %v447 = vunpack.c.l.b16 %v441
      %v448 = vpack.c.b16 %v445, %v444
      %v449 = vpack.c.b16 %v447, %v446
      %vm450 = vcmask 31744
      %v452 = vsel %vm450, %v448, 0
      %v455 = vsel %vm450, %v449, 0
      %vm457 = vcmask 1041408
      %v459 = vsel %vm457, %v443, 0
      %461 = vmatprep.subr.bf16.mxu0 0
      %462 = vmatpush1.bf16.msra.mxu0 %v459
      %463 = vmatprep.subr.bf16.mxu0 0
      %464 = vmatpush1.bf16.msra.mxu0 0
      %465 = vmatprep.subr.bf16.mxu0 0
      %466 = vmatpush1.bf16.msra.mxu0 0
      %467 = vmatprep.subr.bf16.mxu0 0
      %468 = vmatpush1.bf16.msra.mxu0 0
      %469 = vmatprep.subr.bf16.mxu0 0
      %470 = vmatpush1.bf16.msra.mxu0 0
      %471 = vmatprep.subr.bf16.mxu0 0
      %472 = vmatpush1.bf16.msra.mxu0 0
      %473 = vmatprep.subr.bf16.mxu0 0
      %474 = vmatpush1.bf16.msra.mxu0 0
      %475 = vmatprep.subr.bf16.mxu0 0
      %476 = vmatpush1.bf16.msra.mxu0 0
      %477 = vmatprep.subr.bf16.mxu0 0
      %478 = vmatpush1.bf16.msra.mxu0 0
      %479 = vmatprep.subr.bf16.mxu0 0
      %480 = vmatpush1.bf16.msra.mxu0 0
      %481 = vmatprep.subr.bf16.mxu0 0
      %482 = vmatpush1.bf16.msra.mxu0 0
      %483 = vmatprep.subr.bf16.mxu0 0
      %484 = vmatpush1.bf16.msra.mxu0 0
      %485 = vmatprep.subr.bf16.mxu0 0
      %486 = vmatpush1.bf16.msra.mxu0 0
      %487 = vmatprep.subr.bf16.mxu0 0
      %488 = vmatpush1.bf16.msra.mxu0 0
      %489 = vmatprep.subr.bf16.mxu0 0
      %490 = vmatpush1.bf16.msra.mxu0 0
      %491 = vmatprep.subr.bf16.mxu0 0
      %492 = vmatpush1.bf16.msra.mxu0 0
      %493 = vmatprep.mubr.bf16.mxu0 0
      %494 = vmatmul.mubr.bf16.gmra.mrb[0].mxu0 %v452
      %v495 = vpop.f32.mrb[0].mxu0
      %v496 = vadd.f32 0.0, %v495
      %v497 = vpop.f32.mrb[0].mxu0
      %v498 = vpop.f32.mrb[0].mxu0
      %v499 = vadd.f32 0.0, %v498
      %v500 = vpop.f32.mrb[0].mxu0
      %501 = vmatprep.mubr.bf16.mxu0 0
      %502 = vmatmul.mubr.bf16.gmra.mrb[0].mxu0 %v455
      %v503 = vpop.f32.mrb[0].mxu0
      %v504 = vadd.f32 0.0, %v503
      %v505 = vpop.f32.mrb[0].mxu0
      %v506 = vpop.f32.mrb[0].mxu0
      %v507 = vadd.f32 0.0, %v506
      %v508 = vpop.f32.mrb[0].mxu0
      %509 = vdwg.mxu0
      %v514 = vunpack.c.l.b16 %v374
      %v515 = vunpack.c.l.b16 %v375
      %v516 = vunpack.c.l.b16 %v376
      %v517 = vunpack.c.l.b16 %v377
      %v518 = vpack.c.b16 %v515, %v514
      %v519 = vpack.c.b16 %v517, %v516
      %v521 = vsel %vm450, %v518, 0
      %v524 = vsel %vm450, %v519, 0
      %v527 = vsel %vm457, %v378, 0
      %529 = vmatprep.subr.bf16.mxu0 0
      %530 = vmatpush1.bf16.msra.mxu0 %v527
      %531 = vmatprep.subr.bf16.mxu0 0
      %532 = vmatpush1.bf16.msra.mxu0 0
      %533 = vmatprep.subr.bf16.mxu0 0
      %534 = vmatpush1.bf16.msra.mxu0 0
      %535 = vmatprep.subr.bf16.mxu0 0
      %536 = vmatpush1.bf16.msra.mxu0 0
      %537 = vmatprep.subr.bf16.mxu0 0
      %538 = vmatpush1.bf16.msra.mxu0 0
      %539 = vmatprep.subr.bf16.mxu0 0
      %540 = vmatpush1.bf16.msra.mxu0 0
      %541 = vmatprep.subr.bf16.mxu0 0
      %542 = vmatpush1.bf16.msra.mxu0 0
      %543 = vmatprep.subr.bf16.mxu0 0
      %544 = vmatpush1.bf16.msra.mxu0 0
      %545 = vmatprep.subr.bf16.mxu0 0
      %546 = vmatpush1.bf16.msra.mxu0 0
      %547 = vmatprep.subr.bf16.mxu0 0
      %548 = vmatpush1.bf16.msra.mxu0 0
      %549 = vmatprep.subr.bf16.mxu0 0
      %550 = vmatpush1.bf16.msra.mxu0 0
      %551 = vmatprep.subr.bf16.mxu0 0
      %552 = vmatpush1.bf16.msra.mxu0 0
      %553 = vmatprep.subr.bf16.mxu0 0
      %554 = vmatpush1.bf16.msra.mxu0 0
      %555 = vmatprep.subr.bf16.mxu0 0
      %556 = vmatpush1.bf16.msra.mxu0 0
      %557 = vmatprep.subr.bf16.mxu0 0
      %558 = vmatpush1.bf16.msra.mxu0 0
      %559 = vmatprep.subr.bf16.mxu0 0
      %560 = vmatpush1.bf16.msra.mxu0 0
      %561 = vmatprep.mubr.bf16.mxu0 0
      %562 = vmatmul.mubr.bf16.gmra.mrb[0].mxu0 %v521
      %v563 = vpop.f32.mrb[0].mxu0
      %v564 = vadd.f32 %v496, %v563
      %v565 = vpop.f32.mrb[0].mxu0
      %v566 = vpop.f32.mrb[0].mxu0
      %v567 = vadd.f32 %v499, %v566
      %v568 = vpop.f32.mrb[0].mxu0
      %569 = vmatprep.mubr.bf16.mxu0 0
      %570 = vmatmul.mubr.bf16.gmra.mrb[0].mxu0 %v524
      %v571 = vpop.f32.mrb[0].mxu0
      %v572 = vadd.f32 %v504, %v571
      %v573 = vpop.f32.mrb[0].mxu0
      %v574 = vpop.f32.mrb[0].mxu0
      %v575 = vadd.f32 %v507, %v574
      %v576 = vpop.f32.mrb[0].mxu0
      %577 = vdwg.mxu0
      %v578 = vld [vmem:[#allocation2] sm:$0xe]
      %v579 = vld [vmem:[#allocation2 + $0x8] sm:$0xe]
      %v580 = vld [vmem:[#allocation2 + $0x10] sm:$0xe]
      %v581 = vld [vmem:[#allocation2 + $0x18] sm:$0xe]
      %vm590 = vcmask 1042432
      %vm591 = vcmask 1046532
      %vm592 = vmor %vm590, %vm591
      %v593 = vrot.slane %v578, 5
      %v594 = vrot.slane %v593, 4
      %v595 = vrot.slane %v379, 5
      %v596 = vsel %vm592, %v594, %v595
      %v597 = vrot.slane %v579, 5
      %v598 = vrot.slane %v597, 4
      %v599 = vrot.slane %v380, 5
      %v600 = vsel %vm592, %v598, %v599
      %v601 = vrot.slane %v580, 5
      %v602 = vrot.slane %v601, 4
      %v603 = vrot.slane %v381, 5
      %v604 = vsel %vm592, %v602, %v603
      %v605 = vrot.slane %v581, 5
      %v606 = vrot.slane %v605, 4
      %v607 = vrot.slane %v382, 5
      %v608 = vsel %vm592, %v606, %v607
      %s609 = scalar_lea.vmem %s2, 4
      %v610 = vld [vmem:[%s609] sm:$0x3]
      %v611 = vunpack.c.l.b16 %v596
      %v612 = vunpack.c.l.b16 %v600
      %v613 = vunpack.c.l.b16 %v604
      %v614 = vunpack.c.l.b16 %v608
      %v615 = vpack.c.b16 %v612, %v611
      %v616 = vpack.c.b16 %v614, %v613
      %v618 = vsel %vm450, %v615, 0
      %v621 = vsel %vm450, %v616, 0
      %v624 = vsel %vm457, %v610, 0
      %626 = vmatprep.subr.bf16.mxu0 0
      %627 = vmatpush1.bf16.msra.mxu0 %v624
      %628 = vmatprep.subr.bf16.mxu0 0
      %629 = vmatpush1.bf16.msra.mxu0 0
      %630 = vmatprep.subr.bf16.mxu0 0
      %631 = vmatpush1.bf16.msra.mxu0 0
      %632 = vmatprep.subr.bf16.mxu0 0
      %633 = vmatpush1.bf16.msra.mxu0 0
      %634 = vmatprep.subr.bf16.mxu0 0
      %635 = vmatpush1.bf16.msra.mxu0 0
      %636 = vmatprep.subr.bf16.mxu0 0
      %637 = vmatpush1.bf16.msra.mxu0 0
      %638 = vmatprep.subr.bf16.mxu0 0
      %639 = vmatpush1.bf16.msra.mxu0 0
      %640 = vmatprep.subr.bf16.mxu0 0
      %641 = vmatpush1.bf16.msra.mxu0 0
      %642 = vmatprep.subr.bf16.mxu0 0
      %643 = vmatpush1.bf16.msra.mxu0 0
      %644 = vmatprep.subr.bf16.mxu0 0
      %645 = vmatpush1.bf16.msra.mxu0 0
      %646 = vmatprep.subr.bf16.mxu0 0
      %647 = vmatpush1.bf16.msra.mxu0 0
      %648 = vmatprep.subr.bf16.mxu0 0
      %649 = vmatpush1.bf16.msra.mxu0 0
      %650 = vmatprep.subr.bf16.mxu0 0
      %651 = vmatpush1.bf16.msra.mxu0 0
      %652 = vmatprep.subr.bf16.mxu0 0
      %653 = vmatpush1.bf16.msra.mxu0 0
      %654 = vmatprep.subr.bf16.mxu0 0
      %655 = vmatpush1.bf16.msra.mxu0 0
      %656 = vmatprep.subr.bf16.mxu0 0
      %657 = vmatpush1.bf16.msra.mxu0 0
      %658 = vmatprep.mubr.bf16.mxu0 0
      %659 = vmatmul.mubr.bf16.gmra.mrb[0].mxu0 %v618
      %v660 = vpop.f32.mrb[0].mxu0
      %v661 = vadd.f32 0.0, %v660
      %v662 = vpop.f32.mrb[0].mxu0
      %v663 = vpop.f32.mrb[0].mxu0
      %v664 = vadd.f32 0.0, %v663
      %v665 = vpop.f32.mrb[0].mxu0
      %666 = vmatprep.mubr.bf16.mxu0 0
      %667 = vmatmul.mubr.bf16.gmra.mrb[0].mxu0 %v621
      %v668 = vpop.f32.mrb[0].mxu0
      %v669 = vadd.f32 0.0, %v668
      %v670 = vpop.f32.mrb[0].mxu0
      %v671 = vpop.f32.mrb[0].mxu0
      %v672 = vadd.f32 0.0, %v671
      %v673 = vpop.f32.mrb[0].mxu0
      %674 = vdwg.mxu0
      %v675 = vadd.f32 %v564, %v661
      %v676 = vadd.f32 %v567, %v664
      %v677 = vadd.f32 %v572, %v669
      %v678 = vadd.f32 %v575, %v672
      %s679 = scalar_lea.vmem [#allocation2], 8
      %v680 = vld [vmem:[%s679] sm:$0xf]
      %v681 = vld [vmem:[%s679 + $0x8] sm:$0xf]
      %v682 = vld [vmem:[%s679 + $0x10] sm:$0xf]
      %v683 = vld [vmem:[%s679 + $0x18] sm:$0xf]
      %s684 = scalar_lea.vmem %s2, 6
      %v685 = vld [vmem:[%s684] sm:$0x3]
      %v690 = vunpack.c.l.b16 %v680
      %v691 = vunpack.c.l.b16 %v681
      %v692 = vunpack.c.l.b16 %v682
      %v693 = vunpack.c.l.b16 %v683
      %v694 = vpack.c.b16 %v691, %v690
      %v695 = vpack.c.b16 %v693, %v692
      %v697 = vsel %vm450, %v694, 0
      %v700 = vsel %vm450, %v695, 0
      %v703 = vsel %vm457, %v685, 0
      %705 = vmatprep.subr.bf16.mxu0 0
      %706 = vmatpush1.bf16.msra.mxu0 %v703
      %707 = vmatprep.subr.bf16.mxu0 0
      %708 = vmatpush1.bf16.msra.mxu0 0
      %709 = vmatprep.subr.bf16.mxu0 0
      %710 = vmatpush1.bf16.msra.mxu0 0
      %711 = vmatprep.subr.bf16.mxu0 0
      %712 = vmatpush1.bf16.msra.mxu0 0
      %713 = vmatprep.subr.bf16.mxu0 0
      %714 = vmatpush1.bf16.msra.mxu0 0
      %715 = vmatprep.subr.bf16.mxu0 0
      %716 = vmatpush1.bf16.msra.mxu0 0
      %717 = vmatprep.subr.bf16.mxu0 0
      %718 = vmatpush1.bf16.msra.mxu0 0
      %719 = vmatprep.subr.bf16.mxu0 0
      %720 = vmatpush1.bf16.msra.mxu0 0
      %721 = vmatprep.subr.bf16.mxu0 0
      %722 = vmatpush1.bf16.msra.mxu0 0
      %723 = vmatprep.subr.bf16.mxu0 0
      %724 = vmatpush1.bf16.msra.mxu0 0
      %725 = vmatprep.subr.bf16.mxu0 0
      %726 = vmatpush1.bf16.msra.mxu0 0
      %727 = vmatprep.subr.bf16.mxu0 0
      %728 = vmatpush1.bf16.msra.mxu0 0
      %729 = vmatprep.subr.bf16.mxu0 0
      %730 = vmatpush1.bf16.msra.mxu0 0
      %731 = vmatprep.subr.bf16.mxu0 0
      %732 = vmatpush1.bf16.msra.mxu0 0
      %733 = vmatprep.subr.bf16.mxu0 0
      %734 = vmatpush1.bf16.msra.mxu0 0
      %735 = vmatprep.subr.bf16.mxu0 0
      %736 = vmatpush1.bf16.msra.mxu0 0
      %737 = vmatprep.mubr.bf16.mxu0 0
      %738 = vmatmul.mubr.bf16.gmra.mrb[0].mxu0 %v697
      %v739 = vpop.f32.mrb[0].mxu0
      %v740 = vadd.f32 0.0, %v739
      %v741 = vpop.f32.mrb[0].mxu0
      %v742 = vpop.f32.mrb[0].mxu0
      %v743 = vadd.f32 0.0, %v742
      %v744 = vpop.f32.mrb[0].mxu0
      %745 = vmatprep.mubr.bf16.mxu0 0
      %746 = vmatmul.mubr.bf16.gmra.mrb[0].mxu0 %v700
      %v747 = vpop.f32.mrb[0].mxu0
      %v748 = vadd.f32 0.0, %v747
      %v749 = vpop.f32.mrb[0].mxu0
      %v750 = vpop.f32.mrb[0].mxu0
      %v751 = vadd.f32 0.0, %v750
      %v752 = vpop.f32.mrb[0].mxu0
      %753 = vdwg.mxu0
      %v754 = vadd.f32 %v675, %v740
      %v755 = vadd.f32 %v676, %v743
      %v756 = vadd.f32 %v677, %v748
      %v757 = vadd.f32 %v678, %v751
      %v758 = vld [vmem:[%s679] sm:$0xf]
      %v759 = vld [vmem:[%s679 + $0x4] sm:$0x1]
      %v760 = vld [vmem:[%s679 + $0x8] sm:$0xf]
      %v761 = vld [vmem:[%s679 + $0xc] sm:$0x1]
      %v762 = vld [vmem:[%s679 + $0x10] sm:$0xf]
      %v763 = vld [vmem:[%s679 + $0x14] sm:$0x1]
      %v764 = vld [vmem:[%s679 + $0x18] sm:$0xf]
      %v765 = vld [vmem:[%s679 + $0x1c] sm:$0x1]
      %v767 = vshrl.u32 %v758, 16
      %v769 = vrot.slane %v767, 4
      %v770 = vshll.u32 %v758, 16
      %v772 = vrot.slane %v770, 5
      %v773 = vor.u32 %v769, %v772
      %v774 = vrot.slane %v773, 4
      %v776 = vshll.u32 %v759, 16
      %v778 = vrot.slane %v776, 5
      %v779 = vsel %vm385, %v774, %v778
      %v781 = vshrl.u32 %v760, 16
      %v783 = vrot.slane %v781, 4
      %v784 = vshll.u32 %v760, 16
      %v786 = vrot.slane %v784, 5
      %v787 = vor.u32 %v783, %v786
      %v788 = vrot.slane %v787, 4
      %v790 = vshll.u32 %v761, 16
      %v792 = vrot.slane %v790, 5
      %v793 = vsel %vm385, %v788, %v792
      %v795 = vshrl.u32 %v762, 16
      %v797 = vrot.slane %v795, 4
      %v798 = vshll.u32 %v762, 16
      %v800 = vrot.slane %v798, 5
      %v801 = vor.u32 %v797, %v800
      %v802 = vrot.slane %v801, 4
      %v804 = vshll.u32 %v763, 16
      %v806 = vrot.slane %v804, 5
      %v807 = vsel %vm385, %v802, %v806
      %v809 = vshrl.u32 %v764, 16
      %v811 = vrot.slane %v809, 4
      %v812 = vshll.u32 %v764, 16
      %v814 = vrot.slane %v812, 5
      %v815 = vor.u32 %v811, %v814
      %v816 = vrot.slane %v815, 4
      %v818 = vshll.u32 %v765, 16
      %v820 = vrot.slane %v818, 5
      %v821 = vsel %vm385, %v816, %v820
      %s822 = scalar_lea.vmem %s2, 8
      %v823 = vld [vmem:[%s822] sm:$0x3]
      %v824 = vunpack.c.l.b16 %v779
      %v825 = vunpack.c.l.b16 %v793
      %v826 = vunpack.c.l.b16 %v807
      %v827 = vunpack.c.l.b16 %v821
      %v828 = vpack.c.b16 %v825, %v824
      %v829 = vpack.c.b16 %v827, %v826
      %v831 = vsel %vm450, %v828, 0
      %v834 = vsel %vm450, %v829, 0
      %v837 = vsel %vm457, %v823, 0
      %839 = vmatprep.subr.bf16.mxu0 0
      %840 = vmatpush1.bf16.msra.mxu0 %v837
      %841 = vmatprep.subr.bf16.mxu0 0
      %842 = vmatpush1.bf16.msra.mxu0 0
      %843 = vmatprep.subr.bf16.mxu0 0
      %844 = vmatpush1.bf16.msra.mxu0 0
      %845 = vmatprep.subr.bf16.mxu0 0
      %846 = vmatpush1.bf16.msra.mxu0 0
      %847 = vmatprep.subr.bf16.mxu0 0
      %848 = vmatpush1.bf16.msra.mxu0 0
      %849 = vmatprep.subr.bf16.mxu0 0
      %850 = vmatpush1.bf16.msra.mxu0 0
      %851 = vmatprep.subr.bf16.mxu0 0
      %852 = vmatpush1.bf16.msra.mxu0 0
      %853 = vmatprep.subr.bf16.mxu0 0
      %854 = vmatpush1.bf16.msra.mxu0 0
      %855 = vmatprep.subr.bf16.mxu0 0
      %856 = vmatpush1.bf16.msra.mxu0 0
      %857 = vmatprep.subr.bf16.mxu0 0
      %858 = vmatpush1.bf16.msra.mxu0 0
      %859 = vmatprep.subr.bf16.mxu0 0
      %860 = vmatpush1.bf16.msra.mxu0 0
      %861 = vmatprep.subr.bf16.mxu0 0
      %862 = vmatpush1.bf16.msra.mxu0 0
      %863 = vmatprep.subr.bf16.mxu0 0
      %864 = vmatpush1.bf16.msra.mxu0 0
      %865 = vmatprep.subr.bf16.mxu0 0
      %866 = vmatpush1.bf16.msra.mxu0 0
      %867 = vmatprep.subr.bf16.mxu0 0
      %868 = vmatpush1.bf16.msra.mxu0 0
      %869 = vmatprep.subr.bf16.mxu0 0
      %870 = vmatpush1.bf16.msra.mxu0 0
      %871 = vmatprep.mubr.bf16.mxu0 0
      %872 = vmatmul.mubr.bf16.gmra.mrb[0].mxu0 %v831
      %v873 = vpop.f32.mrb[0].mxu0
      %v874 = vadd.f32 0.0, %v873
      %v875 = vpop.f32.mrb[0].mxu0
      %v876 = vpop.f32.mrb[0].mxu0
      %v877 = vadd.f32 0.0, %v876
      %v878 = vpop.f32.mrb[0].mxu0
      %879 = vmatprep.mubr.bf16.mxu0 0
      %880 = vmatmul.mubr.bf16.gmra.mrb[0].mxu0 %v834
      %v881 = vpop.f32.mrb[0].mxu0
      %v882 = vadd.f32 0.0, %v881
      %v883 = vpop.f32.mrb[0].mxu0
      %v884 = vpop.f32.mrb[0].mxu0
      %v885 = vadd.f32 0.0, %v884
      %v886 = vpop.f32.mrb[0].mxu0
      %887 = vdwg.mxu0
      %v888 = vadd.f32 %v754, %v874
      %v889 = vadd.f32 %v755, %v877
      %v890 = vadd.f32 %v756, %v882
      %v891 = vadd.f32 %v757, %v885
      %v892 = vld [vmem:[%s679] sm:$0xe]
      %v893 = vld [vmem:[%s679 + $0x8] sm:$0xe]
      %v894 = vld [vmem:[%s679 + $0x10] sm:$0xe]
      %v895 = vld [vmem:[%s679 + $0x18] sm:$0xe]
      %v904 = vrot.slane %v892, 5
      %v905 = vrot.slane %v904, 4
      %v906 = vrot.slane %v759, 5
      %v907 = vsel %vm592, %v905, %v906
      %v908 = vrot.slane %v893, 5
      %v909 = vrot.slane %v908, 4
      %v910 = vrot.slane %v761, 5
      %v911 = vsel %vm592, %v909, %v910
      %v912 = vrot.slane %v894, 5
      %v913 = vrot.slane %v912, 4
      %v914 = vrot.slane %v763, 5
      %v915 = vsel %vm592, %v913, %v914
      %v916 = vrot.slane %v895, 5
      %v917 = vrot.slane %v916, 4
      %v918 = vrot.slane %v765, 5
      %v919 = vsel %vm592, %v917, %v918
      %s920 = scalar_lea.vmem %s2, 10
      %v921 = vld [vmem:[%s920] sm:$0x3]
      %v922 = vunpack.c.l.b16 %v907
      %v923 = vunpack.c.l.b16 %v911
      %v924 = vunpack.c.l.b16 %v915
      %v925 = vunpack.c.l.b16 %v919
      %v926 = vpack.c.b16 %v923, %v922
      %v927 = vpack.c.b16 %v925, %v924
      %v929 = vsel %vm450, %v926, 0
      %v932 = vsel %vm450, %v927, 0
      %v935 = vsel %vm457, %v921, 0
      %937 = vmatprep.subr.bf16.mxu0 0
      %938 = vmatpush1.bf16.msra.mxu0 %v935
      %939 = vmatprep.subr.bf16.mxu0 0
      %940 = vmatpush1.bf16.msra.mxu0 0
      %941 = vmatprep.subr.bf16.mxu0 0
      %942 = vmatpush1.bf16.msra.mxu0 0
      %943 = vmatprep.subr.bf16.mxu0 0
      %944 = vmatpush1.bf16.msra.mxu0 0
      %945 = vmatprep.subr.bf16.mxu0 0
      %946 = vmatpush1.bf16.msra.mxu0 0
      %947 = vmatprep.subr.bf16.mxu0 0
      %948 = vmatpush1.bf16.msra.mxu0 0
      %949 = vmatprep.subr.bf16.mxu0 0
      %950 = vmatpush1.bf16.msra.mxu0 0
      %951 = vmatprep.subr.bf16.mxu0 0
      %952 = vmatpush1.bf16.msra.mxu0 0
      %953 = vmatprep.subr.bf16.mxu0 0
      %954 = vmatpush1.bf16.msra.mxu0 0
      %955 = vmatprep.subr.bf16.mxu0 0
      %956 = vmatpush1.bf16.msra.mxu0 0
      %957 = vmatprep.subr.bf16.mxu0 0
      %958 = vmatpush1.bf16.msra.mxu0 0
      %959 = vmatprep.subr.bf16.mxu0 0
      %960 = vmatpush1.bf16.msra.mxu0 0
      %961 = vmatprep.subr.bf16.mxu0 0
      %962 = vmatpush1.bf16.msra.mxu0 0
      %963 = vmatprep.subr.bf16.mxu0 0
      %964 = vmatpush1.bf16.msra.mxu0 0
      %965 = vmatprep.subr.bf16.mxu0 0
      %966 = vmatpush1.bf16.msra.mxu0 0
      %967 = vmatprep.subr.bf16.mxu0 0
      %968 = vmatpush1.bf16.msra.mxu0 0
      %969 = vmatprep.mubr.bf16.mxu0 0
      %970 = vmatmul.mubr.bf16.gmra.mrb[0].mxu0 %v929
      %v971 = vpop.f32.mrb[0].mxu0
      %v972 = vadd.f32 0.0, %v971
      %v973 = vpop.f32.mrb[0].mxu0
      %v974 = vpop.f32.mrb[0].mxu0
      %v975 = vadd.f32 0.0, %v974
      %v976 = vpop.f32.mrb[0].mxu0
      %977 = vmatprep.mubr.bf16.mxu0 0
      %978 = vmatmul.mubr.bf16.gmra.mrb[0].mxu0 %v932
      %v979 = vpop.f32.mrb[0].mxu0
      %v980 = vadd.f32 0.0, %v979
      %v981 = vpop.f32.mrb[0].mxu0
      %v982 = vpop.f32.mrb[0].mxu0
      %v983 = vadd.f32 0.0, %v982
      %v984 = vpop.f32.mrb[0].mxu0
      %985 = vdwg.mxu0
      %v986 = vadd.f32 %v888, %v972
      %v987 = vadd.f32 %v889, %v975
      %v988 = vadd.f32 %v890, %v980
      %v989 = vadd.f32 %v891, %v983
      %s990 = scalar_lea.vmem [#allocation2], 16
      %v991 = vld [vmem:[%s990] sm:$0xf]
      %v992 = vld [vmem:[%s990 + $0x8] sm:$0xf]
      %v993 = vld [vmem:[%s990 + $0x10] sm:$0xf]
      %v994 = vld [vmem:[%s990 + $0x18] sm:$0xf]
      %s995 = scalar_lea.vmem %s2, 12
      %v996 = vld [vmem:[%s995] sm:$0x3]
      %v1001 = vunpack.c.l.b16 %v991
      %v1002 = vunpack.c.l.b16 %v992
      %v1003 = vunpack.c.l.b16 %v993
      %v1004 = vunpack.c.l.b16 %v994
      %v1005 = vpack.c.b16 %v1002, %v1001
      %v1006 = vpack.c.b16 %v1004, %v1003
      %v1008 = vsel %vm450, %v1005, 0
      %v1011 = vsel %vm450, %v1006, 0
      %v1014 = vsel %vm457, %v996, 0
      %1016 = vmatprep.subr.bf16.mxu0 0
      %1017 = vmatpush1.bf16.msra.mxu0 %v1014
      %1018 = vmatprep.subr.bf16.mxu0 0
      %1019 = vmatpush1.bf16.msra.mxu0 0
      %1020 = vmatprep.subr.bf16.mxu0 0
      %1021 = vmatpush1.bf16.msra.mxu0 0
      %1022 = vmatprep.subr.bf16.mxu0 0
      %1023 = vmatpush1.bf16.msra.mxu0 0
      %1024 = vmatprep.subr.bf16.mxu0 0
      %1025 = vmatpush1.bf16.msra.mxu0 0
      %1026 = vmatprep.subr.bf16.mxu0 0
      %1027 = vmatpush1.bf16.msra.mxu0 0
      %1028 = vmatprep.subr.bf16.mxu0 0
      %1029 = vmatpush1.bf16.msra.mxu0 0
      %1030 = vmatprep.subr.bf16.mxu0 0
      %1031 = vmatpush1.bf16.msra.mxu0 0
      %1032 = vmatprep.subr.bf16.mxu0 0
      %1033 = vmatpush1.bf16.msra.mxu0 0
      %1034 = vmatprep.subr.bf16.mxu0 0
      %1035 = vmatpush1.bf16.msra.mxu0 0
      %1036 = vmatprep.subr.bf16.mxu0 0
      %1037 = vmatpush1.bf16.msra.mxu0 0
      %1038 = vmatprep.subr.bf16.mxu0 0
      %1039 = vmatpush1.bf16.msra.mxu0 0
      %1040 = vmatprep.subr.bf16.mxu0 0
      %1041 = vmatpush1.bf16.msra.mxu0 0
      %1042 = vmatprep.subr.bf16.mxu0 0
      %1043 = vmatpush1.bf16.msra.mxu0 0
      %1044 = vmatprep.subr.bf16.mxu0 0
      %1045 = vmatpush1.bf16.msra.mxu0 0
      %1046 = vmatprep.subr.bf16.mxu0 0
      %1047 = vmatpush1.bf16.msra.mxu0 0
      %1048 = vmatprep.mubr.bf16.mxu0 0
      %1049 = vmatmul.mubr.bf16.gmra.mrb[0].mxu0 %v1008
      %v1050 = vpop.f32.mrb[0].mxu0
      %v1051 = vadd.f32 0.0, %v1050
      %v1052 = vpop.f32.mrb[0].mxu0
      %v1053 = vpop.f32.mrb[0].mxu0
      %v1054 = vadd.f32 0.0, %v1053
      %v1055 = vpop.f32.mrb[0].mxu0
      %1056 = vmatprep.mubr.bf16.mxu0 0
      %1057 = vmatmul.mubr.bf16.gmra.mrb[0].mxu0 %v1011
      %v1058 = vpop.f32.mrb[0].mxu0
      %v1059 = vadd.f32 0.0, %v1058
      %v1060 = vpop.f32.mrb[0].mxu0
      %v1061 = vpop.f32.mrb[0].mxu0
      %v1062 = vadd.f32 0.0, %v1061
      %v1063 = vpop.f32.mrb[0].mxu0
      %1064 = vdwg.mxu0
      %v1065 = vadd.f32 %v986, %v1051
      %v1066 = vadd.f32 %v987, %v1054
      %v1067 = vadd.f32 %v988, %v1059
      %v1068 = vadd.f32 %v989, %v1062
      %v1069 = vld [vmem:[%s990] sm:$0xf]
      %v1070 = vld [vmem:[%s990 + $0x4] sm:$0x1]
      %v1071 = vld [vmem:[%s990 + $0x8] sm:$0xf]
      %v1072 = vld [vmem:[%s990 + $0xc] sm:$0x1]
      %v1073 = vld [vmem:[%s990 + $0x10] sm:$0xf]
      %v1074 = vld [vmem:[%s990 + $0x14] sm:$0x1]
      %v1075 = vld [vmem:[%s990 + $0x18] sm:$0xf]
      %v1076 = vld [vmem:[%s990 + $0x1c] sm:$0x1]
      %v1078 = vshrl.u32 %v1069, 16
      %v1080 = vrot.slane %v1078, 4
      %v1081 = vshll.u32 %v1069, 16
      %v1083 = vrot.slane %v1081, 5
      %v1084 = vor.u32 %v1080, %v1083
      %v1085 = vrot.slane %v1084, 4
      %v1087 = vshll.u32 %v1070, 16
      %v1089 = vrot.slane %v1087, 5
      %v1090 = vsel %vm385, %v1085, %v1089
      %v1092 = vshrl.u32 %v1071, 16
      %v1094 = vrot.slane %v1092, 4
      %v1095 = vshll.u32 %v1071, 16
      %v1097 = vrot.slane %v1095, 5
      %v1098 = vor.u32 %v1094, %v1097
      %v1099 = vrot.slane %v1098, 4
      %v1101 = vshll.u32 %v1072, 16
      %v1103 = vrot.slane %v1101, 5
      %v1104 = vsel %vm385, %v1099, %v1103
      %v1106 = vshrl.u32 %v1073, 16
      %v1108 = vrot.slane %v1106, 4
      %v1109 = vshll.u32 %v1073, 16
      %v1111 = vrot.slane %v1109, 5
      %v1112 = vor.u32 %v1108, %v1111
      %v1113 = vrot.slane %v1112, 4
      %v1115 = vshll.u32 %v1074, 16
      %v1117 = vrot.slane %v1115, 5
      %v1118 = vsel %vm385, %v1113, %v1117
      %v1120 = vshrl.u32 %v1075, 16
      %v1122 = vrot.slane %v1120, 4
      %v1123 = vshll.u32 %v1075, 16
      %v1125 = vrot.slane %v1123, 5
      %v1126 = vor.u32 %v1122, %v1125
      %v1127 = vrot.slane %v1126, 4
      %v1129 = vshll.u32 %v1076, 16
      %v1131 = vrot.slane %v1129, 5
      %v1132 = vsel %vm385, %v1127, %v1131
      %s1133 = scalar_lea.vmem %s2, 14
      %v1134 = vld [vmem:[%s1133] sm:$0x3]
      %v1135 = vunpack.c.l.b16 %v1090
      %v1136 = vunpack.c.l.b16 %v1104
      %v1137 = vunpack.c.l.b16 %v1118
      %v1138 = vunpack.c.l.b16 %v1132
      %v1139 = vpack.c.b16 %v1136, %v1135
      %v1140 = vpack.c.b16 %v1138, %v1137
      %v1142 = vsel %vm450, %v1139, 0
      %v1145 = vsel %vm450, %v1140, 0
      %v1148 = vsel %vm457, %v1134, 0
      %1150 = vmatprep.subr.bf16.mxu0 0
      %1151 = vmatpush1.bf16.msra.mxu0 %v1148
      %1152 = vmatprep.subr.bf16.mxu0 0
      %1153 = vmatpush1.bf16.msra.mxu0 0
      %1154 = vmatprep.subr.bf16.mxu0 0
      %1155 = vmatpush1.bf16.msra.mxu0 0
      %1156 = vmatprep.subr.bf16.mxu0 0
      %1157 = vmatpush1.bf16.msra.mxu0 0
      %1158 = vmatprep.subr.bf16.mxu0 0
      %1159 = vmatpush1.bf16.msra.mxu0 0
      %1160 = vmatprep.subr.bf16.mxu0 0
      %1161 = vmatpush1.bf16.msra.mxu0 0
      %1162 = vmatprep.subr.bf16.mxu0 0
      %1163 = vmatpush1.bf16.msra.mxu0 0
      %1164 = vmatprep.subr.bf16.mxu0 0
      %1165 = vmatpush1.bf16.msra.mxu0 0
      %1166 = vmatprep.subr.bf16.mxu0 0
      %1167 = vmatpush1.bf16.msra.mxu0 0
      %1168 = vmatprep.subr.bf16.mxu0 0
      %1169 = vmatpush1.bf16.msra.mxu0 0
      %1170 = vmatprep.subr.bf16.mxu0 0
      %1171 = vmatpush1.bf16.msra.mxu0 0
      %1172 = vmatprep.subr.bf16.mxu0 0
      %1173 = vmatpush1.bf16.msra.mxu0 0
      %1174 = vmatprep.subr.bf16.mxu0 0
      %1175 = vmatpush1.bf16.msra.mxu0 0
      %1176 = vmatprep.subr.bf16.mxu0 0
      %1177 = vmatpush1.bf16.msra.mxu0 0
      %1178 = vmatprep.subr.bf16.mxu0 0
      %1179 = vmatpush1.bf16.msra.mxu0 0
      %1180 = vmatprep.subr.bf16.mxu0 0
      %1181 = vmatpush1.bf16.msra.mxu0 0
      %1182 = vmatprep.mubr.bf16.mxu0 0
      %1183 = vmatmul.mubr.bf16.gmra.mrb[0].mxu0 %v1142
      %v1184 = vpop.f32.mrb[0].mxu0
      %v1185 = vadd.f32 0.0, %v1184
      %v1186 = vpop.f32.mrb[0].mxu0
      %v1187 = vpop.f32.mrb[0].mxu0
      %v1188 = vadd.f32 0.0, %v1187
      %v1189 = vpop.f32.mrb[0].mxu0
      %1190 = vmatprep.mubr.bf16.mxu0 0
      %1191 = vmatmul.mubr.bf16.gmra.mrb[0].mxu0 %v1145
      %v1192 = vpop.f32.mrb[0].mxu0
      %v1193 = vadd.f32 0.0, %v1192
      %v1194 = vpop.f32.mrb[0].mxu0
      %v1195 = vpop.f32.mrb[0].mxu0
      %v1196 = vadd.f32 0.0, %v1195
      %v1197 = vpop.f32.mrb[0].mxu0
      %1198 = vdwg.mxu0
      %v1199 = vadd.f32 %v1065, %v1185
      %v1200 = vadd.f32 %v1066, %v1188
      %v1201 = vadd.f32 %v1067, %v1193
      %v1202 = vadd.f32 %v1068, %v1196
      %v1203 = vld [vmem:[%s990] sm:$0xe]
      %v1204 = vld [vmem:[%s990 + $0x8] sm:$0xe]
      %v1205 = vld [vmem:[%s990 + $0x10] sm:$0xe]
      %v1206 = vld [vmem:[%s990 + $0x18] sm:$0xe]
      %v1215 = vrot.slane %v1203, 5
      %v1216 = vrot.slane %v1215, 4
      %v1217 = vrot.slane %v1070, 5
      %v1218 = vsel %vm592, %v1216, %v1217
      %v1219 = vrot.slane %v1204, 5
      %v1220 = vrot.slane %v1219, 4
      %v1221 = vrot.slane %v1072, 5
      %v1222 = vsel %vm592, %v1220, %v1221
      %v1223 = vrot.slane %v1205, 5
      %v1224 = vrot.slane %v1223, 4
      %v1225 = vrot.slane %v1074, 5
      %v1226 = vsel %vm592, %v1224, %v1225
      %v1227 = vrot.slane %v1206, 5
      %v1228 = vrot.slane %v1227, 4
      %v1229 = vrot.slane %v1076, 5
      %v1230 = vsel %vm592, %v1228, %v1229
      %s1231 = scalar_lea.vmem %s2, 16
      %v1232 = vld [vmem:[%s1231] sm:$0x3]
      %v1233 = vunpack.c.l.b16 %v1218
      %v1234 = vunpack.c.l.b16 %v1222
      %v1235 = vunpack.c.l.b16 %v1226
      %v1236 = vunpack.c.l.b16 %v1230
      %v1237 = vpack.c.b16 %v1234, %v1233
      %v1238 = vpack.c.b16 %v1236, %v1235
      %v1240 = vsel %vm450, %v1237, 0
      %v1243 = vsel %vm450, %v1238, 0
      %v1246 = vsel %vm457, %v1232, 0
      %1248 = vmatprep.subr.bf16.mxu0 0
      %1249 = vmatpush1.bf16.msra.mxu0 %v1246
      %1250 = vmatprep.subr.bf16.mxu0 0
      %1251 = vmatpush1.bf16.msra.mxu0 0
      %1252 = vmatprep.subr.bf16.mxu0 0
      %1253 = vmatpush1.bf16.msra.mxu0 0
      %1254 = vmatprep.subr.bf16.mxu0 0
      %1255 = vmatpush1.bf16.msra.mxu0 0
      %1256 = vmatprep.subr.bf16.mxu0 0
      %1257 = vmatpush1.bf16.msra.mxu0 0
      %1258 = vmatprep.subr.bf16.mxu0 0
      %1259 = vmatpush1.bf16.msra.mxu0 0
      %1260 = vmatprep.subr.bf16.mxu0 0
      %1261 = vmatpush1.bf16.msra.mxu0 0
      %1262 = vmatprep.subr.bf16.mxu0 0
      %1263 = vmatpush1.bf16.msra.mxu0 0
      %1264 = vmatprep.subr.bf16.mxu0 0
      %1265 = vmatpush1.bf16.msra.mxu0 0
      %1266 = vmatprep.subr.bf16.mxu0 0
      %1267 = vmatpush1.bf16.msra.mxu0 0
      %1268 = vmatprep.subr.bf16.mxu0 0
      %1269 = vmatpush1.bf16.msra.mxu0 0
      %1270 = vmatprep.subr.bf16.mxu0 0
      %1271 = vmatpush1.bf16.msra.mxu0 0
      %1272 = vmatprep.subr.bf16.mxu0 0
      %1273 = vmatpush1.bf16.msra.mxu0 0
      %1274 = vmatprep.subr.bf16.mxu0 0
      %1275 = vmatpush1.bf16.msra.mxu0 0
      %1276 = vmatprep.subr.bf16.mxu0 0
      %1277 = vmatpush1.bf16.msra.mxu0 0
      %1278 = vmatprep.subr.bf16.mxu0 0
      %1279 = vmatpush1.bf16.msra.mxu0 0
      %1280 = vmatprep.mubr.bf16.mxu0 0
      %1281 = vmatmul.mubr.bf16.gmra.mrb[0].mxu0 %v1240
      %v1282 = vpop.f32.mrb[0].mxu0
      %v1283 = vadd.f32 0.0, %v1282
      %v1284 = vpop.f32.mrb[0].mxu0
      %v1285 = vpop.f32.mrb[0].mxu0
      %v1286 = vadd.f32 0.0, %v1285
      %v1287 = vpop.f32.mrb[0].mxu0
      %1288 = vmatprep.mubr.bf16.mxu0 0
      %1289 = vmatmul.mubr.bf16.gmra.mrb[0].mxu0 %v1243
      %v1290 = vpop.f32.mrb[0].mxu0
      %v1291 = vadd.f32 0.0, %v1290
      %v1292 = vpop.f32.mrb[0].mxu0
      %v1293 = vpop.f32.mrb[0].mxu0
      %v1294 = vadd.f32 0.0, %v1293
      %v1295 = vpop.f32.mrb[0].mxu0
      %1296 = vdwg.mxu0
      %v1297 = vadd.f32 %v1199, %v1283
      %v1298 = vadd.f32 %v1200, %v1286
      %v1299 = vadd.f32 %v1201, %v1291
      %v1300 = vadd.f32 %v1202, %v1294
      %v1301 = vld [vmem:[%s3] sm:$0x1]
      %v1303 = vlaneseq
      %v1304 = vshrl.u32 %v1303, 7
      %v1305 = vsub.s32 0, %v1304
      %v1306 = vrot.slane %v1301, %v1305
      %v1308 = vadd.f32 %v1297, %v1306
      %v1309 = vadd.f32 %v1298, %v1306
      %v1310 = vadd.f32 %v1299, %v1306
      %v1311 = vadd.f32 %v1300, %v1306
      %s1312 = sld [smem:[#allocation3]]
      %vm1313 = vcmp.ge.f32.partialorder %v1308, 0.0
      %vm1314 = vcmp.ge.f32.partialorder %v1309, 0.0
      %vm1315 = vcmp.ge.f32.partialorder %v1310, 0.0
      %vm1316 = vcmp.ge.f32.partialorder %v1311, 0.0
      %v1317 = vstv %s1312
      %v1318 = vmul.f32 %v1317, %v1308
      %v1319 = vmul.f32 %v1317, %v1309
      %v1320 = vmul.f32 %v1317, %v1310
      %v1321 = vmul.f32 %v1317, %v1311
      %v1322 = vsel %vm1313, %v1308, %v1318
      %v1323 = vsel %vm1314, %v1309, %v1319
      %v1324 = vsel %vm1315, %v1310, %v1320
      %v1325 = vsel %vm1316, %v1311, %v1321
      %v1326 = vpack.c.bf16 %v1322, %v1322
      %v1327 = vpack.c.bf16 %v1323, %v1323
      %v1328 = vpack.c.bf16 %v1324, %v1324
      %v1329 = vpack.c.bf16 %v1325, %v1325
      %vm1330 = vcmask 519168
      %1331 = vst.msk [vmem:[%s344] sm:$0xf] %vm1330, %v1326
      %1332 = vst.msk [vmem:[%s344 + $0x4] sm:$0xf] %vm1330, %v1327
      %1333 = vst.msk [vmem:[%s344 + $0x8] sm:$0xf] %vm1330, %v1328
      %1334 = vst.msk [vmem:[%s344 + $0xc] sm:$0xf] %vm1330, %v1329
      %s1335 = smul.u32 4, %s22
      %p1336 = scmp.lt.s32.totalorder %s21, 1
      %s1337 = scalar_select %p1336, %s21, 1
      %p1338 = scmp.lt.s32.totalorder %s1335, 7
      %s1339 = scalar_select %p1338, %s1335, 7
      %s1340 = smul.addr %s1337, 8
      %s1341 = sadd.s32 %s1339, %s1340
      %s1342 = smul.addr %s1341, 4
      %s1343 = scalar_lea.vmem %s5, %s1342
      // Predicated region
      $region41: #{d_upblock_forward.5} parent=39 // pred_check
        %p1344 = pneg %p172
      $region42: #{d_upblock_forward.5} parent=39 // pred_check_branch
        %1346 = sbr.rel (%p1344) target = $region44
      $region43: #{d_upblock_forward.5} parent=39 // pred_region
        %s1347 = smul.u32 4, %s22
      $region44: #{d_upblock_forward.5} parent=39 // pred_fallthru
        _
    $region40: #{d_upblock_forward.5} parent=5 // pred_fallthru
      _
    %p1348 = scmp.le.s32.totalorder 2, %s12
    // Predicated region
    $region45: #{d_upblock_forward.5} parent=5 // pred_check
      %p1349 = pneg %p1348
    $region46: #{d_upblock_forward.5} parent=5 // pred_check_branch
      %1351 = sbr.rel (%p1349) target = $region48
    $region47: #{d_upblock_forward.5} parent=5 // pred_region
      %s1352 = ssub.s32 %s12, 2
      // Predicated region
      $region49: #{d_upblock_forward.5} parent=47 // pred_check
        %p1353 = pneg %p178
      $region50: #{d_upblock_forward.5} parent=47 // pred_check_branch
        %1355 = sbr.rel (%p1353) target = $region52
      $region51: #{d_upblock_forward.5} parent=47 // pred_region
        %s1356 = smul.u32 4, %s24
        %p1357 = scmp.lt.s32.totalorder %s23, 1
        %s1358 = scalar_select %p1357, %s23, 1
        %p1359 = scmp.lt.s32.totalorder %s1356, 7
        %s1360 = scalar_select %p1359, %s1356, 7
        %s1361 = smul.addr %s1358, 8
        %s1362 = sadd.s32 %s1360, %s1361
        %s1363 = smul.addr %s1362, 4
        %s1364 = scalar_lea.vmem %s5, %s1363
      $region52: #{d_upblock_forward.5} parent=47 // pred_fallthru
        _
    $region48: #{d_upblock_forward.5} parent=5 // pred_fallthru
      _
  $region6: #{d_upblock_forward.5} parent=0 // loop_footer
    %s16 = sadd.s32 1, %s12
  $region7: #{d_upblock_forward.5} parent=0 // loop_footer_branch
    %11 = sbr.rel target = $region3
  $region8: #{d_upblock_forward.5} parent=0 // loop_exit
    _

// kernel: d_upblock_forward.6
$region0: #{d_upblock_forward.6}
  #allocation0 [shape = 'u32[]', space=smem, size = 0x4, offset = 0x4, fixed_abs, tag = 'smem constant byte address 0x4 - core index']
  #allocation1 [shape = 'u32[144,128]{1,0:T(1,128)}', space=vmem, size = 0x12000, scoped, tag = 'internal scratch']
  #allocation2 [shape = 'bf16[6,10,64]{2,1,0:T(8,128)(2,1)}', space=vmem, size = 0x6000, scoped, tag = 'scratch operand']
  #allocation3 [shape = 'f32[1]{0:T(128)S(6)}', space=smem, size = 0x200, scoped, tag = 'scoped memory for d_upblock_forward.6']
  %s0 = inlined_call_operand.vmem [shape: bf16[2,10,10,64], index: 0, kind: input, shape index: {}, may-alias: {0,1}]
  %s1 = inlined_call_operand.vmem [shape: bf16[2,10,10,64], index: 1, kind: input, shape index: {}, may-alias: {0,1}]
  %s2 = inlined_call_operand.vmem [shape: bf16[9,64,4], index: 2, kind: input, shape index: {}]
  %s3 = inlined_call_operand.vmem [shape: f32[1,4], index: 3, kind: input, shape index: {}]
  %s4 = inlined_call_operand.vmem [shape: bf16[2,8,8,4], index: 4, kind: input, shape index: {}]
  %s5 = inlined_call_operand.<no memory space> [shape: f32[1], index: 5, kind: input, shape index: {}]
  %s6 = inlined_call_operand.vmem [shape: bf16[2,8,8,4], index: 6, kind: output, shape index: {}]
  %s7 = sld [smem:[#allocation0]]
  $region57: #{d_upblock_forward.6} parent=0
    _
  %s9 = ssub.s32 1, %s7
  %s10 = scalar_select 0, %s9, %s7
  %11 = sst [smem:[#allocation3]] %s5
  loop: start=0, step=1, limit=6
  $region2: #{d_upblock_forward.6} parent=0 // loop_pre_header
    _
  $region3: #{d_upblock_forward.6} parent=0 // loop_header
    %s13 = sphi 0, %s17
    %p14 = scmp.ge.s32.totalorder %s13, 6
    %s20 = sphi 0, %s32
    %s21 = sphi 0, %s28
    %s22 = sphi 0, %s20
    %s23 = sphi 0, %s21
    %s24 = sphi 0, %s22
    %s25 = sphi 0, %s23
    %s37 = sphi 0, %s39
    %s40 = sphi 0, %s37
    %s41 = sphi 0, %s40
    %s57 = sphi 0, %s41
    %s69 = sphi 0, %s71
    %s72 = sphi 0, %s69
    %s73 = sphi 0, %s72
    %s89 = sphi 0, %s73
    %s93 = sphi 0, %s93
    %s95 = sphi 0, %s93
    %s96 = sphi 0, %s95
    %s110 = sphi 0, %s96
    %s114 = sphi 0, %s114
    %s116 = sphi 0, %s114
    %s117 = sphi 0, %s116
    %s131 = sphi 0, %s117
    %s139 = sphi 0, %s141
    %s142 = sphi 0, %s139
    %s143 = sphi 0, %s142
    %s159 = sphi 0, %s143
    %s163 = sphi 0, %s163
    %s165 = sphi 0, %s163
    %s166 = sphi 0, %s165
    %s180 = sphi 0, %s166
    %s188 = sphi 0, %s190
    %s191 = sphi 0, %s188
    %s192 = sphi 0, %s191
    %s208 = sphi 0, %s192
  $region4: #{d_upblock_forward.6} parent=0 // loop_header_branch
    %16 = sbr.rel (%p14) target = $region8
  $region5: #{d_upblock_forward.6} parent=0 // loop_body
    %s18 = ssub.s32 %s13, 1
    %s19 = ssub.s32 %s13, 2
    %s26 = sadd.s32 1, %s21
    %p27 = scmp.ge.s32.totalorder %s26, 2
    %s28 = scalar_select %p27, 0, %s26
    %s29 = sadd.s32 1, %s20
    %s30 = scalar_select %p27, %s29, %s20
    %p31 = scmp.ge.s32.totalorder %s30, 2
    %s32 = scalar_select %p31, 0, %s30
    %s33 = ssub.s32 %s20, %s32
    %s34 = ssub.s32 %s21, %s28
    %s35 = sor.u32 %s33, %s34
    %p36 = scmp.eq.s32.totalorder %s35, 0
    %s38 = sadd.s32 %s37, 1
    %s39 = scalar_select %p36, %s37, %s38
    %p42 = pneg %p36
    %p43 = scmp.eq.s32.totalorder %s13, 3
    %p44 = por %p42, %p43
    %p45 = scmp.ne.s32.totalorder %s37, %s40
    %p46 = scmp.eq.s32.totalorder %s13, 0
    %p47 = por %p45, %p46
    %p48 = scmp.ne.s32.totalorder %s37, %s40
    %p49 = scmp.eq.s32.totalorder %s18, 3
    %p50 = por %p48, %p49
    %p51 = scmp.ne.s32.totalorder %s40, %s41
    %p52 = scmp.eq.s32.totalorder %s18, 0
    %p53 = por %p51, %p52
    %p54 = scmp.ne.s32.totalorder %s40, %s41
    %p55 = scmp.eq.s32.totalorder %s19, 3
    %p56 = por %p54, %p55
    %p58 = scmp.ne.s32.totalorder %s41, %s57
    %p59 = scmp.eq.s32.totalorder %s19, 0
    %p60 = por %p58, %p59
    %s61 = sadd.s32 %s21, 1
    %s62 = smul.u32 %s61, 2
    %s63 = sadd.s32 %s28, 1
    %s64 = smul.u32 %s63, 2
    %s65 = ssub.s32 %s20, %s32
    %s66 = ssub.s32 %s62, %s64
    %s67 = sor.u32 %s65, %s66
    %p68 = scmp.eq.s32.totalorder %s67, 0
    %s70 = sadd.s32 %s69, 1
    %s71 = scalar_select %p68, %s69, %s70
    %p74 = pneg %p68
    %p75 = scmp.eq.s32.totalorder %s13, 3
    %p76 = por %p74, %p75
    %p77 = scmp.ne.s32.totalorder %s69, %s72
    %p78 = scmp.eq.s32.totalorder %s13, 0
    %p79 = por %p77, %p78
    %p80 = scmp.ne.s32.totalorder %s69, %s72
    %p81 = scmp.eq.s32.totalorder %s18, 3
    %p82 = por %p80, %p81
    %p83 = scmp.ne.s32.totalorder %s72, %s73
    %p84 = scmp.eq.s32.totalorder %s18, 0
    %p85 = por %p83, %p84
    %p86 = scmp.ne.s32.totalorder %s72, %s73
    %p87 = scmp.eq.s32.totalorder %s19, 3
    %p88 = por %p86, %p87
    %p90 = scmp.ne.s32.totalorder %s73, %s89
    %p91 = scmp.eq.s32.totalorder %s19, 0
    %p92 = por %p90, %p91
    %s94 = sadd.s32 %s93, 1
    %p97 = scmp.eq.s32.totalorder %s13, 3
    %p98 = scmp.ne.s32.totalorder %s93, %s95
    %p99 = scmp.eq.s32.totalorder %s13, 0
    %p100 = por %p98, %p99
    %p101 = scmp.ne.s32.totalorder %s93, %s95
    %p102 = scmp.eq.s32.totalorder %s18, 3
    %p103 = por %p101, %p102
    %p104 = scmp.ne.s32.totalorder %s95, %s96
    %p105 = scmp.eq.s32.totalorder %s18, 0
    %p106 = por %p104, %p105
    %p107 = scmp.ne.s32.totalorder %s95, %s96
    %p108 = scmp.eq.s32.totalorder %s19, 3
    %p109 = por %p107, %p108
    %p111 = scmp.ne.s32.totalorder %s96, %s110
    %p112 = scmp.eq.s32.totalorder %s19, 0
    %p113 = por %p111, %p112
    %s115 = sadd.s32 %s114, 1
    %p118 = scmp.eq.s32.totalorder %s13, 3
    %p119 = scmp.ne.s32.totalorder %s114, %s116
    %p120 = scmp.eq.s32.totalorder %s13, 0
    %p121 = por %p119, %p120
    %p122 = scmp.ne.s32.totalorder %s114, %s116
    %p123 = scmp.eq.s32.totalorder %s18, 3
    %p124 = por %p122, %p123
    %p125 = scmp.ne.s32.totalorder %s116, %s117
    %p126 = scmp.eq.s32.totalorder %s18, 0
    %p127 = por %p125, %p126
    %p128 = scmp.ne.s32.totalorder %s116, %s117
    %p129 = scmp.eq.s32.totalorder %s19, 3
    %p130 = por %p128, %p129
    %p132 = scmp.ne.s32.totalorder %s117, %s131
    %p133 = scmp.eq.s32.totalorder %s19, 0
    %p134 = por %p132, %p133
    %s135 = ssub.s32 %s20, %s32
    %s136 = ssub.s32 %s21, %s28
    %s137 = sor.u32 %s135, %s136
    %p138 = scmp.eq.s32.totalorder %s137, 0
    %s140 = sadd.s32 %s139, 1
    %s141 = scalar_select %p138, %s139, %s140
    %p144 = pneg %p138
    %p145 = scmp.eq.s32.totalorder %s13, 3
    %p146 = por %p144, %p145
    %p147 = scmp.ne.s32.totalorder %s139, %s142
    %p148 = scmp.eq.s32.totalorder %s13, 0
    %p149 = por %p147, %p148
    %p150 = scmp.ne.s32.totalorder %s139, %s142
    %p151 = scmp.eq.s32.totalorder %s18, 3
    %p152 = por %p150, %p151
    %p153 = scmp.ne.s32.totalorder %s142, %s143
    %p154 = scmp.eq.s32.totalorder %s18, 0
    %p155 = por %p153, %p154
    %p156 = scmp.ne.s32.totalorder %s142, %s143
    %p157 = scmp.eq.s32.totalorder %s19, 3
    %p158 = por %p156, %p157
    %p160 = scmp.ne.s32.totalorder %s143, %s159
    %p161 = scmp.eq.s32.totalorder %s19, 0
    %p162 = por %p160, %p161
    %s164 = sadd.s32 %s163, 1
    %p167 = scmp.eq.s32.totalorder %s13, 3
    %p168 = scmp.ne.s32.totalorder %s163, %s165
    %p169 = scmp.eq.s32.totalorder %s13, 0
    %p170 = por %p168, %p169
    %p171 = scmp.ne.s32.totalorder %s163, %s165
    %p172 = scmp.eq.s32.totalorder %s18, 3
    %p173 = por %p171, %p172
    %p174 = scmp.ne.s32.totalorder %s165, %s166
    %p175 = scmp.eq.s32.totalorder %s18, 0
    %p176 = por %p174, %p175
    %p177 = scmp.ne.s32.totalorder %s165, %s166
    %p178 = scmp.eq.s32.totalorder %s19, 3
    %p179 = por %p177, %p178
    %p181 = scmp.ne.s32.totalorder %s166, %s180
    %p182 = scmp.eq.s32.totalorder %s19, 0
    %p183 = por %p181, %p182
    %s184 = ssub.s32 %s20, %s32
    %s185 = ssub.s32 %s21, %s28
    %s186 = sor.u32 %s184, %s185
    %p187 = scmp.eq.s32.totalorder %s186, 0
    %s189 = sadd.s32 %s188, 1
    %s190 = scalar_select %p187, %s188, %s189
    %p193 = pneg %p187
    %p194 = scmp.eq.s32.totalorder %s13, 3
    %p195 = por %p193, %p194
    %p196 = scmp.ne.s32.totalorder %s188, %s191
    %p197 = scmp.eq.s32.totalorder %s13, 0
    %p198 = por %p196, %p197
    %p199 = scmp.ne.s32.totalorder %s188, %s191
    %p200 = scmp.eq.s32.totalorder %s18, 3
    %p201 = por %p199, %p200
    %p202 = scmp.ne.s32.totalorder %s191, %s192
    %p203 = scmp.eq.s32.totalorder %s18, 0
    %p204 = por %p202, %p203
    %p205 = scmp.ne.s32.totalorder %s191, %s192
    %p206 = scmp.eq.s32.totalorder %s19, 3
    %p207 = por %p205, %p206
    %p209 = scmp.ne.s32.totalorder %s192, %s208
    %p210 = scmp.eq.s32.totalorder %s19, 0
    %p211 = por %p209, %p210
    %p212 = scmp.le.s32.totalorder 1, %s13
    %p213 = scmp.lt.s32.totalorder %s13, 5
    %p214 = pnand %p212, %p213
    %p215 = pneg %p214
    // Predicated region
    $region9: #{d_upblock_forward.6} parent=5 // pred_check
      _
    $region10: #{d_upblock_forward.6} parent=5 // pred_check_branch
      %217 = sbr.rel (%p214) target = $region12
    $region11: #{d_upblock_forward.6} parent=5 // pred_region
      %s218 = ssub.s32 %s13, 1
      // Predicated region
      $region13: #{d_upblock_forward.6} parent=11 // pred_check
        %p219 = pneg %p106
      $region14: #{d_upblock_forward.6} parent=11 // pred_check_branch
        %221 = sbr.rel (%p219) target = $region16
      $region15: #{d_upblock_forward.6} parent=11 // pred_region
        _
      $region16: #{d_upblock_forward.6} parent=11 // pred_fallthru
        _
      // Predicated region
      $region17: #{d_upblock_forward.6} parent=11 // pred_check
        %p222 = pneg %p127
      $region18: #{d_upblock_forward.6} parent=11 // pred_check_branch
        %224 = sbr.rel (%p222) target = $region20
      $region19: #{d_upblock_forward.6} parent=11 // pred_region
        _
      $region20: #{d_upblock_forward.6} parent=11 // pred_fallthru
        _
      // Predicated region
      $region21: #{d_upblock_forward.6} parent=11 // pred_check
        %p225 = pneg %p176
      $region22: #{d_upblock_forward.6} parent=11 // pred_check_branch
        %227 = sbr.rel (%p225) target = $region24
      $region23: #{d_upblock_forward.6} parent=11 // pred_region
        _
      $region24: #{d_upblock_forward.6} parent=11 // pred_fallthru
        _
    $region12: #{d_upblock_forward.6} parent=5 // pred_fallthru
      _
    %p228 = scmp.lt.s32.totalorder %s13, 4
    // Predicated region
    $region25: #{d_upblock_forward.6} parent=5 // pred_check
      %p229 = pneg %p228
    $region26: #{d_upblock_forward.6} parent=5 // pred_check_branch
      %231 = sbr.rel (%p229) target = $region28
    $region27: #{d_upblock_forward.6} parent=5 // pred_region
      // Predicated region
      $region29: #{d_upblock_forward.6} parent=27 // pred_check
        %p232 = pneg %p47
      $region30: #{d_upblock_forward.6} parent=27 // pred_check_branch
        %234 = sbr.rel (%p232) target = $region32
      $region31: #{d_upblock_forward.6} parent=27 // pred_region
        %s235 = smul.u32 4, %s21
        %s236 = ssub.s32 10, %s235
        %p237 = scmp.lt.s32.totalorder %s236, 4
        %s238 = scalar_select %p237, %s236, 4
        %s239 = smul.u32 64, %s238
        %s240 = smul.u32 %s239, 2
        %p241 = scmp.lt.s32.totalorder %s20, 1
        %s242 = scalar_select %p241, %s20, 1
        %p243 = scmp.lt.s32.totalorder %s235, 9
        %s244 = scalar_select %p243, %s235, 9
        %s245 = smul.addr %s244, 2
        %s246 = smul.addr %s242, 20
        %s247 = sadd.s32 %s245, %s246
        %s248 = smul.addr %s247, 4
        %s249 = scalar_lea.vmem %s0, %s248
        %s250 = smul.u32 4, %s21
        %s251 = ssub.s32 10, %s250
        %p252 = scmp.lt.s32.totalorder %s251, 4
        %s253 = scalar_select %p252, %s251, 4
        %s254 = smul.u32 64, %s253
        %s255 = smul.u32 %s254, 2
      $region32: #{d_upblock_forward.6} parent=27 // pred_fallthru
        _
      // Predicated region
      $region33: #{d_upblock_forward.6} parent=27 // pred_check
        %p256 = pneg %p79
      $region34: #{d_upblock_forward.6} parent=27 // pred_check_branch
        %258 = sbr.rel (%p256) target = $region36
      $region35: #{d_upblock_forward.6} parent=27 // pred_region
        %s259 = sadd.s32 %s21, 1
        %s260 = smul.u32 %s259, 2
        %s261 = smul.u32 2, %s260
        %p262 = scmp.lt.s32.totalorder %s20, 1
        %s263 = scalar_select %p262, %s20, 1
        %p264 = scmp.lt.s32.totalorder %s261, 9
        %s265 = scalar_select %p264, %s261, 9
        %s266 = smul.addr %s265, 2
        %s267 = smul.addr %s263, 20
        %s268 = sadd.s32 %s266, %s267
        %s269 = smul.addr %s268, 4
        %s270 = scalar_lea.vmem %s1, %s269
        %s271 = sadd.s32 %s21, 1
        %s272 = smul.u32 %s271, 2
        %s273 = smul.u32 2, %s272
      $region36: #{d_upblock_forward.6} parent=27 // pred_fallthru
        _
      // Predicated region
      $region37: #{d_upblock_forward.6} parent=27 // pred_check
        %p274 = pneg %p149
      $region38: #{d_upblock_forward.6} parent=27 // pred_check_branch
        %276 = sbr.rel (%p274) target = $region40
      $region39: #{d_upblock_forward.6} parent=27 // pred_region
        %s277 = smul.u32 4, %s21
        %p278 = scmp.lt.s32.totalorder %s20, 1
        %s279 = scalar_select %p278, %s20, 1
        %p280 = scmp.lt.s32.totalorder %s277, 7
        %s281 = scalar_select %p280, %s277, 7
        %s282 = smul.addr %s279, 8
        %s283 = sadd.s32 %s281, %s282
        %s284 = smul.addr %s283, 4
        %s285 = scalar_lea.vmem %s4, %s284
        %s286 = smul.u32 4, %s21
      $region40: #{d_upblock_forward.6} parent=27 // pred_fallthru
        _
    $region28: #{d_upblock_forward.6} parent=5 // pred_fallthru
      _
    %p287 = scmp.le.s32.totalorder 1, %s13
    %p288 = scmp.lt.s32.totalorder %s13, 5
    %p289 = pnand %p287, %p288
    %p290 = pneg %p289
    // Predicated region
    $region41: #{d_upblock_forward.6} parent=5 // pred_check
      _
    $region42: #{d_upblock_forward.6} parent=5 // pred_check_branch
      %292 = sbr.rel (%p289) target = $region44
    $region43: #{d_upblock_forward.6} parent=5 // pred_region
      %s293 = ssub.s32 %s13, 1
      %s294 = smul.u32 4, %s23
      %s295 = ssub.s32 10, %s294
      %p296 = scmp.lt.s32.totalorder %s295, 4
      %s297 = scalar_select %p296, %s295, 4
      %s298 = smul.u32 64, %s297
      %s299 = smul.u32 %s298, 2
      %p300 = scmp.lt.s32.totalorder %s22, 1
      %s301 = scalar_select %p300, %s22, 1
      %p302 = scmp.lt.s32.totalorder %s294, 9
      %s303 = scalar_select %p302, %s294, 9
      %s304 = smul.addr %s303, 2
      %s305 = smul.addr %s301, 20
      %s306 = sadd.s32 %s304, %s305
      %s307 = smul.addr %s306, 4
      %s308 = scalar_lea.vmem %s0, %s307
      %p309 = pneg %p53
      %p310 = pneg %p50
      %s311 = sadd.s32 %s23, 1
      %s312 = smul.u32 %s311, 2
      %s313 = smul.u32 2, %s312
      %p314 = scmp.lt.s32.totalorder %s22, 1
      %s315 = scalar_select %p314, %s22, 1
      %p316 = scmp.lt.s32.totalorder %s313, 9
      %s317 = scalar_select %p316, %s313, 9
      %s318 = smul.addr %s317, 2
      %s319 = smul.addr %s315, 20
      %s320 = sadd.s32 %s318, %s319
      %s321 = smul.addr %s320, 4
      %s322 = scalar_lea.vmem %s1, %s321
      %p323 = pneg %p85
      %p324 = pneg %p82
      %p325 = pneg %p106
      %p326 = pneg %p103
      %p327 = pneg %p127
      %p328 = pneg %p124
      %s329 = smul.u32 4, %s23
      %p330 = scmp.lt.s32.totalorder %s22, 1
      %s331 = scalar_select %p330, %s22, 1
      %p332 = scmp.lt.s32.totalorder %s329, 7
      %s333 = scalar_select %p332, %s329, 7
      %s334 = smul.addr %s331, 8
      %s335 = sadd.s32 %s333, %s334
      %s336 = smul.addr %s335, 4
      %s337 = scalar_lea.vmem %s4, %s336
      %p338 = pneg %p155
      %p339 = pneg %p152
      %p340 = pneg %p176
      %p341 = pneg %p173
      %p342 = pneg %p204
      %p343 = pneg %p201
      %s344 = smul.u32 4, %s23
      %p345 = scmp.lt.s32.totalorder %s22, 1
      %s346 = scalar_select %p345, %s22, 1
      %p347 = scmp.lt.s32.totalorder %s344, 7
      %s348 = scalar_select %p347, %s344, 7
      %s349 = smul.addr %s346, 8
      %s350 = sadd.s32 %s348, %s349
      %s351 = smul.addr %s350, 4
      %s352 = scalar_lea.vmem %s6, %s351
      %s353 = smul.u32 4, %s23
      %s354 = ssub.s32 10, %s353
      %p355 = scmp.lt.s32.totalorder %s354, 4
      %s356 = scalar_select %p355, %s354, 4
      %s357 = smul.u32 64, %s356
      %s358 = smul.u32 %s357, 2
      %p359 = scmp.lt.s32.totalorder %s22, 1
      %s360 = scalar_select %p359, %s22, 1
      %p361 = scmp.lt.s32.totalorder %s353, 9
      %s362 = scalar_select %p361, %s353, 9
      %s363 = smul.addr %s362, 2
      %s364 = smul.addr %s360, 20
      %s365 = sadd.s32 %s363, %s364
      %s366 = smul.addr %s365, 4
      %s367 = scalar_lea.vmem %s0, %s366
      %s368 = smul.u32 4, %s23
      %s369 = ssub.s32 10, %s368
      %p370 = scmp.lt.s32.totalorder %s369, 4
      %s371 = scalar_select %p370, %s369, 4
      %s372 = smul.u32 64, %s371
      %s373 = smul.u32 %s372, 2
      %s374 = sadd.s32 %s23, 1
      %s375 = smul.u32 %s374, 2
      %s376 = smul.u32 2, %s375
      %p377 = scmp.lt.s32.totalorder %s22, 1
      %s378 = scalar_select %p377, %s22, 1
      %p379 = scmp.lt.s32.totalorder %s376, 9
      %s380 = scalar_select %p379, %s376, 9
      %s381 = smul.addr %s380, 2
      %s382 = smul.addr %s378, 20
      %s383 = sadd.s32 %s381, %s382
      %s384 = smul.addr %s383, 4
      %s385 = scalar_lea.vmem %s1, %s384
      %s386 = sadd.s32 %s23, 1
      %s387 = smul.u32 %s386, 2
      %s388 = smul.u32 2, %s387
      %s389 = smul.u32 4, %s23
      %p390 = scmp.lt.s32.totalorder %s22, 1
      %s391 = scalar_select %p390, %s22, 1
      %p392 = scmp.lt.s32.totalorder %s389, 7
      %s393 = scalar_select %p392, %s389, 7
      %s394 = smul.addr %s391, 8
      %s395 = sadd.s32 %s393, %s394
      %s396 = smul.addr %s395, 4
      %s397 = scalar_lea.vmem %s4, %s396
      %s398 = smul.u32 4, %s23
      %s399 = smul.u32 4, %s23
      %p400 = scmp.lt.s32.totalorder %s22, 1
      %s401 = scalar_select %p400, %s22, 1
      %p402 = scmp.lt.s32.totalorder %s399, 7
      %s403 = scalar_select %p402, %s399, 7
      %s404 = smul.addr %s401, 8
      %s405 = sadd.s32 %s403, %s404
      %s406 = smul.addr %s405, 4
      %s407 = scalar_lea.vmem %s6, %s406
      %s408 = smul.u32 4, %s23
      %v410 = vld [vmem:[%s367] sm:$0xf]
      %v411 = vld [vmem:[%s367 + $0x4] sm:$0x1]
      %v412 = vld [vmem:[%s367 + $0x8] sm:$0xf]
      %v413 = vld [vmem:[%s367 + $0xc] sm:$0x1]
      %v414 = vld [vmem:[%s367 + $0x10] sm:$0xf]
      %v415 = vld [vmem:[%s367 + $0x14] sm:$0x1]
      %v416 = vld [vmem:[%s367 + $0x18] sm:$0xf]
      %v417 = vld [vmem:[%s367 + $0x1c] sm:$0x1]
      %vm418 = vcmask 519168
      %419 = vst.msk [vmem:[#allocation2] sm:$0xf] %vm418, %v410
      %vm420 = vcmask 516096
      %421 = vst.msk [vmem:[#allocation2 + $0x4] sm:$0x1] %vm420, %v411
      %422 = vst.msk [vmem:[#allocation2 + $0x8] sm:$0xf] %vm418, %v412
      %423 = vst.msk [vmem:[#allocation2 + $0xc] sm:$0x1] %vm420, %v413
      %424 = vst.msk [vmem:[#allocation2 + $0x10] sm:$0xf] %vm418, %v414
      %425 = vst.msk [vmem:[#allocation2 + $0x14] sm:$0x1] %vm420, %v415
      %426 = vst.msk [vmem:[#allocation2 + $0x18] sm:$0xf] %vm418, %v416
      %427 = vst.msk [vmem:[#allocation2 + $0x1c] sm:$0x1] %vm420, %v417
      %v428 = vld [vmem:[%s385] sm:$0xf]
      %v429 = vld [vmem:[%s385 + $0x4] sm:$0x1]
      %v430 = vld [vmem:[%s385 + $0x8] sm:$0xf]
      %v431 = vld [vmem:[%s385 + $0xc] sm:$0x1]
      %s432 = scalar_lea.vmem [#allocation2], 32
      %433 = vst.msk [vmem:[%s432] sm:$0xf] %vm418, %v428
      %434 = vst.msk [vmem:[%s432 + $0x4] sm:$0x1] %vm420, %v429
      %435 = vst.msk [vmem:[%s432 + $0x8] sm:$0xf] %vm418, %v430
      %436 = vst.msk [vmem:[%s432 + $0xc] sm:$0x1] %vm420, %v431
      %v437 = vld [vmem:[#allocation2] sm:$0xf]
      %v438 = vld [vmem:[#allocation2 + $0x8] sm:$0xf]
      %v439 = vld [vmem:[#allocation2 + $0x10] sm:$0xf]
      %v440 = vld [vmem:[#allocation2 + $0x18] sm:$0xf]
      %v441 = vld [vmem:[%s2] sm:$0xf]
      %v442 = vld [vmem:[%s2 + $0x4] sm:$0xf]
      %v443 = vld [vmem:[%s2 + $0x8] sm:$0xf]
      %v444 = vld [vmem:[%s2 + $0xc] sm:$0xf]
      %v445 = vld [vmem:[%s2 + $0x10] sm:$0xf]
      %v446 = vld [vmem:[%s2 + $0x14] sm:$0xf]
      %v447 = vld [vmem:[%s2 + $0x18] sm:$0xf]
      %v448 = vld [vmem:[%s2 + $0x1c] sm:$0xf]
      %v449 = vld [vmem:[#allocation2 + $0x4] sm:$0x1]
      %v450 = vld [vmem:[#allocation2 + $0xc] sm:$0x1]
      %v451 = vld [vmem:[#allocation2 + $0x14] sm:$0x1]
      %v452 = vld [vmem:[#allocation2 + $0x1c] sm:$0x1]
      %vm453 = vsmask.f32 3328
      %vm454 = vsmask.f32 7440
      %vm455 = vmor %vm453, %vm454
      %v457 = vshrl.u32 %v437, 16
      %v459 = vrot.slane %v457, 4
      %v460 = vshll.u32 %v437, 16
      %v462 = vrot.slane %v460, 5
      %v463 = vor.u32 %v459, %v462
      %v464 = vrot.slane %v463, 4
      %v466 = vshll.u32 %v449, 16
      %v468 = vrot.slane %v466, 5
      %v469 = vsel %vm455, %v464, %v468
      %v471 = vshrl.u32 %v438, 16
      %v473 = vrot.slane %v471, 4
      %v474 = vshll.u32 %v438, 16
      %v476 = vrot.slane %v474, 5
      %v477 = vor.u32 %v473, %v476
      %v478 = vrot.slane %v477, 4
      %v480 = vshll.u32 %v450, 16
      %v482 = vrot.slane %v480, 5
      %v483 = vsel %vm455, %v478, %v482
      %v485 = vshrl.u32 %v439, 16
      %v487 = vrot.slane %v485, 4
      %v488 = vshll.u32 %v439, 16
      %v490 = vrot.slane %v488, 5
      %v491 = vor.u32 %v487, %v490
      %v492 = vrot.slane %v491, 4
      %v494 = vshll.u32 %v451, 16
      %v496 = vrot.slane %v494, 5
      %v497 = vsel %vm455, %v492, %v496
      %v499 = vshrl.u32 %v440, 16
      %v501 = vrot.slane %v499, 4
      %v502 = vshll.u32 %v440, 16
      %v504 = vrot.slane %v502, 5
      %v505 = vor.u32 %v501, %v504
      %v506 = vrot.slane %v505, 4
      %v508 = vshll.u32 %v452, 16
      %v510 = vrot.slane %v508, 5
      %v511 = vsel %vm455, %v506, %v510
      %s512 = scalar_lea.vmem %s2, 32
      %v513 = vld [vmem:[%s512] sm:$0xf]
      %v514 = vld [vmem:[%s512 + $0x4] sm:$0xf]
      %v515 = vld [vmem:[%s512 + $0x8] sm:$0xf]
      %v516 = vld [vmem:[%s512 + $0xc] sm:$0xf]
      %v517 = vld [vmem:[%s512 + $0x10] sm:$0xf]
      %v518 = vld [vmem:[%s512 + $0x14] sm:$0xf]
      %v519 = vld [vmem:[%s512 + $0x18] sm:$0xf]
      %v520 = vld [vmem:[%s512 + $0x1c] sm:$0xf]
      %v521 = vunpack.c.l.b16 %v469
      %v522 = vunpack.c.l.b16 %v483
      %v523 = vunpack.c.l.b16 %v497
      %v524 = vunpack.c.l.b16 %v511
      %v525 = vpack.c.b16 %v522, %v521
      %v526 = vpack.c.b16 %v524, %v523
      %v535 = vunpack.c.l.b16 %v513
      %v536 = vunpack.c.l.b16 %v514
      %v537 = vunpack.c.l.b16 %v515
      %v538 = vunpack.c.l.b16 %v516
      %v539 = vunpack.c.l.b16 %v517
      %v540 = vunpack.c.l.b16 %v518
      %v541 = vunpack.c.l.b16 %v519
      %v542 = vunpack.c.l.b16 %v520
      %v543 = vpack.c.b16 %v536, %v535
      %v544 = vpack.c.b16 %v538, %v537
      %v545 = vpack.c.b16 %v540, %v539
      %v546 = vpack.c.b16 %v542, %v541
      %vm551 = vcmask 523264
      %v553 = vsel %vm551, %v525, 0
      %v556 = vsel %vm551, %v526, 0
      %558 = vmatprep.subr.bf16.mxu0 0
      %559 = vmatpush1.bf16.msra.mxu0 %v543
      %560 = vmatprep.subr.bf16.mxu0 0
      %561 = vmatpush1.bf16.msra.mxu0 %v544
      %562 = vmatprep.subr.bf16.mxu0 0
      %563 = vmatpush1.bf16.msra.mxu0 %v545
      %564 = vmatprep.subr.bf16.mxu0 0
      %565 = vmatpush1.bf16.msra.mxu0 %v546
      %566 = vmatprep.subr.bf16.mxu0 0
      %567 = vmatpush1.bf16.msra.mxu0 0
      %568 = vmatprep.subr.bf16.mxu0 0
      %569 = vmatpush1.bf16.msra.mxu0 0
      %570 = vmatprep.subr.bf16.mxu0 0
      %571 = vmatpush1.bf16.msra.mxu0 0
      %572 = vmatprep.subr.bf16.mxu0 0
      %573 = vmatpush1.bf16.msra.mxu0 0
      %574 = vmatprep.subr.bf16.mxu0 0
      %575 = vmatpush1.bf16.msra.mxu0 0
      %576 = vmatprep.subr.bf16.mxu0 0
      %577 = vmatpush1.bf16.msra.mxu0 0
      %578 = vmatprep.subr.bf16.mxu0 0
      %579 = vmatpush1.bf16.msra.mxu0 0
      %580 = vmatprep.subr.bf16.mxu0 0
      %581 = vmatpush1.bf16.msra.mxu0 0
      %582 = vmatprep.subr.bf16.mxu0 0
      %583 = vmatpush1.bf16.msra.mxu0 0
      %584 = vmatprep.subr.bf16.mxu0 0
      %585 = vmatpush1.bf16.msra.mxu0 0
      %586 = vmatprep.subr.bf16.mxu0 0
      %587 = vmatpush1.bf16.msra.mxu0 0
      %588 = vmatprep.subr.bf16.mxu0 0
      %589 = vmatpush1.bf16.msra.mxu0 0
      %590 = vmatprep.mubr.bf16.mxu0 0
      %591 = vmatmul.mubr.bf16.gmra.mrb[0].mxu0 %v553
      %v592 = vpop.f32.mrb[0].mxu0
      %v593 = vadd.f32 0.0, %v592
      %v594 = vpop.f32.mrb[0].mxu0
      %v595 = vpop.f32.mrb[0].mxu0
      %v596 = vadd.f32 0.0, %v595
      %v597 = vpop.f32.mrb[0].mxu0
      %598 = vmatprep.mubr.bf16.mxu0 0
      %599 = vmatmul.mubr.bf16.gmra.mrb[0].mxu0 %v556
      %v600 = vpop.f32.mrb[0].mxu0
      %v601 = vadd.f32 0.0, %v600
      %v602 = vpop.f32.mrb[0].mxu0
      %v603 = vpop.f32.mrb[0].mxu0
      %v604 = vadd.f32 0.0, %v603
      %v605 = vpop.f32.mrb[0].mxu0
      %606 = vdwg.mxu0
      %v611 = vunpack.c.l.b16 %v437
      %v612 = vunpack.c.l.b16 %v438
      %v613 = vunpack.c.l.b16 %v439
      %v614 = vunpack.c.l.b16 %v440
      %v615 = vpack.c.b16 %v612, %v611
      %v616 = vpack.c.b16 %v614, %v613
      %v625 = vunpack.c.l.b16 %v441
      %v626 = vunpack.c.l.b16 %v442
      %v627 = vunpack.c.l.b16 %v443
      %v628 = vunpack.c.l.b16 %v444
      %v629 = vunpack.c.l.b16 %v445
      %v630 = vunpack.c.l.b16 %v446
      %v631 = vunpack.c.l.b16 %v447
      %v632 = vunpack.c.l.b16 %v448
      %v633 = vpack.c.b16 %v626, %v625
      %v634 = vpack.c.b16 %v628, %v627
      %v635 = vpack.c.b16 %v630, %v629
      %v636 = vpack.c.b16 %v632, %v631
      %v642 = vsel %vm551, %v615, 0
      %v645 = vsel %vm551, %v616, 0
      %647 = vmatprep.subr.bf16.mxu0 0
      %648 = vmatpush1.bf16.msra.mxu0 %v633
      %649 = vmatprep.subr.bf16.mxu0 0
      %650 = vmatpush1.bf16.msra.mxu0 %v634
      %651 = vmatprep.subr.bf16.mxu0 0
      %652 = vmatpush1.bf16.msra.mxu0 %v635
      %653 = vmatprep.subr.bf16.mxu0 0
      %654 = vmatpush1.bf16.msra.mxu0 %v636
      %655 = vmatprep.subr.bf16.mxu0 0
      %656 = vmatpush1.bf16.msra.mxu0 0
      %657 = vmatprep.subr.bf16.mxu0 0
      %658 = vmatpush1.bf16.msra.mxu0 0
      %659 = vmatprep.subr.bf16.mxu0 0
      %660 = vmatpush1.bf16.msra.mxu0 0
      %661 = vmatprep.subr.bf16.mxu0 0
      %662 = vmatpush1.bf16.msra.mxu0 0
      %663 = vmatprep.subr.bf16.mxu0 0
      %664 = vmatpush1.bf16.msra.mxu0 0
      %665 = vmatprep.subr.bf16.mxu0 0
      %666 = vmatpush1.bf16.msra.mxu0 0
      %667 = vmatprep.subr.bf16.mxu0 0
      %668 = vmatpush1.bf16.msra.mxu0 0
      %669 = vmatprep.subr.bf16.mxu0 0
      %670 = vmatpush1.bf16.msra.mxu0 0
      %671 = vmatprep.subr.bf16.mxu0 0
      %672 = vmatpush1.bf16.msra.mxu0 0
      %673 = vmatprep.subr.bf16.mxu0 0
      %674 = vmatpush1.bf16.msra.mxu0 0
      %675 = vmatprep.subr.bf16.mxu0 0
      %676 = vmatpush1.bf16.msra.mxu0 0
      %677 = vmatprep.subr.bf16.mxu0 0
      %678 = vmatpush1.bf16.msra.mxu0 0
      %679 = vmatprep.mubr.bf16.mxu0 0
      %680 = vmatmul.mubr.bf16.gmra.mrb[0].mxu0 %v642
      %v681 = vpop.f32.mrb[0].mxu0
      %v682 = vadd.f32 %v593, %v681
      %v683 = vpop.f32.mrb[0].mxu0
      %v684 = vpop.f32.mrb[0].mxu0
      %v685 = vadd.f32 %v596, %v684
      %v686 = vpop.f32.mrb[0].mxu0
      %687 = vmatprep.mubr.bf16.mxu0 0
      %688 = vmatmul.mubr.bf16.gmra.mrb[0].mxu0 %v645
      %v689 = vpop.f32.mrb[0].mxu0
      %v690 = vadd.f32 %v601, %v689
      %v691 = vpop.f32.mrb[0].mxu0
      %v692 = vpop.f32.mrb[0].mxu0
      %v693 = vadd.f32 %v604, %v692
      %v694 = vpop.f32.mrb[0].mxu0
      %695 = vdwg.mxu0
      %v696 = vld [vmem:[#allocation2] sm:$0xe]
      %v697 = vld [vmem:[#allocation2 + $0x8] sm:$0xe]
      %v698 = vld [vmem:[#allocation2 + $0x10] sm:$0xe]
      %v699 = vld [vmem:[#allocation2 + $0x18] sm:$0xe]
      %vm708 = vcmask 1042432
      %vm709 = vcmask 1046532
      %vm710 = vmor %vm708, %vm709
      %v711 = vrot.slane %v696, 5
      %v712 = vrot.slane %v711, 4
      %v713 = vrot.slane %v449, 5
      %v714 = vsel %vm710, %v712, %v713
      %v715 = vrot.slane %v697, 5
      %v716 = vrot.slane %v715, 4
      %v717 = vrot.slane %v450, 5
      %v718 = vsel %vm710, %v716, %v717
      %v719 = vrot.slane %v698, 5
      %v720 = vrot.slane %v719, 4
      %v721 = vrot.slane %v451, 5
      %v722 = vsel %vm710, %v720, %v721
      %v723 = vrot.slane %v699, 5
      %v724 = vrot.slane %v723, 4
      %v725 = vrot.slane %v452, 5
      %v726 = vsel %vm710, %v724, %v725
      %s727 = scalar_lea.vmem %s2, 64
      %v728 = vld [vmem:[%s727] sm:$0xf]
      %v729 = vld [vmem:[%s727 + $0x4] sm:$0xf]
      %v730 = vld [vmem:[%s727 + $0x8] sm:$0xf]
      %v731 = vld [vmem:[%s727 + $0xc] sm:$0xf]
      %v732 = vld [vmem:[%s727 + $0x10] sm:$0xf]
      %v733 = vld [vmem:[%s727 + $0x14] sm:$0xf]
      %v734 = vld [vmem:[%s727 + $0x18] sm:$0xf]
      %v735 = vld [vmem:[%s727 + $0x1c] sm:$0xf]
      %v736 = vunpack.c.l.b16 %v714
      %v737 = vunpack.c.l.b16 %v718
      %v738 = vunpack.c.l.b16 %v722
      %v739 = vunpack.c.l.b16 %v726
      %v740 = vpack.c.b16 %v737, %v736
      %v741 = vpack.c.b16 %v739, %v738
      %v750 = vunpack.c.l.b16 %v728
      %v751 = vunpack.c.l.b16 %v729
      %v752 = vunpack.c.l.b16 %v730
      %v753 = vunpack.c.l.b16 %v731
      %v754 = vunpack.c.l.b16 %v732
      %v755 = vunpack.c.l.b16 %v733
      %v756 = vunpack.c.l.b16 %v734
      %v757 = vunpack.c.l.b16 %v735
      %v758 = vpack.c.b16 %v751, %v750
      %v759 = vpack.c.b16 %v753, %v752
      %v760 = vpack.c.b16 %v755, %v754
      %v761 = vpack.c.b16 %v757, %v756
      %v767 = vsel %vm551, %v740, 0
      %v770 = vsel %vm551, %v741, 0
      %772 = vmatprep.subr.bf16.mxu0 0
      %773 = vmatpush1.bf16.msra.mxu0 %v758
      %774 = vmatprep.subr.bf16.mxu0 0
      %775 = vmatpush1.bf16.msra.mxu0 %v759
      %776 = vmatprep.subr.bf16.mxu0 0
      %777 = vmatpush1.bf16.msra.mxu0 %v760
      %778 = vmatprep.subr.bf16.mxu0 0
      %779 = vmatpush1.bf16.msra.mxu0 %v761
      %780 = vmatprep.subr.bf16.mxu0 0
      %781 = vmatpush1.bf16.msra.mxu0 0
      %782 = vmatprep.subr.bf16.mxu0 0
      %783 = vmatpush1.bf16.msra.mxu0 0
      %784 = vmatprep.subr.bf16.mxu0 0
      %785 = vmatpush1.bf16.msra.mxu0 0
      %786 = vmatprep.subr.bf16.mxu0 0
      %787 = vmatpush1.bf16.msra.mxu0 0
      %788 = vmatprep.subr.bf16.mxu0 0
      %789 = vmatpush1.bf16.msra.mxu0 0
      %790 = vmatprep.subr.bf16.mxu0 0
      %791 = vmatpush1.bf16.msra.mxu0 0
      %792 = vmatprep.subr.bf16.mxu0 0
      %793 = vmatpush1.bf16.msra.mxu0 0
      %794 = vmatprep.subr.bf16.mxu0 0
      %795 = vmatpush1.bf16.msra.mxu0 0
      %796 = vmatprep.subr.bf16.mxu0 0
      %797 = vmatpush1.bf16.msra.mxu0 0
      %798 = vmatprep.subr.bf16.mxu0 0
      %799 = vmatpush1.bf16.msra.mxu0 0
      %800 = vmatprep.subr.bf16.mxu0 0
      %801 = vmatpush1.bf16.msra.mxu0 0
      %802 = vmatprep.subr.bf16.mxu0 0
      %803 = vmatpush1.bf16.msra.mxu0 0
      %804 = vmatprep.mubr.bf16.mxu0 0
      %805 = vmatmul.mubr.bf16.gmra.mrb[0].mxu0 %v767
      %v806 = vpop.f32.mrb[0].mxu0
      %v807 = vadd.f32 0.0, %v806
      %v808 = vpop.f32.mrb[0].mxu0
      %v809 = vpop.f32.mrb[0].mxu0
      %v810 = vadd.f32 0.0, %v809
      %v811 = vpop.f32.mrb[0].mxu0
      %812 = vmatprep.mubr.bf16.mxu0 0
      %813 = vmatmul.mubr.bf16.gmra.mrb[0].mxu0 %v770
      %v814 = vpop.f32.mrb[0].mxu0
      %v815 = vadd.f32 0.0, %v814
      %v816 = vpop.f32.mrb[0].mxu0
      %v817 = vpop.f32.mrb[0].mxu0
      %v818 = vadd.f32 0.0, %v817
      %v819 = vpop.f32.mrb[0].mxu0
      %820 = vdwg.mxu0
      %v821 = vadd.f32 %v682, %v807
      %v822 = vadd.f32 %v685, %v810
      %v823 = vadd.f32 %v690, %v815
      %v824 = vadd.f32 %v693, %v818
      %s825 = scalar_lea.vmem [#allocation2], 8
      %v826 = vld [vmem:[%s825] sm:$0xf]
      %v827 = vld [vmem:[%s825 + $0x8] sm:$0xf]
      %v828 = vld [vmem:[%s825 + $0x10] sm:$0xf]
      %v829 = vld [vmem:[%s825 + $0x18] sm:$0xf]
      %s830 = scalar_lea.vmem %s2, 96
      %v831 = vld [vmem:[%s830] sm:$0xf]
      %v832 = vld [vmem:[%s830 + $0x4] sm:$0xf]
      %v833 = vld [vmem:[%s830 + $0x8] sm:$0xf]
      %v834 = vld [vmem:[%s830 + $0xc] sm:$0xf]
      %v835 = vld [vmem:[%s830 + $0x10] sm:$0xf]
      %v836 = vld [vmem:[%s830 + $0x14] sm:$0xf]
      %v837 = vld [vmem:[%s830 + $0x18] sm:$0xf]
      %v838 = vld [vmem:[%s830 + $0x1c] sm:$0xf]
      %v843 = vunpack.c.l.b16 %v826
      %v844 = vunpack.c.l.b16 %v827
      %v845 = vunpack.c.l.b16 %v828
      %v846 = vunpack.c.l.b16 %v829
      %v847 = vpack.c.b16 %v844, %v843
      %v848 = vpack.c.b16 %v846, %v845
      %v857 = vunpack.c.l.b16 %v831
      %v858 = vunpack.c.l.b16 %v832
      %v859 = vunpack.c.l.b16 %v833
      %v860 = vunpack.c.l.b16 %v834
      %v861 = vunpack.c.l.b16 %v835
      %v862 = vunpack.c.l.b16 %v836
      %v863 = vunpack.c.l.b16 %v837
      %v864 = vunpack.c.l.b16 %v838
      %v865 = vpack.c.b16 %v858, %v857
      %v866 = vpack.c.b16 %v860, %v859
      %v867 = vpack.c.b16 %v862, %v861
      %v868 = vpack.c.b16 %v864, %v863
      %v874 = vsel %vm551, %v847, 0
      %v877 = vsel %vm551, %v848, 0
      %879 = vmatprep.subr.bf16.mxu0 0
      %880 = vmatpush1.bf16.msra.mxu0 %v865
      %881 = vmatprep.subr.bf16.mxu0 0
      %882 = vmatpush1.bf16.msra.mxu0 %v866
      %883 = vmatprep.subr.bf16.mxu0 0
      %884 = vmatpush1.bf16.msra.mxu0 %v867
      %885 = vmatprep.subr.bf16.mxu0 0
      %886 = vmatpush1.bf16.msra.mxu0 %v868
      %887 = vmatprep.subr.bf16.mxu0 0
      %888 = vmatpush1.bf16.msra.mxu0 0
      %889 = vmatprep.subr.bf16.mxu0 0
      %890 = vmatpush1.bf16.msra.mxu0 0
      %891 = vmatprep.subr.bf16.mxu0 0
      %892 = vmatpush1.bf16.msra.mxu0 0
      %893 = vmatprep.subr.bf16.mxu0 0
      %894 = vmatpush1.bf16.msra.mxu0 0
      %895 = vmatprep.subr.bf16.mxu0 0
      %896 = vmatpush1.bf16.msra.mxu0 0
      %897 = vmatprep.subr.bf16.mxu0 0
      %898 = vmatpush1.bf16.msra.mxu0 0
      %899 = vmatprep.subr.bf16.mxu0 0
      %900 = vmatpush1.bf16.msra.mxu0 0
      %901 = vmatprep.subr.bf16.mxu0 0
      %902 = vmatpush1.bf16.msra.mxu0 0
      %903 = vmatprep.subr.bf16.mxu0 0
      %904 = vmatpush1.bf16.msra.mxu0 0
      %905 = vmatprep.subr.bf16.mxu0 0
      %906 = vmatpush1.bf16.msra.mxu0 0
      %907 = vmatprep.subr.bf16.mxu0 0
      %908 = vmatpush1.bf16.msra.mxu0 0
      %909 = vmatprep.subr.bf16.mxu0 0
      %910 = vmatpush1.bf16.msra.mxu0 0
      %911 = vmatprep.mubr.bf16.mxu0 0
      %912 = vmatmul.mubr.bf16.gmra.mrb[0].mxu0 %v874
      %v913 = vpop.f32.mrb[0].mxu0
      %v914 = vadd.f32 0.0, %v913
      %v915 = vpop.f32.mrb[0].mxu0
      %v916 = vpop.f32.mrb[0].mxu0
      %v917 = vadd.f32 0.0, %v916
      %v918 = vpop.f32.mrb[0].mxu0
      %919 = vmatprep.mubr.bf16.mxu0 0
      %920 = vmatmul.mubr.bf16.gmra.mrb[0].mxu0 %v877
      %v921 = vpop.f32.mrb[0].mxu0
      %v922 = vadd.f32 0.0, %v921
      %v923 = vpop.f32.mrb[0].mxu0
      %v924 = vpop.f32.mrb[0].mxu0
      %v925 = vadd.f32 0.0, %v924
      %v926 = vpop.f32.mrb[0].mxu0
      %927 = vdwg.mxu0
      %v928 = vadd.f32 %v821, %v914
      %v929 = vadd.f32 %v822, %v917
      %v930 = vadd.f32 %v823, %v922
      %v931 = vadd.f32 %v824, %v925
      %v932 = vld [vmem:[%s825] sm:$0xf]
      %v933 = vld [vmem:[%s825 + $0x4] sm:$0x1]
      %v934 = vld [vmem:[%s825 + $0x8] sm:$0xf]
      %v935 = vld [vmem:[%s825 + $0xc] sm:$0x1]
      %v936 = vld [vmem:[%s825 + $0x10] sm:$0xf]
      %v937 = vld [vmem:[%s825 + $0x14] sm:$0x1]
      %v938 = vld [vmem:[%s825 + $0x18] sm:$0xf]
      %v939 = vld [vmem:[%s825 + $0x1c] sm:$0x1]
      %v941 = vshrl.u32 %v932, 16
      %v943 = vrot.slane %v941, 4
      %v944 = vshll.u32 %v932, 16
      %v946 = vrot.slane %v944, 5
      %v947 = vor.u32 %v943, %v946
      %v948 = vrot.slane %v947, 4
      %v950 = vshll.u32 %v933, 16
      %v952 = vrot.slane %v950, 5
      %v953 = vsel %vm455, %v948, %v952
      %v955 = vshrl.u32 %v934, 16
      %v957 = vrot.slane %v955, 4
      %v958 = vshll.u32 %v934, 16
      %v960 = vrot.slane %v958, 5
      %v961 = vor.u32 %v957, %v960
      %v962 = vrot.slane %v961, 4
      %v964 = vshll.u32 %v935, 16
      %v966 = vrot.slane %v964, 5
      %v967 = vsel %vm455, %v962, %v966
      %v969 = vshrl.u32 %v936, 16
      %v971 = vrot.slane %v969, 4
      %v972 = vshll.u32 %v936, 16
      %v974 = vrot.slane %v972, 5
      %v975 = vor.u32 %v971, %v974
      %v976 = vrot.slane %v975, 4
      %v978 = vshll.u32 %v937, 16
      %v980 = vrot.slane %v978, 5
      %v981 = vsel %vm455, %v976, %v980
      %v983 = vshrl.u32 %v938, 16
      %v985 = vrot.slane %v983, 4
      %v986 = vshll.u32 %v938, 16
      %v988 = vrot.slane %v986, 5
      %v989 = vor.u32 %v985, %v988
      %v990 = vrot.slane %v989, 4
      %v992 = vshll.u32 %v939, 16
      %v994 = vrot.slane %v992, 5
      %v995 = vsel %vm455, %v990, %v994
      %s996 = scalar_lea.vmem %s2, 128
      %v997 = vld [vmem:[%s996] sm:$0xf]
      %v998 = vld [vmem:[%s996 + $0x4] sm:$0xf]
      %v999 = vld [vmem:[%s996 + $0x8] sm:$0xf]
      %v1000 = vld [vmem:[%s996 + $0xc] sm:$0xf]
      %v1001 = vld [vmem:[%s996 + $0x10] sm:$0xf]
      %v1002 = vld [vmem:[%s996 + $0x14] sm:$0xf]
      %v1003 = vld [vmem:[%s996 + $0x18] sm:$0xf]
      %v1004 = vld [vmem:[%s996 + $0x1c] sm:$0xf]
      %v1005 = vunpack.c.l.b16 %v953
      %v1006 = vunpack.c.l.b16 %v967
      %v1007 = vunpack.c.l.b16 %v981
      %v1008 = vunpack.c.l.b16 %v995
      %v1009 = vpack.c.b16 %v1006, %v1005
      %v1010 = vpack.c.b16 %v1008, %v1007
      %v1019 = vunpack.c.l.b16 %v997
      %v1020 = vunpack.c.l.b16 %v998
      %v1021 = vunpack.c.l.b16 %v999
      %v1022 = vunpack.c.l.b16 %v1000
      %v1023 = vunpack.c.l.b16 %v1001
      %v1024 = vunpack.c.l.b16 %v1002
      %v1025 = vunpack.c.l.b16 %v1003
      %v1026 = vunpack.c.l.b16 %v1004
      %v1027 = vpack.c.b16 %v1020, %v1019
      %v1028 = vpack.c.b16 %v1022, %v1021
      %v1029 = vpack.c.b16 %v1024, %v1023
      %v1030 = vpack.c.b16 %v1026, %v1025
      %v1036 = vsel %vm551, %v1009, 0
      %v1039 = vsel %vm551, %v1010, 0
      %1041 = vmatprep.subr.bf16.mxu0 0
      %1042 = vmatpush1.bf16.msra.mxu0 %v1027
      %1043 = vmatprep.subr.bf16.mxu0 0
      %1044 = vmatpush1.bf16.msra.mxu0 %v1028
      %1045 = vmatprep.subr.bf16.mxu0 0
      %1046 = vmatpush1.bf16.msra.mxu0 %v1029
      %1047 = vmatprep.subr.bf16.mxu0 0
      %1048 = vmatpush1.bf16.msra.mxu0 %v1030
      %1049 = vmatprep.subr.bf16.mxu0 0
      %1050 = vmatpush1.bf16.msra.mxu0 0
      %1051 = vmatprep.subr.bf16.mxu0 0
      %1052 = vmatpush1.bf16.msra.mxu0 0
      %1053 = vmatprep.subr.bf16.mxu0 0
      %1054 = vmatpush1.bf16.msra.mxu0 0
      %1055 = vmatprep.subr.bf16.mxu0 0
      %1056 = vmatpush1.bf16.msra.mxu0 0
      %1057 = vmatprep.subr.bf16.mxu0 0
      %1058 = vmatpush1.bf16.msra.mxu0 0
      %1059 = vmatprep.subr.bf16.mxu0 0
      %1060 = vmatpush1.bf16.msra.mxu0 0
      %1061 = vmatprep.subr.bf16.mxu0 0
      %1062 = vmatpush1.bf16.msra.mxu0 0
      %1063 = vmatprep.subr.bf16.mxu0 0
      %1064 = vmatpush1.bf16.msra.mxu0 0
      %1065 = vmatprep.subr.bf16.mxu0 0
      %1066 = vmatpush1.bf16.msra.mxu0 0
      %1067 = vmatprep.subr.bf16.mxu0 0
      %1068 = vmatpush1.bf16.msra.mxu0 0
      %1069 = vmatprep.subr.bf16.mxu0 0
      %1070 = vmatpush1.bf16.msra.mxu0 0
      %1071 = vmatprep.subr.bf16.mxu0 0
      %1072 = vmatpush1.bf16.msra.mxu0 0
      %1073 = vmatprep.mubr.bf16.mxu0 0
      %1074 = vmatmul.mubr.bf16.gmra.mrb[0].mxu0 %v1036
      %v1075 = vpop.f32.mrb[0].mxu0
      %v1076 = vadd.f32 0.0, %v1075
      %v1077 = vpop.f32.mrb[0].mxu0
      %v1078 = vpop.f32.mrb[0].mxu0
      %v1079 = vadd.f32 0.0, %v1078
      %v1080 = vpop.f32.mrb[0].mxu0
      %1081 = vmatprep.mubr.bf16.mxu0 0
      %1082 = vmatmul.mubr.bf16.gmra.mrb[0].mxu0 %v1039
      %v1083 = vpop.f32.mrb[0].mxu0
      %v1084 = vadd.f32 0.0, %v1083
      %v1085 = vpop.f32.mrb[0].mxu0
      %v1086 = vpop.f32.mrb[0].mxu0
      %v1087 = vadd.f32 0.0, %v1086
      %v1088 = vpop.f32.mrb[0].mxu0
      %1089 = vdwg.mxu0
      %v1090 = vadd.f32 %v928, %v1076
      %v1091 = vadd.f32 %v929, %v1079
      %v1092 = vadd.f32 %v930, %v1084
      %v1093 = vadd.f32 %v931, %v1087
      %v1094 = vld [vmem:[%s825] sm:$0xe]
      %v1095 = vld [vmem:[%s825 + $0x8] sm:$0xe]
      %v1096 = vld [vmem:[%s825 + $0x10] sm:$0xe]
      %v1097 = vld [vmem:[%s825 + $0x18] sm:$0xe]
      %v1106 = vrot.slane %v1094, 5
      %v1107 = vrot.slane %v1106, 4
      %v1108 = vrot.slane %v933, 5
      %v1109 = vsel %vm710, %v1107, %v1108
      %v1110 = vrot.slane %v1095, 5
      %v1111 = vrot.slane %v1110, 4
      %v1112 = vrot.slane %v935, 5
      %v1113 = vsel %vm710, %v1111, %v1112
      %v1114 = vrot.slane %v1096, 5
      %v1115 = vrot.slane %v1114, 4
      %v1116 = vrot.slane %v937, 5
      %v1117 = vsel %vm710, %v1115, %v1116
      %v1118 = vrot.slane %v1097, 5
      %v1119 = vrot.slane %v1118, 4
      %v1120 = vrot.slane %v939, 5
      %v1121 = vsel %vm710, %v1119, %v1120
      %s1122 = scalar_lea.vmem %s2, 160
      %v1123 = vld [vmem:[%s1122] sm:$0xf]
      %v1124 = vld [vmem:[%s1122 + $0x4] sm:$0xf]
      %v1125 = vld [vmem:[%s1122 + $0x8] sm:$0xf]
      %v1126 = vld [vmem:[%s1122 + $0xc] sm:$0xf]
      %v1127 = vld [vmem:[%s1122 + $0x10] sm:$0xf]
      %v1128 = vld [vmem:[%s1122 + $0x14] sm:$0xf]
      %v1129 = vld [vmem:[%s1122 + $0x18] sm:$0xf]
      %v1130 = vld [vmem:[%s1122 + $0x1c] sm:$0xf]
      %v1131 = vunpack.c.l.b16 %v1109
      %v1132 = vunpack.c.l.b16 %v1113
      %v1133 = vunpack.c.l.b16 %v1117
      %v1134 = vunpack.c.l.b16 %v1121
      %v1135 = vpack.c.b16 %v1132, %v1131
      %v1136 = vpack.c.b16 %v1134, %v1133
      %v1145 = vunpack.c.l.b16 %v1123
      %v1146 = vunpack.c.l.b16 %v1124
      %v1147 = vunpack.c.l.b16 %v1125
      %v1148 = vunpack.c.l.b16 %v1126
      %v1149 = vunpack.c.l.b16 %v1127
      %v1150 = vunpack.c.l.b16 %v1128
      %v1151 = vunpack.c.l.b16 %v1129
      %v1152 = vunpack.c.l.b16 %v1130
      %v1153 = vpack.c.b16 %v1146, %v1145
      %v1154 = vpack.c.b16 %v1148, %v1147
      %v1155 = vpack.c.b16 %v1150, %v1149
      %v1156 = vpack.c.b16 %v1152, %v1151
      %v1162 = vsel %vm551, %v1135, 0
      %v1165 = vsel %vm551, %v1136, 0
      %1167 = vmatprep.subr.bf16.mxu0 0
      %1168 = vmatpush1.bf16.msra.mxu0 %v1153
      %1169 = vmatprep.subr.bf16.mxu0 0
      %1170 = vmatpush1.bf16.msra.mxu0 %v1154
      %1171 = vmatprep.subr.bf16.mxu0 0
      %1172 = vmatpush1.bf16.msra.mxu0 %v1155
      %1173 = vmatprep.subr.bf16.mxu0 0
      %1174 = vmatpush1.bf16.msra.mxu0 %v1156
      %1175 = vmatprep.subr.bf16.mxu0 0
      %1176 = vmatpush1.bf16.msra.mxu0 0
      %1177 = vmatprep.subr.bf16.mxu0 0
      %1178 = vmatpush1.bf16.msra.mxu0 0
      %1179 = vmatprep.subr.bf16.mxu0 0
      %1180 = vmatpush1.bf16.msra.mxu0 0
      %1181 = vmatprep.subr.bf16.mxu0 0
      %1182 = vmatpush1.bf16.msra.mxu0 0
      %1183 = vmatprep.subr.bf16.mxu0 0
      %1184 = vmatpush1.bf16.msra.mxu0 0
      %1185 = vmatprep.subr.bf16.mxu0 0
      %1186 = vmatpush1.bf16.msra.mxu0 0
      %1187 = vmatprep.subr.bf16.mxu0 0
      %1188 = vmatpush1.bf16.msra.mxu0 0
      %1189 = vmatprep.subr.bf16.mxu0 0
      %1190 = vmatpush1.bf16.msra.mxu0 0
      %1191 = vmatprep.subr.bf16.mxu0 0
      %1192 = vmatpush1.bf16.msra.mxu0 0
      %1193 = vmatprep.subr.bf16.mxu0 0
      %1194 = vmatpush1.bf16.msra.mxu0 0
      %1195 = vmatprep.subr.bf16.mxu0 0
      %1196 = vmatpush1.bf16.msra.mxu0 0
      %1197 = vmatprep.subr.bf16.mxu0 0
      %1198 = vmatpush1.bf16.msra.mxu0 0
      %1199 = vmatprep.mubr.bf16.mxu0 0
      %1200 = vmatmul.mubr.bf16.gmra.mrb[0].mxu0 %v1162
      %v1201 = vpop.f32.mrb[0].mxu0
      %v1202 = vadd.f32 0.0, %v1201
      %v1203 = vpop.f32.mrb[0].mxu0
      %v1204 = vpop.f32.mrb[0].mxu0
      %v1205 = vadd.f32 0.0, %v1204
      %v1206 = vpop.f32.mrb[0].mxu0
      %1207 = vmatprep.mubr.bf16.mxu0 0
      %1208 = vmatmul.mubr.bf16.gmra.mrb[0].mxu0 %v1165
      %v1209 = vpop.f32.mrb[0].mxu0
      %v1210 = vadd.f32 0.0, %v1209
      %v1211 = vpop.f32.mrb[0].mxu0
      %v1212 = vpop.f32.mrb[0].mxu0
      %v1213 = vadd.f32 0.0, %v1212
      %v1214 = vpop.f32.mrb[0].mxu0
      %1215 = vdwg.mxu0
      %v1216 = vadd.f32 %v1090, %v1202
      %v1217 = vadd.f32 %v1091, %v1205
      %v1218 = vadd.f32 %v1092, %v1210
      %v1219 = vadd.f32 %v1093, %v1213
      %s1220 = scalar_lea.vmem [#allocation2], 16
      %v1221 = vld [vmem:[%s1220] sm:$0xf]
      %v1222 = vld [vmem:[%s1220 + $0x8] sm:$0xf]
      %v1223 = vld [vmem:[%s1220 + $0x10] sm:$0xf]
      %v1224 = vld [vmem:[%s1220 + $0x18] sm:$0xf]
      %s1225 = scalar_lea.vmem %s2, 192
      %v1226 = vld [vmem:[%s1225] sm:$0xf]
      %v1227 = vld [vmem:[%s1225 + $0x4] sm:$0xf]
      %v1228 = vld [vmem:[%s1225 + $0x8] sm:$0xf]
      %v1229 = vld [vmem:[%s1225 + $0xc] sm:$0xf]
      %v1230 = vld [vmem:[%s1225 + $0x10] sm:$0xf]
      %v1231 = vld [vmem:[%s1225 + $0x14] sm:$0xf]
      %v1232 = vld [vmem:[%s1225 + $0x18] sm:$0xf]
      %v1233 = vld [vmem:[%s1225 + $0x1c] sm:$0xf]
      %v1238 = vunpack.c.l.b16 %v1221
      %v1239 = vunpack.c.l.b16 %v1222
      %v1240 = vunpack.c.l.b16 %v1223
      %v1241 = vunpack.c.l.b16 %v1224
      %v1242 = vpack.c.b16 %v1239, %v1238
      %v1243 = vpack.c.b16 %v1241, %v1240
      %v1252 = vunpack.c.l.b16 %v1226
      %v1253 = vunpack.c.l.b16 %v1227
      %v1254 = vunpack.c.l.b16 %v1228
      %v1255 = vunpack.c.l.b16 %v1229
      %v1256 = vunpack.c.l.b16 %v1230
      %v1257 = vunpack.c.l.b16 %v1231
      %v1258 = vunpack.c.l.b16 %v1232
      %v1259 = vunpack.c.l.b16 %v1233
      %v1260 = vpack.c.b16 %v1253, %v1252
      %v1261 = vpack.c.b16 %v1255, %v1254
      %v1262 = vpack.c.b16 %v1257, %v1256
      %v1263 = vpack.c.b16 %v1259, %v1258
      %v1269 = vsel %vm551, %v1242, 0
      %v1272 = vsel %vm551, %v1243, 0
      %1274 = vmatprep.subr.bf16.mxu0 0
      %1275 = vmatpush1.bf16.msra.mxu0 %v1260
      %1276 = vmatprep.subr.bf16.mxu0 0
      %1277 = vmatpush1.bf16.msra.mxu0 %v1261
      %1278 = vmatprep.subr.bf16.mxu0 0
      %1279 = vmatpush1.bf16.msra.mxu0 %v1262
      %1280 = vmatprep.subr.bf16.mxu0 0
      %1281 = vmatpush1.bf16.msra.mxu0 %v1263
      %1282 = vmatprep.subr.bf16.mxu0 0
      %1283 = vmatpush1.bf16.msra.mxu0 0
      %1284 = vmatprep.subr.bf16.mxu0 0
      %1285 = vmatpush1.bf16.msra.mxu0 0
      %1286 = vmatprep.subr.bf16.mxu0 0
      %1287 = vmatpush1.bf16.msra.mxu0 0
      %1288 = vmatprep.subr.bf16.mxu0 0
      %1289 = vmatpush1.bf16.msra.mxu0 0
      %1290 = vmatprep.subr.bf16.mxu0 0
      %1291 = vmatpush1.bf16.msra.mxu0 0
      %1292 = vmatprep.subr.bf16.mxu0 0
      %1293 = vmatpush1.bf16.msra.mxu0 0
      %1294 = vmatprep.subr.bf16.mxu0 0
      %1295 = vmatpush1.bf16.msra.mxu0 0
      %1296 = vmatprep.subr.bf16.mxu0 0
      %1297 = vmatpush1.bf16.msra.mxu0 0
      %1298 = vmatprep.subr.bf16.mxu0 0
      %1299 = vmatpush1.bf16.msra.mxu0 0
      %1300 = vmatprep.subr.bf16.mxu0 0
      %1301 = vmatpush1.bf16.msra.mxu0 0
      %1302 = vmatprep.subr.bf16.mxu0 0
      %1303 = vmatpush1.bf16.msra.mxu0 0
      %1304 = vmatprep.subr.bf16.mxu0 0
      %1305 = vmatpush1.bf16.msra.mxu0 0
      %1306 = vmatprep.mubr.bf16.mxu0 0
      %1307 = vmatmul.mubr.bf16.gmra.mrb[0].mxu0 %v1269
      %v1308 = vpop.f32.mrb[0].mxu0
      %v1309 = vadd.f32 0.0, %v1308
      %v1310 = vpop.f32.mrb[0].mxu0
      %v1311 = vpop.f32.mrb[0].mxu0
      %v1312 = vadd.f32 0.0, %v1311
      %v1313 = vpop.f32.mrb[0].mxu0
      %1314 = vmatprep.mubr.bf16.mxu0 0
      %1315 = vmatmul.mubr.bf16.gmra.mrb[0].mxu0 %v1272
      %v1316 = vpop.f32.mrb[0].mxu0
      %v1317 = vadd.f32 0.0, %v1316
      %v1318 = vpop.f32.mrb[0].mxu0
      %v1319 = vpop.f32.mrb[0].mxu0
      %v1320 = vadd.f32 0.0, %v1319
      %v1321 = vpop.f32.mrb[0].mxu0
      %1322 = vdwg.mxu0
      %v1323 = vadd.f32 %v1216, %v1309
      %v1324 = vadd.f32 %v1217, %v1312
      %v1325 = vadd.f32 %v1218, %v1317
      %v1326 = vadd.f32 %v1219, %v1320
      %v1327 = vld [vmem:[%s1220] sm:$0xf]
      %v1328 = vld [vmem:[%s1220 + $0x4] sm:$0x1]
      %v1329 = vld [vmem:[%s1220 + $0x8] sm:$0xf]
      %v1330 = vld [vmem:[%s1220 + $0xc] sm:$0x1]
      %v1331 = vld [vmem:[%s1220 + $0x10] sm:$0xf]
      %v1332 = vld [vmem:[%s1220 + $0x14] sm:$0x1]
      %v1333 = vld [vmem:[%s1220 + $0x18] sm:$0xf]
      %v1334 = vld [vmem:[%s1220 + $0x1c] sm:$0x1]
      %v1336 = vshrl.u32 %v1327, 16
      %v1338 = vrot.slane %v1336, 4
      %v1339 = vshll.u32 %v1327, 16
      %v1341 = vrot.slane %v1339, 5
      %v1342 = vor.u32 %v1338, %v1341
      %v1343 = vrot.slane %v1342, 4
      %v1345 = vshll.u32 %v1328, 16
      %v1347 = vrot.slane %v1345, 5
      %v1348 = vsel %vm455, %v1343, %v1347
      %v1350 = vshrl.u32 %v1329, 16
      %v1352 = vrot.slane %v1350, 4
      %v1353 = vshll.u32 %v1329, 16
      %v1355 = vrot.slane %v1353, 5
      %v1356 = vor.u32 %v1352, %v1355
      %v1357 = vrot.slane %v1356, 4
      %v1359 = vshll.u32 %v1330, 16
      %v1361 = vrot.slane %v1359, 5
      %v1362 = vsel %vm455, %v1357, %v1361
      %v1364 = vshrl.u32 %v1331, 16
      %v1366 = vrot.slane %v1364, 4
      %v1367 = vshll.u32 %v1331, 16
      %v1369 = vrot.slane %v1367, 5
      %v1370 = vor.u32 %v1366, %v1369
      %v1371 = vrot.slane %v1370, 4
      %v1373 = vshll.u32 %v1332, 16
      %v1375 = vrot.slane %v1373, 5
      %v1376 = vsel %vm455, %v1371, %v1375
      %v1378 = vshrl.u32 %v1333, 16
      %v1380 = vrot.slane %v1378, 4
      %v1381 = vshll.u32 %v1333, 16
      %v1383 = vrot.slane %v1381, 5
      %v1384 = vor.u32 %v1380, %v1383
      %v1385 = vrot.slane %v1384, 4
      %v1387 = vshll.u32 %v1334, 16
      %v1389 = vrot.slane %v1387, 5
      %v1390 = vsel %vm455, %v1385, %v1389
      %s1391 = scalar_lea.vmem %s2, 224
      %v1392 = vld [vmem:[%s1391] sm:$0xf]
      %v1393 = vld [vmem:[%s1391 + $0x4] sm:$0xf]
      %v1394 = vld [vmem:[%s1391 + $0x8] sm:$0xf]
      %v1395 = vld [vmem:[%s1391 + $0xc] sm:$0xf]
      %v1396 = vld [vmem:[%s1391 + $0x10] sm:$0xf]
      %v1397 = vld [vmem:[%s1391 + $0x14] sm:$0xf]
      %v1398 = vld [vmem:[%s1391 + $0x18] sm:$0xf]
      %v1399 = vld [vmem:[%s1391 + $0x1c] sm:$0xf]
      %v1400 = vunpack.c.l.b16 %v1348
      %v1401 = vunpack.c.l.b16 %v1362
      %v1402 = vunpack.c.l.b16 %v1376
      %v1403 = vunpack.c.l.b16 %v1390
      %v1404 = vpack.c.b16 %v1401, %v1400
      %v1405 = vpack.c.b16 %v1403, %v1402
      %v1414 = vunpack.c.l.b16 %v1392
      %v1415 = vunpack.c.l.b16 %v1393
      %v1416 = vunpack.c.l.b16 %v1394
      %v1417 = vunpack.c.l.b16 %v1395
      %v1418 = vunpack.c.l.b16 %v1396
      %v1419 = vunpack.c.l.b16 %v1397
      %v1420 = vunpack.c.l.b16 %v1398
      %v1421 = vunpack.c.l.b16 %v1399
      %v1422 = vpack.c.b16 %v1415, %v1414
      %v1423 = vpack.c.b16 %v1417, %v1416
      %v1424 = vpack.c.b16 %v1419, %v1418
      %v1425 = vpack.c.b16 %v1421, %v1420
      %v1431 = vsel %vm551, %v1404, 0
      %v1434 = vsel %vm551, %v1405, 0
      %1436 = vmatprep.subr.bf16.mxu0 0
      %1437 = vmatpush1.bf16.msra.mxu0 %v1422
      %1438 = vmatprep.subr.bf16.mxu0 0
      %1439 = vmatpush1.bf16.msra.mxu0 %v1423
      %1440 = vmatprep.subr.bf16.mxu0 0
      %1441 = vmatpush1.bf16.msra.mxu0 %v1424
      %1442 = vmatprep.subr.bf16.mxu0 0
      %1443 = vmatpush1.bf16.msra.mxu0 %v1425
      %1444 = vmatprep.subr.bf16.mxu0 0
      %1445 = vmatpush1.bf16.msra.mxu0 0
      %1446 = vmatprep.subr.bf16.mxu0 0
      %1447 = vmatpush1.bf16.msra.mxu0 0
      %1448 = vmatprep.subr.bf16.mxu0 0
      %1449 = vmatpush1.bf16.msra.mxu0 0
      %1450 = vmatprep.subr.bf16.mxu0 0
      %1451 = vmatpush1.bf16.msra.mxu0 0
      %1452 = vmatprep.subr.bf16.mxu0 0
      %1453 = vmatpush1.bf16.msra.mxu0 0
      %1454 = vmatprep.subr.bf16.mxu0 0
      %1455 = vmatpush1.bf16.msra.mxu0 0
      %1456 = vmatprep.subr.bf16.mxu0 0
      %1457 = vmatpush1.bf16.msra.mxu0 0
      %1458 = vmatprep.subr.bf16.mxu0 0
      %1459 = vmatpush1.bf16.msra.mxu0 0
      %1460 = vmatprep.subr.bf16.mxu0 0
      %1461 = vmatpush1.bf16.msra.mxu0 0
      %1462 = vmatprep.subr.bf16.mxu0 0
      %1463 = vmatpush1.bf16.msra.mxu0 0
      %1464 = vmatprep.subr.bf16.mxu0 0
      %1465 = vmatpush1.bf16.msra.mxu0 0
      %1466 = vmatprep.subr.bf16.mxu0 0
      %1467 = vmatpush1.bf16.msra.mxu0 0
      %1468 = vmatprep.mubr.bf16.mxu0 0
      %1469 = vmatmul.mubr.bf16.gmra.mrb[0].mxu0 %v1431
      %v1470 = vpop.f32.mrb[0].mxu0
      %v1471 = vadd.f32 0.0, %v1470
      %v1472 = vpop.f32.mrb[0].mxu0
      %v1473 = vpop.f32.mrb[0].mxu0
      %v1474 = vadd.f32 0.0, %v1473
      %v1475 = vpop.f32.mrb[0].mxu0
      %1476 = vmatprep.mubr.bf16.mxu0 0
      %1477 = vmatmul.mubr.bf16.gmra.mrb[0].mxu0 %v1434
      %v1478 = vpop.f32.mrb[0].mxu0
      %v1479 = vadd.f32 0.0, %v1478
      %v1480 = vpop.f32.mrb[0].mxu0
      %v1481 = vpop.f32.mrb[0].mxu0
      %v1482 = vadd.f32 0.0, %v1481
      %v1483 = vpop.f32.mrb[0].mxu0
      %1484 = vdwg.mxu0
      %v1485 = vadd.f32 %v1323, %v1471
      %v1486 = vadd.f32 %v1324, %v1474
      %v1487 = vadd.f32 %v1325, %v1479
      %v1488 = vadd.f32 %v1326, %v1482
      %v1489 = vld [vmem:[%s1220] sm:$0xe]
      %v1490 = vld [vmem:[%s1220 + $0x8] sm:$0xe]
      %v1491 = vld [vmem:[%s1220 + $0x10] sm:$0xe]
      %v1492 = vld [vmem:[%s1220 + $0x18] sm:$0xe]
      %v1501 = vrot.slane %v1489, 5
      %v1502 = vrot.slane %v1501, 4
      %v1503 = vrot.slane %v1328, 5
      %v1504 = vsel %vm710, %v1502, %v1503
      %v1505 = vrot.slane %v1490, 5
      %v1506 = vrot.slane %v1505, 4
      %v1507 = vrot.slane %v1330, 5
      %v1508 = vsel %vm710, %v1506, %v1507
      %v1509 = vrot.slane %v1491, 5
      %v1510 = vrot.slane %v1509, 4
      %v1511 = vrot.slane %v1332, 5
      %v1512 = vsel %vm710, %v1510, %v1511
      %v1513 = vrot.slane %v1492, 5
      %v1514 = vrot.slane %v1513, 4
      %v1515 = vrot.slane %v1334, 5
      %v1516 = vsel %vm710, %v1514, %v1515
      %s1517 = scalar_lea.vmem %s2, 256
      %v1518 = vld [vmem:[%s1517] sm:$0xf]
      %v1519 = vld [vmem:[%s1517 + $0x4] sm:$0xf]
      %v1520 = vld [vmem:[%s1517 + $0x8] sm:$0xf]
      %v1521 = vld [vmem:[%s1517 + $0xc] sm:$0xf]
      %v1522 = vld [vmem:[%s1517 + $0x10] sm:$0xf]
      %v1523 = vld [vmem:[%s1517 + $0x14] sm:$0xf]
      %v1524 = vld [vmem:[%s1517 + $0x18] sm:$0xf]
      %v1525 = vld [vmem:[%s1517 + $0x1c] sm:$0xf]
      %v1526 = vunpack.c.l.b16 %v1504
      %v1527 = vunpack.c.l.b16 %v1508
      %v1528 = vunpack.c.l.b16 %v1512
      %v1529 = vunpack.c.l.b16 %v1516
      %v1530 = vpack.c.b16 %v1527, %v1526
      %v1531 = vpack.c.b16 %v1529, %v1528
      %v1540 = vunpack.c.l.b16 %v1518
      %v1541 = vunpack.c.l.b16 %v1519
      %v1542 = vunpack.c.l.b16 %v1520
      %v1543 = vunpack.c.l.b16 %v1521
      %v1544 = vunpack.c.l.b16 %v1522
      %v1545 = vunpack.c.l.b16 %v1523
      %v1546 = vunpack.c.l.b16 %v1524
      %v1547 = vunpack.c.l.b16 %v1525
      %v1548 = vpack.c.b16 %v1541, %v1540
      %v1549 = vpack.c.b16 %v1543, %v1542
      %v1550 = vpack.c.b16 %v1545, %v1544
      %v1551 = vpack.c.b16 %v1547, %v1546
      %v1557 = vsel %vm551, %v1530, 0
      %v1560 = vsel %vm551, %v1531, 0
      %1562 = vmatprep.subr.bf16.mxu0 0
      %1563 = vmatpush1.bf16.msra.mxu0 %v1548
      %1564 = vmatprep.subr.bf16.mxu0 0
      %1565 = vmatpush1.bf16.msra.mxu0 %v1549
      %1566 = vmatprep.subr.bf16.mxu0 0
      %1567 = vmatpush1.bf16.msra.mxu0 %v1550
      %1568 = vmatprep.subr.bf16.mxu0 0
      %1569 = vmatpush1.bf16.msra.mxu0 %v1551
      %1570 = vmatprep.subr.bf16.mxu0 0
      %1571 = vmatpush1.bf16.msra.mxu0 0
      %1572 = vmatprep.subr.bf16.mxu0 0
      %1573 = vmatpush1.bf16.msra.mxu0 0
      %1574 = vmatprep.subr.bf16.mxu0 0
      %1575 = vmatpush1.bf16.msra.mxu0 0
      %1576 = vmatprep.subr.bf16.mxu0 0
      %1577 = vmatpush1.bf16.msra.mxu0 0
      %1578 = vmatprep.subr.bf16.mxu0 0
      %1579 = vmatpush1.bf16.msra.mxu0 0
      %1580 = vmatprep.subr.bf16.mxu0 0
      %1581 = vmatpush1.bf16.msra.mxu0 0
      %1582 = vmatprep.subr.bf16.mxu0 0
      %1583 = vmatpush1.bf16.msra.mxu0 0
      %1584 = vmatprep.subr.bf16.mxu0 0
      %1585 = vmatpush1.bf16.msra.mxu0 0
      %1586 = vmatprep.subr.bf16.mxu0 0
      %1587 = vmatpush1.bf16.msra.mxu0 0
      %1588 = vmatprep.subr.bf16.mxu0 0
      %1589 = vmatpush1.bf16.msra.mxu0 0
      %1590 = vmatprep.subr.bf16.mxu0 0
      %1591 = vmatpush1.bf16.msra.mxu0 0
      %1592 = vmatprep.subr.bf16.mxu0 0
      %1593 = vmatpush1.bf16.msra.mxu0 0
      %1594 = vmatprep.mubr.bf16.mxu0 0
      %1595 = vmatmul.mubr.bf16.gmra.mrb[0].mxu0 %v1557
      %v1596 = vpop.f32.mrb[0].mxu0
      %v1597 = vadd.f32 0.0, %v1596
      %v1598 = vpop.f32.mrb[0].mxu0
      %v1599 = vpop.f32.mrb[0].mxu0
      %v1600 = vadd.f32 0.0, %v1599
      %v1601 = vpop.f32.mrb[0].mxu0
      %1602 = vmatprep.mubr.bf16.mxu0 0
      %1603 = vmatmul.mubr.bf16.gmra.mrb[0].mxu0 %v1560
      %v1604 = vpop.f32.mrb[0].mxu0
      %v1605 = vadd.f32 0.0, %v1604
      %v1606 = vpop.f32.mrb[0].mxu0
      %v1607 = vpop.f32.mrb[0].mxu0
      %v1608 = vadd.f32 0.0, %v1607
      %v1609 = vpop.f32.mrb[0].mxu0
      %1610 = vdwg.mxu0
      %v1611 = vadd.f32 %v1485, %v1597
      %v1612 = vadd.f32 %v1486, %v1600
      %v1613 = vadd.f32 %v1487, %v1605
      %v1614 = vadd.f32 %v1488, %v1608
      %v1615 = vld [vmem:[%s3] sm:$0x1]
      %v1617 = vlaneseq
      %v1618 = vshrl.u32 %v1617, 7
      %v1619 = vsub.s32 0, %v1618
      %v1620 = vrot.slane %v1615, %v1619
      %v1622 = vadd.f32 %v1611, %v1620
      %v1623 = vadd.f32 %v1612, %v1620
      %v1624 = vadd.f32 %v1613, %v1620
      %v1625 = vadd.f32 %v1614, %v1620
      %s1626 = sld [smem:[#allocation3]]
      %vm1627 = vcmp.ge.f32.partialorder %v1622, 0.0
      %vm1628 = vcmp.ge.f32.partialorder %v1623, 0.0
      %vm1629 = vcmp.ge.f32.partialorder %v1624, 0.0
      %vm1630 = vcmp.ge.f32.partialorder %v1625, 0.0
      %v1631 = vstv %s1626
      %v1632 = vmul.f32 %v1631, %v1622
      %v1633 = vmul.f32 %v1631, %v1623
      %v1634 = vmul.f32 %v1631, %v1624
      %v1635 = vmul.f32 %v1631, %v1625
      %v1636 = vsel %vm1627, %v1622, %v1632
      %v1637 = vsel %vm1628, %v1623, %v1633
      %v1638 = vsel %vm1629, %v1624, %v1634
      %v1639 = vsel %vm1630, %v1625, %v1635
      %v1640 = vld [vmem:[%s397] sm:$0xf]
      %v1641 = vld [vmem:[%s397 + $0x4] sm:$0xf]
      %v1642 = vld [vmem:[%s397 + $0x8] sm:$0xf]
      %v1643 = vld [vmem:[%s397 + $0xc] sm:$0xf]
      %v1644 = vunpack.c.l.bf16 %v1640
      %v1645 = vunpack.c.l.bf16 %v1641
      %v1646 = vunpack.c.l.bf16 %v1642
      %v1647 = vunpack.c.l.bf16 %v1643
      %v1648 = vsub.f32 %v1636, %v1644
      %v1649 = vsub.f32 %v1637, %v1645
      %v1650 = vsub.f32 %v1638, %v1646
      %v1651 = vsub.f32 %v1639, %v1647
      %v1652 = vpack.c.bf16 %v1648, %v1648
      %v1653 = vpack.c.bf16 %v1649, %v1649
      %v1654 = vpack.c.bf16 %v1650, %v1650
      %v1655 = vpack.c.bf16 %v1651, %v1651
      %vm1656 = vcmask 27648
      %1657 = vst.msk [vmem:[%s407] sm:$0xf] %vm1656, %v1652
      %1658 = vst.msk [vmem:[%s407 + $0x4] sm:$0xf] %vm1656, %v1653
      %1659 = vst.msk [vmem:[%s407 + $0x8] sm:$0xf] %vm1656, %v1654
      %1660 = vst.msk [vmem:[%s407 + $0xc] sm:$0xf] %vm1656, %v1655
      %s1661 = smul.u32 4, %s23
      %p1662 = scmp.lt.s32.totalorder %s22, 1
      %s1663 = scalar_select %p1662, %s22, 1
      %p1664 = scmp.lt.s32.totalorder %s1661, 7
      %s1665 = scalar_select %p1664, %s1661, 7
      %s1666 = smul.addr %s1663, 8
      %s1667 = sadd.s32 %s1665, %s1666
      %s1668 = smul.addr %s1667, 4
      %s1669 = scalar_lea.vmem %s6, %s1668
      // Predicated region
      $region45: #{d_upblock_forward.6} parent=43 // pred_check
        %p1670 = pneg %p201
      $region46: #{d_upblock_forward.6} parent=43 // pred_check_branch
        %1672 = sbr.rel (%p1670) target = $region48
      $region47: #{d_upblock_forward.6} parent=43 // pred_region
        %s1673 = smul.u32 4, %s23
      $region48: #{d_upblock_forward.6} parent=43 // pred_fallthru
        _
    $region44: #{d_upblock_forward.6} parent=5 // pred_fallthru
      _
    %p1674 = scmp.le.s32.totalorder 2, %s13
    // Predicated region
    $region49: #{d_upblock_forward.6} parent=5 // pred_check
      %p1675 = pneg %p1674
    $region50: #{d_upblock_forward.6} parent=5 // pred_check_branch
      %1677 = sbr.rel (%p1675) target = $region52
    $region51: #{d_upblock_forward.6} parent=5 // pred_region
      %s1678 = ssub.s32 %s13, 2
      // Predicated region
      $region53: #{d_upblock_forward.6} parent=51 // pred_check
        %p1679 = pneg %p207
      $region54: #{d_upblock_forward.6} parent=51 // pred_check_branch
        %1681 = sbr.rel (%p1679) target = $region56
      $region55: #{d_upblock_forward.6} parent=51 // pred_region
        %s1682 = smul.u32 4, %s25
        %p1683 = scmp.lt.s32.totalorder %s24, 1
        %s1684 = scalar_select %p1683, %s24, 1
        %p1685 = scmp.lt.s32.totalorder %s1682, 7
        %s1686 = scalar_select %p1685, %s1682, 7
        %s1687 = smul.addr %s1684, 8
        %s1688 = sadd.s32 %s1686, %s1687
        %s1689 = smul.addr %s1688, 4
        %s1690 = scalar_lea.vmem %s6, %s1689
      $region56: #{d_upblock_forward.6} parent=51 // pred_fallthru
        _
    $region52: #{d_upblock_forward.6} parent=5 // pred_fallthru
      _
  $region6: #{d_upblock_forward.6} parent=0 // loop_footer
    %s17 = sadd.s32 1, %s13
  $region7: #{d_upblock_forward.6} parent=0 // loop_footer_branch
    %12 = sbr.rel target = $region3
  $region8: #{d_upblock_forward.6} parent=0 // loop_exit
    _

// kernel: d_upblock_forward.7
$region0: #{d_upblock_forward.7}
  #allocation0 [shape = 'u32[]', space=smem, size = 0x4, offset = 0x4, fixed_abs, tag = 'smem constant byte address 0x4 - core index']
  #allocation1 [shape = 'u32[144,128]{1,0:T(1,128)}', space=vmem, size = 0x12000, scoped, tag = 'internal scratch']
  #allocation2 [shape = 'bf16[6,10,4]{2,1,0:T(8,128)(2,1)}', space=vmem, size = 0x6000, scoped, tag = 'scratch operand']
  #allocation3 [shape = 'f32[1]{0:T(128)S(6)}', space=smem, size = 0x200, scoped, tag = 'scoped memory for d_upblock_forward.7']
  %s0 = inlined_call_operand.vmem [shape: bf16[2,10,10,4], index: 0, kind: input, shape index: {}, may-alias: {0,1}]
  %s1 = inlined_call_operand.vmem [shape: bf16[2,10,10,4], index: 1, kind: input, shape index: {}, may-alias: {0,1}]
  %s2 = inlined_call_operand.vmem [shape: bf16[9,4,64], index: 2, kind: input, shape index: {}]
  %s3 = inlined_call_operand.vmem [shape: f32[1,64], index: 3, kind: input, shape index: {}]
  %s4 = inlined_call_operand.vmem [shape: bf16[2,8,8,64], index: 4, kind: input, shape index: {}]
  %s5 = inlined_call_operand.<no memory space> [shape: f32[1], index: 5, kind: input, shape index: {}]
  %s6 = inlined_call_operand.vmem [shape: f32[2,8,8,64], index: 6, kind: output, shape index: {}]
  %s7 = sld [smem:[#allocation0]]
  $region57: #{d_upblock_forward.7} parent=0
    _
  %s9 = ssub.s32 1, %s7
  %s10 = scalar_select 0, %s9, %s7
  %11 = sst [smem:[#allocation3]] %s5
  loop: start=0, step=1, limit=6
  $region2: #{d_upblock_forward.7} parent=0 // loop_pre_header
    _
  $region3: #{d_upblock_forward.7} parent=0 // loop_header
    %s13 = sphi 0, %s17
    %p14 = scmp.ge.s32.totalorder %s13, 6
    %s20 = sphi 0, %s32
    %s21 = sphi 0, %s28
    %s22 = sphi 0, %s20
    %s23 = sphi 0, %s21
    %s24 = sphi 0, %s22
    %s25 = sphi 0, %s23
    %s37 = sphi 0, %s39
    %s40 = sphi 0, %s37
    %s41 = sphi 0, %s40
    %s57 = sphi 0, %s41
    %s69 = sphi 0, %s71
    %s72 = sphi 0, %s69
    %s73 = sphi 0, %s72
    %s89 = sphi 0, %s73
    %s93 = sphi 0, %s93
    %s95 = sphi 0, %s93
    %s96 = sphi 0, %s95
    %s110 = sphi 0, %s96
    %s114 = sphi 0, %s114
    %s116 = sphi 0, %s114
    %s117 = sphi 0, %s116
    %s131 = sphi 0, %s117
    %s139 = sphi 0, %s141
    %s142 = sphi 0, %s139
    %s143 = sphi 0, %s142
    %s159 = sphi 0, %s143
    %s163 = sphi 0, %s163
    %s165 = sphi 0, %s163
    %s166 = sphi 0, %s165
    %s180 = sphi 0, %s166
    %s188 = sphi 0, %s190
    %s191 = sphi 0, %s188
    %s192 = sphi 0, %s191
    %s208 = sphi 0, %s192
  $region4: #{d_upblock_forward.7} parent=0 // loop_header_branch
    %16 = sbr.rel (%p14) target = $region8
  $region5: #{d_upblock_forward.7} parent=0 // loop_body
    %s18 = ssub.s32 %s13, 1
    %s19 = ssub.s32 %s13, 2
    %s26 = sadd.s32 1, %s21
    %p27 = scmp.ge.s32.totalorder %s26, 2
    %s28 = scalar_select %p27, 0, %s26
    %s29 = sadd.s32 1, %s20
    %s30 = scalar_select %p27, %s29, %s20
    %p31 = scmp.ge.s32.totalorder %s30, 2
    %s32 = scalar_select %p31, 0, %s30
    %s33 = ssub.s32 %s20, %s32
    %s34 = ssub.s32 %s21, %s28
    %s35 = sor.u32 %s33, %s34
    %p36 = scmp.eq.s32.totalorder %s35, 0
    %s38 = sadd.s32 %s37, 1
    %s39 = scalar_select %p36, %s37, %s38
    %p42 = pneg %p36
    %p43 = scmp.eq.s32.totalorder %s13, 3
    %p44 = por %p42, %p43
    %p45 = scmp.ne.s32.totalorder %s37, %s40
    %p46 = scmp.eq.s32.totalorder %s13, 0
    %p47 = por %p45, %p46
    %p48 = scmp.ne.s32.totalorder %s37, %s40
    %p49 = scmp.eq.s32.totalorder %s18, 3
    %p50 = por %p48, %p49
    %p51 = scmp.ne.s32.totalorder %s40, %s41
    %p52 = scmp.eq.s32.totalorder %s18, 0
    %p53 = por %p51, %p52
    %p54 = scmp.ne.s32.totalorder %s40, %s41
    %p55 = scmp.eq.s32.totalorder %s19, 3
    %p56 = por %p54, %p55
    %p58 = scmp.ne.s32.totalorder %s41, %s57
    %p59 = scmp.eq.s32.totalorder %s19, 0
    %p60 = por %p58, %p59
    %s61 = sadd.s32 %s21, 1
    %s62 = smul.u32 %s61, 2
    %s63 = sadd.s32 %s28, 1
    %s64 = smul.u32 %s63, 2
    %s65 = ssub.s32 %s20, %s32
    %s66 = ssub.s32 %s62, %s64
    %s67 = sor.u32 %s65, %s66
    %p68 = scmp.eq.s32.totalorder %s67, 0
    %s70 = sadd.s32 %s69, 1
    %s71 = scalar_select %p68, %s69, %s70
    %p74 = pneg %p68
    %p75 = scmp.eq.s32.totalorder %s13, 3
    %p76 = por %p74, %p75
    %p77 = scmp.ne.s32.totalorder %s69, %s72
    %p78 = scmp.eq.s32.totalorder %s13, 0
    %p79 = por %p77, %p78
    %p80 = scmp.ne.s32.totalorder %s69, %s72
    %p81 = scmp.eq.s32.totalorder %s18, 3
    %p82 = por %p80, %p81
    %p83 = scmp.ne.s32.totalorder %s72, %s73
    %p84 = scmp.eq.s32.totalorder %s18, 0
    %p85 = por %p83, %p84
    %p86 = scmp.ne.s32.totalorder %s72, %s73
    %p87 = scmp.eq.s32.totalorder %s19, 3
    %p88 = por %p86, %p87
    %p90 = scmp.ne.s32.totalorder %s73, %s89
    %p91 = scmp.eq.s32.totalorder %s19, 0
    %p92 = por %p90, %p91
    %s94 = sadd.s32 %s93, 1
    %p97 = scmp.eq.s32.totalorder %s13, 3
    %p98 = scmp.ne.s32.totalorder %s93, %s95
    %p99 = scmp.eq.s32.totalorder %s13, 0
    %p100 = por %p98, %p99
    %p101 = scmp.ne.s32.totalorder %s93, %s95
    %p102 = scmp.eq.s32.totalorder %s18, 3
    %p103 = por %p101, %p102
    %p104 = scmp.ne.s32.totalorder %s95, %s96
    %p105 = scmp.eq.s32.totalorder %s18, 0
    %p106 = por %p104, %p105
    %p107 = scmp.ne.s32.totalorder %s95, %s96
    %p108 = scmp.eq.s32.totalorder %s19, 3
    %p109 = por %p107, %p108
    %p111 = scmp.ne.s32.totalorder %s96, %s110
    %p112 = scmp.eq.s32.totalorder %s19, 0
    %p113 = por %p111, %p112
    %s115 = sadd.s32 %s114, 1
    %p118 = scmp.eq.s32.totalorder %s13, 3
    %p119 = scmp.ne.s32.totalorder %s114, %s116
    %p120 = scmp.eq.s32.totalorder %s13, 0
    %p121 = por %p119, %p120
    %p122 = scmp.ne.s32.totalorder %s114, %s116
    %p123 = scmp.eq.s32.totalorder %s18, 3
    %p124 = por %p122, %p123
    %p125 = scmp.ne.s32.totalorder %s116, %s117
    %p126 = scmp.eq.s32.totalorder %s18, 0
    %p127 = por %p125, %p126
    %p128 = scmp.ne.s32.totalorder %s116, %s117
    %p129 = scmp.eq.s32.totalorder %s19, 3
    %p130 = por %p128, %p129
    %p132 = scmp.ne.s32.totalorder %s117, %s131
    %p133 = scmp.eq.s32.totalorder %s19, 0
    %p134 = por %p132, %p133
    %s135 = ssub.s32 %s20, %s32
    %s136 = ssub.s32 %s21, %s28
    %s137 = sor.u32 %s135, %s136
    %p138 = scmp.eq.s32.totalorder %s137, 0
    %s140 = sadd.s32 %s139, 1
    %s141 = scalar_select %p138, %s139, %s140
    %p144 = pneg %p138
    %p145 = scmp.eq.s32.totalorder %s13, 3
    %p146 = por %p144, %p145
    %p147 = scmp.ne.s32.totalorder %s139, %s142
    %p148 = scmp.eq.s32.totalorder %s13, 0
    %p149 = por %p147, %p148
    %p150 = scmp.ne.s32.totalorder %s139, %s142
    %p151 = scmp.eq.s32.totalorder %s18, 3
    %p152 = por %p150, %p151
    %p153 = scmp.ne.s32.totalorder %s142, %s143
    %p154 = scmp.eq.s32.totalorder %s18, 0
    %p155 = por %p153, %p154
    %p156 = scmp.ne.s32.totalorder %s142, %s143
    %p157 = scmp.eq.s32.totalorder %s19, 3
    %p158 = por %p156, %p157
    %p160 = scmp.ne.s32.totalorder %s143, %s159
    %p161 = scmp.eq.s32.totalorder %s19, 0
    %p162 = por %p160, %p161
    %s164 = sadd.s32 %s163, 1
    %p167 = scmp.eq.s32.totalorder %s13, 3
    %p168 = scmp.ne.s32.totalorder %s163, %s165
    %p169 = scmp.eq.s32.totalorder %s13, 0
    %p170 = por %p168, %p169
    %p171 = scmp.ne.s32.totalorder %s163, %s165
    %p172 = scmp.eq.s32.totalorder %s18, 3
    %p173 = por %p171, %p172
    %p174 = scmp.ne.s32.totalorder %s165, %s166
    %p175 = scmp.eq.s32.totalorder %s18, 0
    %p176 = por %p174, %p175
    %p177 = scmp.ne.s32.totalorder %s165, %s166
    %p178 = scmp.eq.s32.totalorder %s19, 3
    %p179 = por %p177, %p178
    %p181 = scmp.ne.s32.totalorder %s166, %s180
    %p182 = scmp.eq.s32.totalorder %s19, 0
    %p183 = por %p181, %p182
    %s184 = ssub.s32 %s20, %s32
    %s185 = ssub.s32 %s21, %s28
    %s186 = sor.u32 %s184, %s185
    %p187 = scmp.eq.s32.totalorder %s186, 0
    %s189 = sadd.s32 %s188, 1
    %s190 = scalar_select %p187, %s188, %s189
    %p193 = pneg %p187
    %p194 = scmp.eq.s32.totalorder %s13, 3
    %p195 = por %p193, %p194
    %p196 = scmp.ne.s32.totalorder %s188, %s191
    %p197 = scmp.eq.s32.totalorder %s13, 0
    %p198 = por %p196, %p197
    %p199 = scmp.ne.s32.totalorder %s188, %s191
    %p200 = scmp.eq.s32.totalorder %s18, 3
    %p201 = por %p199, %p200
    %p202 = scmp.ne.s32.totalorder %s191, %s192
    %p203 = scmp.eq.s32.totalorder %s18, 0
    %p204 = por %p202, %p203
    %p205 = scmp.ne.s32.totalorder %s191, %s192
    %p206 = scmp.eq.s32.totalorder %s19, 3
    %p207 = por %p205, %p206
    %p209 = scmp.ne.s32.totalorder %s192, %s208
    %p210 = scmp.eq.s32.totalorder %s19, 0
    %p211 = por %p209, %p210
    %p212 = scmp.le.s32.totalorder 1, %s13
    %p213 = scmp.lt.s32.totalorder %s13, 5
    %p214 = pnand %p212, %p213
    %p215 = pneg %p214
    // Predicated region
    $region9: #{d_upblock_forward.7} parent=5 // pred_check
      _
    $region10: #{d_upblock_forward.7} parent=5 // pred_check_branch
      %217 = sbr.rel (%p214) target = $region12
    $region11: #{d_upblock_forward.7} parent=5 // pred_region
      %s218 = ssub.s32 %s13, 1
      // Predicated region
      $region13: #{d_upblock_forward.7} parent=11 // pred_check
        %p219 = pneg %p106
      $region14: #{d_upblock_forward.7} parent=11 // pred_check_branch
        %221 = sbr.rel (%p219) target = $region16
      $region15: #{d_upblock_forward.7} parent=11 // pred_region
        _
      $region16: #{d_upblock_forward.7} parent=11 // pred_fallthru
        _
      // Predicated region
      $region17: #{d_upblock_forward.7} parent=11 // pred_check
        %p222 = pneg %p127
      $region18: #{d_upblock_forward.7} parent=11 // pred_check_branch
        %224 = sbr.rel (%p222) target = $region20
      $region19: #{d_upblock_forward.7} parent=11 // pred_region
        _
      $region20: #{d_upblock_forward.7} parent=11 // pred_fallthru
        _
      // Predicated region
      $region21: #{d_upblock_forward.7} parent=11 // pred_check
        %p225 = pneg %p176
      $region22: #{d_upblock_forward.7} parent=11 // pred_check_branch
        %227 = sbr.rel (%p225) target = $region24
      $region23: #{d_upblock_forward.7} parent=11 // pred_region
        _
      $region24: #{d_upblock_forward.7} parent=11 // pred_fallthru
        _
    $region12: #{d_upblock_forward.7} parent=5 // pred_fallthru
      _
    %p228 = scmp.lt.s32.totalorder %s13, 4
    // Predicated region
    $region25: #{d_upblock_forward.7} parent=5 // pred_check
      %p229 = pneg %p228
    $region26: #{d_upblock_forward.7} parent=5 // pred_check_branch
      %231 = sbr.rel (%p229) target = $region28
    $region27: #{d_upblock_forward.7} parent=5 // pred_region
      // Predicated region
      $region29: #{d_upblock_forward.7} parent=27 // pred_check
        %p232 = pneg %p47
      $region30: #{d_upblock_forward.7} parent=27 // pred_check_branch
        %234 = sbr.rel (%p232) target = $region32
      $region31: #{d_upblock_forward.7} parent=27 // pred_region
        %s235 = smul.u32 4, %s21
        %s236 = ssub.s32 10, %s235
        %p237 = scmp.lt.s32.totalorder %s236, 4
        %s238 = scalar_select %p237, %s236, 4
        %s239 = smul.u32 64, %s238
        %s240 = smul.u32 %s239, 2
        %p241 = scmp.lt.s32.totalorder %s20, 1
        %s242 = scalar_select %p241, %s20, 1
        %p243 = scmp.lt.s32.totalorder %s235, 9
        %s244 = scalar_select %p243, %s235, 9
        %s245 = smul.addr %s244, 2
        %s246 = smul.addr %s242, 20
        %s247 = sadd.s32 %s245, %s246
        %s248 = smul.addr %s247, 4
        %s249 = scalar_lea.vmem %s0, %s248
        %s250 = smul.u32 4, %s21
        %s251 = ssub.s32 10, %s250
        %p252 = scmp.lt.s32.totalorder %s251, 4
        %s253 = scalar_select %p252, %s251, 4
        %s254 = smul.u32 64, %s253
        %s255 = smul.u32 %s254, 2
      $region32: #{d_upblock_forward.7} parent=27 // pred_fallthru
        _
      // Predicated region
      $region33: #{d_upblock_forward.7} parent=27 // pred_check
        %p256 = pneg %p79
      $region34: #{d_upblock_forward.7} parent=27 // pred_check_branch
        %258 = sbr.rel (%p256) target = $region36
      $region35: #{d_upblock_forward.7} parent=27 // pred_region
        %s259 = sadd.s32 %s21, 1
        %s260 = smul.u32 %s259, 2
        %s261 = smul.u32 2, %s260
        %p262 = scmp.lt.s32.totalorder %s20, 1
        %s263 = scalar_select %p262, %s20, 1
        %p264 = scmp.lt.s32.totalorder %s261, 9
        %s265 = scalar_select %p264, %s261, 9
        %s266 = smul.addr %s265, 2
        %s267 = smul.addr %s263, 20
        %s268 = sadd.s32 %s266, %s267
        %s269 = smul.addr %s268, 4
        %s270 = scalar_lea.vmem %s1, %s269
        %s271 = sadd.s32 %s21, 1
        %s272 = smul.u32 %s271, 2
        %s273 = smul.u32 2, %s272
      $region36: #{d_upblock_forward.7} parent=27 // pred_fallthru
        _
      // Predicated region
      $region37: #{d_upblock_forward.7} parent=27 // pred_check
        %p274 = pneg %p149
      $region38: #{d_upblock_forward.7} parent=27 // pred_check_branch
        %276 = sbr.rel (%p274) target = $region40
      $region39: #{d_upblock_forward.7} parent=27 // pred_region
        %s277 = smul.u32 4, %s21
        %p278 = scmp.lt.s32.totalorder %s20, 1
        %s279 = scalar_select %p278, %s20, 1
        %p280 = scmp.lt.s32.totalorder %s277, 7
        %s281 = scalar_select %p280, %s277, 7
        %s282 = smul.addr %s279, 8
        %s283 = sadd.s32 %s281, %s282
        %s284 = smul.addr %s283, 4
        %s285 = scalar_lea.vmem %s4, %s284
        %s286 = smul.u32 4, %s21
      $region40: #{d_upblock_forward.7} parent=27 // pred_fallthru
        _
    $region28: #{d_upblock_forward.7} parent=5 // pred_fallthru
      _
    %p287 = scmp.le.s32.totalorder 1, %s13
    %p288 = scmp.lt.s32.totalorder %s13, 5
    %p289 = pnand %p287, %p288
    %p290 = pneg %p289
    // Predicated region
    $region41: #{d_upblock_forward.7} parent=5 // pred_check
      _
    $region42: #{d_upblock_forward.7} parent=5 // pred_check_branch
      %292 = sbr.rel (%p289) target = $region44
    $region43: #{d_upblock_forward.7} parent=5 // pred_region
      %s293 = ssub.s32 %s13, 1
      %s294 = smul.u32 4, %s23
      %s295 = ssub.s32 10, %s294
      %p296 = scmp.lt.s32.totalorder %s295, 4
      %s297 = scalar_select %p296, %s295, 4
      %s298 = smul.u32 64, %s297
      %s299 = smul.u32 %s298, 2
      %p300 = scmp.lt.s32.totalorder %s22, 1
      %s301 = scalar_select %p300, %s22, 1
      %p302 = scmp.lt.s32.totalorder %s294, 9
      %s303 = scalar_select %p302, %s294, 9
      %s304 = smul.addr %s303, 2
      %s305 = smul.addr %s301, 20
      %s306 = sadd.s32 %s304, %s305
      %s307 = smul.addr %s306, 4
      %s308 = scalar_lea.vmem %s0, %s307
      %p309 = pneg %p53
      %p310 = pneg %p50
      %s311 = sadd.s32 %s23, 1
      %s312 = smul.u32 %s311, 2
      %s313 = smul.u32 2, %s312
      %p314 = scmp.lt.s32.totalorder %s22, 1
      %s315 = scalar_select %p314, %s22, 1
      %p316 = scmp.lt.s32.totalorder %s313, 9
      %s317 = scalar_select %p316, %s313, 9
      %s318 = smul.addr %s317, 2
      %s319 = smul.addr %s315, 20
      %s320 = sadd.s32 %s318, %s319
      %s321 = smul.addr %s320, 4
      %s322 = scalar_lea.vmem %s1, %s321
      %p323 = pneg %p85
      %p324 = pneg %p82
      %p325 = pneg %p106
      %p326 = pneg %p103
      %p327 = pneg %p127
      %p328 = pneg %p124
      %s329 = smul.u32 4, %s23
      %p330 = scmp.lt.s32.totalorder %s22, 1
      %s331 = scalar_select %p330, %s22, 1
      %p332 = scmp.lt.s32.totalorder %s329, 7
      %s333 = scalar_select %p332, %s329, 7
      %s334 = smul.addr %s331, 8
      %s335 = sadd.s32 %s333, %s334
      %s336 = smul.addr %s335, 4
      %s337 = scalar_lea.vmem %s4, %s336
      %p338 = pneg %p155
      %p339 = pneg %p152
      %p340 = pneg %p176
      %p341 = pneg %p173
      %p342 = pneg %p204
      %p343 = pneg %p201
      %s344 = smul.u32 4, %s23
      %p345 = scmp.lt.s32.totalorder %s22, 1
      %s346 = scalar_select %p345, %s22, 1
      %p347 = scmp.lt.s32.totalorder %s344, 7
      %s348 = scalar_select %p347, %s344, 7
      %s349 = smul.addr %s346, 8
      %s350 = sadd.s32 %s348, %s349
      %s351 = smul.addr %s350, 8
      %s352 = scalar_lea.vmem %s6, %s351
      %s353 = smul.u32 4, %s23
      %s354 = ssub.s32 10, %s353
      %p355 = scmp.lt.s32.totalorder %s354, 4
      %s356 = scalar_select %p355, %s354, 4
      %s357 = smul.u32 64, %s356
      %s358 = smul.u32 %s357, 2
      %p359 = scmp.lt.s32.totalorder %s22, 1
      %s360 = scalar_select %p359, %s22, 1
      %p361 = scmp.lt.s32.totalorder %s353, 9
      %s362 = scalar_select %p361, %s353, 9
      %s363 = smul.addr %s362, 2
      %s364 = smul.addr %s360, 20
      %s365 = sadd.s32 %s363, %s364
      %s366 = smul.addr %s365, 4
      %s367 = scalar_lea.vmem %s0, %s366
      %s368 = smul.u32 4, %s23
      %s369 = ssub.s32 10, %s368
      %p370 = scmp.lt.s32.totalorder %s369, 4
      %s371 = scalar_select %p370, %s369, 4
      %s372 = smul.u32 64, %s371
      %s373 = smul.u32 %s372, 2
      %s374 = sadd.s32 %s23, 1
      %s375 = smul.u32 %s374, 2
      %s376 = smul.u32 2, %s375
      %p377 = scmp.lt.s32.totalorder %s22, 1
      %s378 = scalar_select %p377, %s22, 1
      %p379 = scmp.lt.s32.totalorder %s376, 9
      %s380 = scalar_select %p379, %s376, 9
      %s381 = smul.addr %s380, 2
      %s382 = smul.addr %s378, 20
      %s383 = sadd.s32 %s381, %s382
      %s384 = smul.addr %s383, 4
      %s385 = scalar_lea.vmem %s1, %s384
      %s386 = sadd.s32 %s23, 1
      %s387 = smul.u32 %s386, 2
      %s388 = smul.u32 2, %s387
      %s389 = smul.u32 4, %s23
      %p390 = scmp.lt.s32.totalorder %s22, 1
      %s391 = scalar_select %p390, %s22, 1
      %p392 = scmp.lt.s32.totalorder %s389, 7
      %s393 = scalar_select %p392, %s389, 7
      %s394 = smul.addr %s391, 8
      %s395 = sadd.s32 %s393, %s394
      %s396 = smul.addr %s395, 4
      %s397 = scalar_lea.vmem %s4, %s396
      %s398 = smul.u32 4, %s23
      %s399 = smul.u32 4, %s23
      %p400 = scmp.lt.s32.totalorder %s22, 1
      %s401 = scalar_select %p400, %s22, 1
      %p402 = scmp.lt.s32.totalorder %s399, 7
      %s403 = scalar_select %p402, %s399, 7
      %s404 = smul.addr %s401, 8
      %s405 = sadd.s32 %s403, %s404
      %s406 = smul.addr %s405, 8
      %s407 = scalar_lea.vmem %s6, %s406
      %s408 = smul.u32 4, %s23
      %v410 = vld [vmem:[%s367] sm:$0xf]
      %v411 = vld [vmem:[%s367 + $0x4] sm:$0x1]
      %v412 = vld [vmem:[%s367 + $0x8] sm:$0xf]
      %v413 = vld [vmem:[%s367 + $0xc] sm:$0x1]
      %v414 = vld [vmem:[%s367 + $0x10] sm:$0xf]
      %v415 = vld [vmem:[%s367 + $0x14] sm:$0x1]
      %v416 = vld [vmem:[%s367 + $0x18] sm:$0xf]
      %v417 = vld [vmem:[%s367 + $0x1c] sm:$0x1]
      %vm418 = vcmask 27648
      %419 = vst.msk [vmem:[#allocation2] sm:$0xf] %vm418, %v410
      %vm420 = vcmask 24576
      %421 = vst.msk [vmem:[#allocation2 + $0x4] sm:$0x1] %vm420, %v411
      %422 = vst.msk [vmem:[#allocation2 + $0x8] sm:$0xf] %vm418, %v412
      %423 = vst.msk [vmem:[#allocation2 + $0xc] sm:$0x1] %vm420, %v413
      %424 = vst.msk [vmem:[#allocation2 + $0x10] sm:$0xf] %vm418, %v414
      %425 = vst.msk [vmem:[#allocation2 + $0x14] sm:$0x1] %vm420, %v415
      %426 = vst.msk [vmem:[#allocation2 + $0x18] sm:$0xf] %vm418, %v416
      %427 = vst.msk [vmem:[#allocation2 + $0x1c] sm:$0x1] %vm420, %v417
      %v428 = vld [vmem:[%s385] sm:$0xf]
      %v429 = vld [vmem:[%s385 + $0x4] sm:$0x1]
      %v430 = vld [vmem:[%s385 + $0x8] sm:$0xf]
      %v431 = vld [vmem:[%s385 + $0xc] sm:$0x1]
      %s432 = scalar_lea.vmem [#allocation2], 32
      %433 = vst.msk [vmem:[%s432] sm:$0xf] %vm418, %v428
      %434 = vst.msk [vmem:[%s432 + $0x4] sm:$0x1] %vm420, %v429
      %435 = vst.msk [vmem:[%s432 + $0x8] sm:$0xf] %vm418, %v430
      %436 = vst.msk [vmem:[%s432 + $0xc] sm:$0x1] %vm420, %v431
      %v437 = vld [vmem:[#allocation2] sm:$0xf]
      %v438 = vld [vmem:[#allocation2 + $0x8] sm:$0xf]
      %v439 = vld [vmem:[#allocation2 + $0x10] sm:$0xf]
      %v440 = vld [vmem:[#allocation2 + $0x18] sm:$0xf]
      %v441 = vld [vmem:[%s2] sm:$0x3]
      %v442 = vld [vmem:[#allocation2 + $0x4] sm:$0x1]
      %v443 = vld [vmem:[#allocation2 + $0xc] sm:$0x1]
      %v444 = vld [vmem:[#allocation2 + $0x14] sm:$0x1]
      %v445 = vld [vmem:[#allocation2 + $0x1c] sm:$0x1]
      %vm446 = vsmask.f32 3328
      %vm447 = vsmask.f32 7440
      %vm448 = vmor %vm446, %vm447
      %v450 = vshrl.u32 %v437, 16
      %v452 = vrot.slane %v450, 4
      %v453 = vshll.u32 %v437, 16
      %v455 = vrot.slane %v453, 5
      %v456 = vor.u32 %v452, %v455
      %v457 = vrot.slane %v456, 4
      %v459 = vshll.u32 %v442, 16
      %v461 = vrot.slane %v459, 5
      %v462 = vsel %vm448, %v457, %v461
      %v464 = vshrl.u32 %v438, 16
      %v466 = vrot.slane %v464, 4
      %v467 = vshll.u32 %v438, 16
      %v469 = vrot.slane %v467, 5
      %v470 = vor.u32 %v466, %v469
      %v471 = vrot.slane %v470, 4
      %v473 = vshll.u32 %v443, 16
      %v475 = vrot.slane %v473, 5
      %v476 = vsel %vm448, %v471, %v475
      %v478 = vshrl.u32 %v439, 16
      %v480 = vrot.slane %v478, 4
      %v481 = vshll.u32 %v439, 16
      %v483 = vrot.slane %v481, 5
      %v484 = vor.u32 %v480, %v483
      %v485 = vrot.slane %v484, 4
      %v487 = vshll.u32 %v444, 16
      %v489 = vrot.slane %v487, 5
      %v490 = vsel %vm448, %v485, %v489
      %v492 = vshrl.u32 %v440, 16
      %v494 = vrot.slane %v492, 4
      %v495 = vshll.u32 %v440, 16
      %v497 = vrot.slane %v495, 5
      %v498 = vor.u32 %v494, %v497
      %v499 = vrot.slane %v498, 4
      %v501 = vshll.u32 %v445, 16
      %v503 = vrot.slane %v501, 5
      %v504 = vsel %vm448, %v499, %v503
      %s505 = scalar_lea.vmem %s2, 2
      %v506 = vld [vmem:[%s505] sm:$0x3]
      %v507 = vunpack.c.l.b16 %v462
      %v508 = vunpack.c.l.b16 %v476
      %v509 = vunpack.c.l.b16 %v490
      %v510 = vunpack.c.l.b16 %v504
      %v511 = vpack.c.b16 %v508, %v507
      %v512 = vpack.c.b16 %v510, %v509
      %vm513 = vcmask 31744
      %v515 = vsel %vm513, %v511, 0
      %v518 = vsel %vm513, %v512, 0
      %vm520 = vcmask 1041408
      %v522 = vsel %vm520, %v506, 0
      %524 = vmatprep.subr.bf16.mxu0 0
      %525 = vmatpush1.bf16.msra.mxu0 %v522
      %526 = vmatprep.subr.bf16.mxu0 0
      %527 = vmatpush1.bf16.msra.mxu0 0
      %528 = vmatprep.subr.bf16.mxu0 0
      %529 = vmatpush1.bf16.msra.mxu0 0
      %530 = vmatprep.subr.bf16.mxu0 0
      %531 = vmatpush1.bf16.msra.mxu0 0
      %532 = vmatprep.subr.bf16.mxu0 0
      %533 = vmatpush1.bf16.msra.mxu0 0
      %534 = vmatprep.subr.bf16.mxu0 0
      %535 = vmatpush1.bf16.msra.mxu0 0
      %536 = vmatprep.subr.bf16.mxu0 0
      %537 = vmatpush1.bf16.msra.mxu0 0
      %538 = vmatprep.subr.bf16.mxu0 0
      %539 = vmatpush1.bf16.msra.mxu0 0
      %540 = vmatprep.subr.bf16.mxu0 0
      %541 = vmatpush1.bf16.msra.mxu0 0
      %542 = vmatprep.subr.bf16.mxu0 0
      %543 = vmatpush1.bf16.msra.mxu0 0
      %544 = vmatprep.subr.bf16.mxu0 0
      %545 = vmatpush1.bf16.msra.mxu0 0
      %546 = vmatprep.subr.bf16.mxu0 0
      %547 = vmatpush1.bf16.msra.mxu0 0
      %548 = vmatprep.subr.bf16.mxu0 0
      %549 = vmatpush1.bf16.msra.mxu0 0
      %550 = vmatprep.subr.bf16.mxu0 0
      %551 = vmatpush1.bf16.msra.mxu0 0
      %552 = vmatprep.subr.bf16.mxu0 0
      %553 = vmatpush1.bf16.msra.mxu0 0
      %554 = vmatprep.subr.bf16.mxu0 0
      %555 = vmatpush1.bf16.msra.mxu0 0
      %556 = vmatprep.mubr.bf16.mxu0 0
      %557 = vmatmul.mubr.bf16.gmra.mrb[0].mxu0 %v515
      %v558 = vpop.f32.mrb[0].mxu0
      %v559 = vadd.f32 0.0, %v558
      %v560 = vpop.f32.mrb[0].mxu0
      %v561 = vpop.f32.mrb[0].mxu0
      %v562 = vadd.f32 0.0, %v561
      %v563 = vpop.f32.mrb[0].mxu0
      %564 = vmatprep.mubr.bf16.mxu0 0
      %565 = vmatmul.mubr.bf16.gmra.mrb[0].mxu0 %v518
      %v566 = vpop.f32.mrb[0].mxu0
      %v567 = vadd.f32 0.0, %v566
      %v568 = vpop.f32.mrb[0].mxu0
      %v569 = vpop.f32.mrb[0].mxu0
      %v570 = vadd.f32 0.0, %v569
      %v571 = vpop.f32.mrb[0].mxu0
      %572 = vdwg.mxu0
      %v577 = vunpack.c.l.b16 %v437
      %v578 = vunpack.c.l.b16 %v438
      %v579 = vunpack.c.l.b16 %v439
      %v580 = vunpack.c.l.b16 %v440
      %v581 = vpack.c.b16 %v578, %v577
      %v582 = vpack.c.b16 %v580, %v579
      %v584 = vsel %vm513, %v581, 0
      %v587 = vsel %vm513, %v582, 0
      %v590 = vsel %vm520, %v441, 0
      %592 = vmatprep.subr.bf16.mxu0 0
      %593 = vmatpush1.bf16.msra.mxu0 %v590
      %594 = vmatprep.subr.bf16.mxu0 0
      %595 = vmatpush1.bf16.msra.mxu0 0
      %596 = vmatprep.subr.bf16.mxu0 0
      %597 = vmatpush1.bf16.msra.mxu0 0
      %598 = vmatprep.subr.bf16.mxu0 0
      %599 = vmatpush1.bf16.msra.mxu0 0
      %600 = vmatprep.subr.bf16.mxu0 0
      %601 = vmatpush1.bf16.msra.mxu0 0
      %602 = vmatprep.subr.bf16.mxu0 0
      %603 = vmatpush1.bf16.msra.mxu0 0
      %604 = vmatprep.subr.bf16.mxu0 0
      %605 = vmatpush1.bf16.msra.mxu0 0
      %606 = vmatprep.subr.bf16.mxu0 0
      %607 = vmatpush1.bf16.msra.mxu0 0
      %608 = vmatprep.subr.bf16.mxu0 0
      %609 = vmatpush1.bf16.msra.mxu0 0
      %610 = vmatprep.subr.bf16.mxu0 0
      %611 = vmatpush1.bf16.msra.mxu0 0
      %612 = vmatprep.subr.bf16.mxu0 0
      %613 = vmatpush1.bf16.msra.mxu0 0
      %614 = vmatprep.subr.bf16.mxu0 0
      %615 = vmatpush1.bf16.msra.mxu0 0
      %616 = vmatprep.subr.bf16.mxu0 0
      %617 = vmatpush1.bf16.msra.mxu0 0
      %618 = vmatprep.subr.bf16.mxu0 0
      %619 = vmatpush1.bf16.msra.mxu0 0
      %620 = vmatprep.subr.bf16.mxu0 0
      %621 = vmatpush1.bf16.msra.mxu0 0
      %622 = vmatprep.subr.bf16.mxu0 0
      %623 = vmatpush1.bf16.msra.mxu0 0
      %624 = vmatprep.mubr.bf16.mxu0 0
      %625 = vmatmul.mubr.bf16.gmra.mrb[0].mxu0 %v584
      %v626 = vpop.f32.mrb[0].mxu0
      %v627 = vadd.f32 %v559, %v626
      %v628 = vpop.f32.mrb[0].mxu0
      %v629 = vpop.f32.mrb[0].mxu0
      %v630 = vadd.f32 %v562, %v629
      %v631 = vpop.f32.mrb[0].mxu0
      %632 = vmatprep.mubr.bf16.mxu0 0
      %633 = vmatmul.mubr.bf16.gmra.mrb[0].mxu0 %v587
      %v634 = vpop.f32.mrb[0].mxu0
      %v635 = vadd.f32 %v567, %v634
      %v636 = vpop.f32.mrb[0].mxu0
      %v637 = vpop.f32.mrb[0].mxu0
      %v638 = vadd.f32 %v570, %v637
      %v639 = vpop.f32.mrb[0].mxu0
      %640 = vdwg.mxu0
      %v641 = vld [vmem:[#allocation2] sm:$0xe]
      %v642 = vld [vmem:[#allocation2 + $0x8] sm:$0xe]
      %v643 = vld [vmem:[#allocation2 + $0x10] sm:$0xe]
      %v644 = vld [vmem:[#allocation2 + $0x18] sm:$0xe]
      %vm653 = vcmask 1042432
      %vm654 = vcmask 1046532
      %vm655 = vmor %vm653, %vm654
      %v656 = vrot.slane %v641, 5
      %v657 = vrot.slane %v656, 4
      %v658 = vrot.slane %v442, 5
      %v659 = vsel %vm655, %v657, %v658
      %v660 = vrot.slane %v642, 5
      %v661 = vrot.slane %v660, 4
      %v662 = vrot.slane %v443, 5
      %v663 = vsel %vm655, %v661, %v662
      %v664 = vrot.slane %v643, 5
      %v665 = vrot.slane %v664, 4
      %v666 = vrot.slane %v444, 5
      %v667 = vsel %vm655, %v665, %v666
      %v668 = vrot.slane %v644, 5
      %v669 = vrot.slane %v668, 4
      %v670 = vrot.slane %v445, 5
      %v671 = vsel %vm655, %v669, %v670
      %s672 = scalar_lea.vmem %s2, 4
      %v673 = vld [vmem:[%s672] sm:$0x3]
      %v674 = vunpack.c.l.b16 %v659
      %v675 = vunpack.c.l.b16 %v663
      %v676 = vunpack.c.l.b16 %v667
      %v677 = vunpack.c.l.b16 %v671
      %v678 = vpack.c.b16 %v675, %v674
      %v679 = vpack.c.b16 %v677, %v676
      %v681 = vsel %vm513, %v678, 0
      %v684 = vsel %vm513, %v679, 0
      %v687 = vsel %vm520, %v673, 0
      %689 = vmatprep.subr.bf16.mxu0 0
      %690 = vmatpush1.bf16.msra.mxu0 %v687
      %691 = vmatprep.subr.bf16.mxu0 0
      %692 = vmatpush1.bf16.msra.mxu0 0
      %693 = vmatprep.subr.bf16.mxu0 0
      %694 = vmatpush1.bf16.msra.mxu0 0
      %695 = vmatprep.subr.bf16.mxu0 0
      %696 = vmatpush1.bf16.msra.mxu0 0
      %697 = vmatprep.subr.bf16.mxu0 0
      %698 = vmatpush1.bf16.msra.mxu0 0
      %699 = vmatprep.subr.bf16.mxu0 0
      %700 = vmatpush1.bf16.msra.mxu0 0
      %701 = vmatprep.subr.bf16.mxu0 0
      %702 = vmatpush1.bf16.msra.mxu0 0
      %703 = vmatprep.subr.bf16.mxu0 0
      %704 = vmatpush1.bf16.msra.mxu0 0
      %705 = vmatprep.subr.bf16.mxu0 0
      %706 = vmatpush1.bf16.msra.mxu0 0
      %707 = vmatprep.subr.bf16.mxu0 0
      %708 = vmatpush1.bf16.msra.mxu0 0
      %709 = vmatprep.subr.bf16.mxu0 0
      %710 = vmatpush1.bf16.msra.mxu0 0
      %711 = vmatprep.subr.bf16.mxu0 0
      %712 = vmatpush1.bf16.msra.mxu0 0
      %713 = vmatprep.subr.bf16.mxu0 0
      %714 = vmatpush1.bf16.msra.mxu0 0
      %715 = vmatprep.subr.bf16.mxu0 0
      %716 = vmatpush1.bf16.msra.mxu0 0
      %717 = vmatprep.subr.bf16.mxu0 0
      %718 = vmatpush1.bf16.msra.mxu0 0
      %719 = vmatprep.subr.bf16.mxu0 0
      %720 = vmatpush1.bf16.msra.mxu0 0
      %721 = vmatprep.mubr.bf16.mxu0 0
      %722 = vmatmul.mubr.bf16.gmra.mrb[0].mxu0 %v681
      %v723 = vpop.f32.mrb[0].mxu0
      %v724 = vadd.f32 0.0, %v723
      %v725 = vpop.f32.mrb[0].mxu0
      %v726 = vpop.f32.mrb[0].mxu0
      %v727 = vadd.f32 0.0, %v726
      %v728 = vpop.f32.mrb[0].mxu0
      %729 = vmatprep.mubr.bf16.mxu0 0
      %730 = vmatmul.mubr.bf16.gmra.mrb[0].mxu0 %v684
      %v731 = vpop.f32.mrb[0].mxu0
      %v732 = vadd.f32 0.0, %v731
      %v733 = vpop.f32.mrb[0].mxu0
      %v734 = vpop.f32.mrb[0].mxu0
      %v735 = vadd.f32 0.0, %v734
      %v736 = vpop.f32.mrb[0].mxu0
      %737 = vdwg.mxu0
      %v738 = vadd.f32 %v627, %v724
      %v739 = vadd.f32 %v630, %v727
      %v740 = vadd.f32 %v635, %v732
      %v741 = vadd.f32 %v638, %v735
      %s742 = scalar_lea.vmem [#allocation2], 8
      %v743 = vld [vmem:[%s742] sm:$0xf]
      %v744 = vld [vmem:[%s742 + $0x8] sm:$0xf]
      %v745 = vld [vmem:[%s742 + $0x10] sm:$0xf]
      %v746 = vld [vmem:[%s742 + $0x18] sm:$0xf]
      %s747 = scalar_lea.vmem %s2, 6
      %v748 = vld [vmem:[%s747] sm:$0x3]
      %v753 = vunpack.c.l.b16 %v743
      %v754 = vunpack.c.l.b16 %v744
      %v755 = vunpack.c.l.b16 %v745
      %v756 = vunpack.c.l.b16 %v746
      %v757 = vpack.c.b16 %v754, %v753
      %v758 = vpack.c.b16 %v756, %v755
      %v760 = vsel %vm513, %v757, 0
      %v763 = vsel %vm513, %v758, 0
      %v766 = vsel %vm520, %v748, 0
      %768 = vmatprep.subr.bf16.mxu0 0
      %769 = vmatpush1.bf16.msra.mxu0 %v766
      %770 = vmatprep.subr.bf16.mxu0 0
      %771 = vmatpush1.bf16.msra.mxu0 0
      %772 = vmatprep.subr.bf16.mxu0 0
      %773 = vmatpush1.bf16.msra.mxu0 0
      %774 = vmatprep.subr.bf16.mxu0 0
      %775 = vmatpush1.bf16.msra.mxu0 0
      %776 = vmatprep.subr.bf16.mxu0 0
      %777 = vmatpush1.bf16.msra.mxu0 0
      %778 = vmatprep.subr.bf16.mxu0 0
      %779 = vmatpush1.bf16.msra.mxu0 0
      %780 = vmatprep.subr.bf16.mxu0 0
      %781 = vmatpush1.bf16.msra.mxu0 0
      %782 = vmatprep.subr.bf16.mxu0 0
      %783 = vmatpush1.bf16.msra.mxu0 0
      %784 = vmatprep.subr.bf16.mxu0 0
      %785 = vmatpush1.bf16.msra.mxu0 0
      %786 = vmatprep.subr.bf16.mxu0 0
      %787 = vmatpush1.bf16.msra.mxu0 0
      %788 = vmatprep.subr.bf16.mxu0 0
      %789 = vmatpush1.bf16.msra.mxu0 0
      %790 = vmatprep.subr.bf16.mxu0 0
      %791 = vmatpush1.bf16.msra.mxu0 0
      %792 = vmatprep.subr.bf16.mxu0 0
      %793 = vmatpush1.bf16.msra.mxu0 0
      %794 = vmatprep.subr.bf16.mxu0 0
      %795 = vmatpush1.bf16.msra.mxu0 0
      %796 = vmatprep.subr.bf16.mxu0 0
      %797 = vmatpush1.bf16.msra.mxu0 0
      %798 = vmatprep.subr.bf16.mxu0 0
      %799 = vmatpush1.bf16.msra.mxu0 0
      %800 = vmatprep.mubr.bf16.mxu0 0
      %801 = vmatmul.mubr.bf16.gmra.mrb[0].mxu0 %v760
      %v802 = vpop.f32.mrb[0].mxu0
      %v803 = vadd.f32 0.0, %v802
      %v804 = vpop.f32.mrb[0].mxu0
      %v805 = vpop.f32.mrb[0].mxu0
      %v806 = vadd.f32 0.0, %v805
      %v807 = vpop.f32.mrb[0].mxu0
      %808 = vmatprep.mubr.bf16.mxu0 0
      %809 = vmatmul.mubr.bf16.gmra.mrb[0].mxu0 %v763
      %v810 = vpop.f32.mrb[0].mxu0
      %v811 = vadd.f32 0.0, %v810
      %v812 = vpop.f32.mrb[0].mxu0
      %v813 = vpop.f32.mrb[0].mxu0
      %v814 = vadd.f32 0.0, %v813
      %v815 = vpop.f32.mrb[0].mxu0
      %816 = vdwg.mxu0
      %v817 = vadd.f32 %v738, %v803
      %v818 = vadd.f32 %v739, %v806
      %v819 = vadd.f32 %v740, %v811
      %v820 = vadd.f32 %v741, %v814
      %v821 = vld [vmem:[%s742] sm:$0xf]
      %v822 = vld [vmem:[%s742 + $0x4] sm:$0x1]
      %v823 = vld [vmem:[%s742 + $0x8] sm:$0xf]
      %v824 = vld [vmem:[%s742 + $0xc] sm:$0x1]
      %v825 = vld [vmem:[%s742 + $0x10] sm:$0xf]
      %v826 = vld [vmem:[%s742 + $0x14] sm:$0x1]
      %v827 = vld [vmem:[%s742 + $0x18] sm:$0xf]
      %v828 = vld [vmem:[%s742 + $0x1c] sm:$0x1]
      %v830 = vshrl.u32 %v821, 16
      %v832 = vrot.slane %v830, 4
      %v833 = vshll.u32 %v821, 16
      %v835 = vrot.slane %v833, 5
      %v836 = vor.u32 %v832, %v835
      %v837 = vrot.slane %v836, 4
      %v839 = vshll.u32 %v822, 16
      %v841 = vrot.slane %v839, 5
      %v842 = vsel %vm448, %v837, %v841
      %v844 = vshrl.u32 %v823, 16
      %v846 = vrot.slane %v844, 4
      %v847 = vshll.u32 %v823, 16
      %v849 = vrot.slane %v847, 5
      %v850 = vor.u32 %v846, %v849
      %v851 = vrot.slane %v850, 4
      %v853 = vshll.u32 %v824, 16
      %v855 = vrot.slane %v853, 5
      %v856 = vsel %vm448, %v851, %v855
      %v858 = vshrl.u32 %v825, 16
      %v860 = vrot.slane %v858, 4
      %v861 = vshll.u32 %v825, 16
      %v863 = vrot.slane %v861, 5
      %v864 = vor.u32 %v860, %v863
      %v865 = vrot.slane %v864, 4
      %v867 = vshll.u32 %v826, 16
      %v869 = vrot.slane %v867, 5
      %v870 = vsel %vm448, %v865, %v869
      %v872 = vshrl.u32 %v827, 16
      %v874 = vrot.slane %v872, 4
      %v875 = vshll.u32 %v827, 16
      %v877 = vrot.slane %v875, 5
      %v878 = vor.u32 %v874, %v877
      %v879 = vrot.slane %v878, 4
      %v881 = vshll.u32 %v828, 16
      %v883 = vrot.slane %v881, 5
      %v884 = vsel %vm448, %v879, %v883
      %s885 = scalar_lea.vmem %s2, 8
      %v886 = vld [vmem:[%s885] sm:$0x3]
      %v887 = vunpack.c.l.b16 %v842
      %v888 = vunpack.c.l.b16 %v856
      %v889 = vunpack.c.l.b16 %v870
      %v890 = vunpack.c.l.b16 %v884
      %v891 = vpack.c.b16 %v888, %v887
      %v892 = vpack.c.b16 %v890, %v889
      %v894 = vsel %vm513, %v891, 0
      %v897 = vsel %vm513, %v892, 0
      %v900 = vsel %vm520, %v886, 0
      %902 = vmatprep.subr.bf16.mxu0 0
      %903 = vmatpush1.bf16.msra.mxu0 %v900
      %904 = vmatprep.subr.bf16.mxu0 0
      %905 = vmatpush1.bf16.msra.mxu0 0
      %906 = vmatprep.subr.bf16.mxu0 0
      %907 = vmatpush1.bf16.msra.mxu0 0
      %908 = vmatprep.subr.bf16.mxu0 0
      %909 = vmatpush1.bf16.msra.mxu0 0
      %910 = vmatprep.subr.bf16.mxu0 0
      %911 = vmatpush1.bf16.msra.mxu0 0
      %912 = vmatprep.subr.bf16.mxu0 0
      %913 = vmatpush1.bf16.msra.mxu0 0
      %914 = vmatprep.subr.bf16.mxu0 0
      %915 = vmatpush1.bf16.msra.mxu0 0
      %916 = vmatprep.subr.bf16.mxu0 0
      %917 = vmatpush1.bf16.msra.mxu0 0
      %918 = vmatprep.subr.bf16.mxu0 0
      %919 = vmatpush1.bf16.msra.mxu0 0
      %920 = vmatprep.subr.bf16.mxu0 0
      %921 = vmatpush1.bf16.msra.mxu0 0
      %922 = vmatprep.subr.bf16.mxu0 0
      %923 = vmatpush1.bf16.msra.mxu0 0
      %924 = vmatprep.subr.bf16.mxu0 0
      %925 = vmatpush1.bf16.msra.mxu0 0
      %926 = vmatprep.subr.bf16.mxu0 0
      %927 = vmatpush1.bf16.msra.mxu0 0
      %928 = vmatprep.subr.bf16.mxu0 0
      %929 = vmatpush1.bf16.msra.mxu0 0
      %930 = vmatprep.subr.bf16.mxu0 0
      %931 = vmatpush1.bf16.msra.mxu0 0
      %932 = vmatprep.subr.bf16.mxu0 0
      %933 = vmatpush1.bf16.msra.mxu0 0
      %934 = vmatprep.mubr.bf16.mxu0 0
      %935 = vmatmul.mubr.bf16.gmra.mrb[0].mxu0 %v894
      %v936 = vpop.f32.mrb[0].mxu0
      %v937 = vadd.f32 0.0, %v936
      %v938 = vpop.f32.mrb[0].mxu0
      %v939 = vpop.f32.mrb[0].mxu0
      %v940 = vadd.f32 0.0, %v939
      %v941 = vpop.f32.mrb[0].mxu0
      %942 = vmatprep.mubr.bf16.mxu0 0
      %943 = vmatmul.mubr.bf16.gmra.mrb[0].mxu0 %v897
      %v944 = vpop.f32.mrb[0].mxu0
      %v945 = vadd.f32 0.0, %v944
      %v946 = vpop.f32.mrb[0].mxu0
      %v947 = vpop.f32.mrb[0].mxu0
      %v948 = vadd.f32 0.0, %v947
      %v949 = vpop.f32.mrb[0].mxu0
      %950 = vdwg.mxu0
      %v951 = vadd.f32 %v817, %v937
      %v952 = vadd.f32 %v818, %v940
      %v953 = vadd.f32 %v819, %v945
      %v954 = vadd.f32 %v820, %v948
      %v955 = vld [vmem:[%s742] sm:$0xe]
      %v956 = vld [vmem:[%s742 + $0x8] sm:$0xe]
      %v957 = vld [vmem:[%s742 + $0x10] sm:$0xe]
      %v958 = vld [vmem:[%s742 + $0x18] sm:$0xe]
      %v967 = vrot.slane %v955, 5
      %v968 = vrot.slane %v967, 4
      %v969 = vrot.slane %v822, 5
      %v970 = vsel %vm655, %v968, %v969
      %v971 = vrot.slane %v956, 5
      %v972 = vrot.slane %v971, 4
      %v973 = vrot.slane %v824, 5
      %v974 = vsel %vm655, %v972, %v973
      %v975 = vrot.slane %v957, 5
      %v976 = vrot.slane %v975, 4
      %v977 = vrot.slane %v826, 5
      %v978 = vsel %vm655, %v976, %v977
      %v979 = vrot.slane %v958, 5
      %v980 = vrot.slane %v979, 4
      %v981 = vrot.slane %v828, 5
      %v982 = vsel %vm655, %v980, %v981
      %s983 = scalar_lea.vmem %s2, 10
      %v984 = vld [vmem:[%s983] sm:$0x3]
      %v985 = vunpack.c.l.b16 %v970
      %v986 = vunpack.c.l.b16 %v974
      %v987 = vunpack.c.l.b16 %v978
      %v988 = vunpack.c.l.b16 %v982
      %v989 = vpack.c.b16 %v986, %v985
      %v990 = vpack.c.b16 %v988, %v987
      %v992 = vsel %vm513, %v989, 0
      %v995 = vsel %vm513, %v990, 0
      %v998 = vsel %vm520, %v984, 0
      %1000 = vmatprep.subr.bf16.mxu0 0
      %1001 = vmatpush1.bf16.msra.mxu0 %v998
      %1002 = vmatprep.subr.bf16.mxu0 0
      %1003 = vmatpush1.bf16.msra.mxu0 0
      %1004 = vmatprep.subr.bf16.mxu0 0
      %1005 = vmatpush1.bf16.msra.mxu0 0
      %1006 = vmatprep.subr.bf16.mxu0 0
      %1007 = vmatpush1.bf16.msra.mxu0 0
      %1008 = vmatprep.subr.bf16.mxu0 0
      %1009 = vmatpush1.bf16.msra.mxu0 0
      %1010 = vmatprep.subr.bf16.mxu0 0
      %1011 = vmatpush1.bf16.msra.mxu0 0
      %1012 = vmatprep.subr.bf16.mxu0 0
      %1013 = vmatpush1.bf16.msra.mxu0 0
      %1014 = vmatprep.subr.bf16.mxu0 0
      %1015 = vmatpush1.bf16.msra.mxu0 0
      %1016 = vmatprep.subr.bf16.mxu0 0
      %1017 = vmatpush1.bf16.msra.mxu0 0
      %1018 = vmatprep.subr.bf16.mxu0 0
      %1019 = vmatpush1.bf16.msra.mxu0 0
      %1020 = vmatprep.subr.bf16.mxu0 0
      %1021 = vmatpush1.bf16.msra.mxu0 0
      %1022 = vmatprep.subr.bf16.mxu0 0
      %1023 = vmatpush1.bf16.msra.mxu0 0
      %1024 = vmatprep.subr.bf16.mxu0 0
      %1025 = vmatpush1.bf16.msra.mxu0 0
      %1026 = vmatprep.subr.bf16.mxu0 0
      %1027 = vmatpush1.bf16.msra.mxu0 0
      %1028 = vmatprep.subr.bf16.mxu0 0
      %1029 = vmatpush1.bf16.msra.mxu0 0
      %1030 = vmatprep.subr.bf16.mxu0 0
      %1031 = vmatpush1.bf16.msra.mxu0 0
      %1032 = vmatprep.mubr.bf16.mxu0 0
      %1033 = vmatmul.mubr.bf16.gmra.mrb[0].mxu0 %v992
      %v1034 = vpop.f32.mrb[0].mxu0
      %v1035 = vadd.f32 0.0, %v1034
      %v1036 = vpop.f32.mrb[0].mxu0
      %v1037 = vpop.f32.mrb[0].mxu0
      %v1038 = vadd.f32 0.0, %v1037
      %v1039 = vpop.f32.mrb[0].mxu0
      %1040 = vmatprep.mubr.bf16.mxu0 0
      %1041 = vmatmul.mubr.bf16.gmra.mrb[0].mxu0 %v995
      %v1042 = vpop.f32.mrb[0].mxu0
      %v1043 = vadd.f32 0.0, %v1042
      %v1044 = vpop.f32.mrb[0].mxu0
      %v1045 = vpop.f32.mrb[0].mxu0
      %v1046 = vadd.f32 0.0, %v1045
      %v1047 = vpop.f32.mrb[0].mxu0
      %1048 = vdwg.mxu0
      %v1049 = vadd.f32 %v951, %v1035
      %v1050 = vadd.f32 %v952, %v1038
      %v1051 = vadd.f32 %v953, %v1043
      %v1052 = vadd.f32 %v954, %v1046
      %s1053 = scalar_lea.vmem [#allocation2], 16
      %v1054 = vld [vmem:[%s1053] sm:$0xf]
      %v1055 = vld [vmem:[%s1053 + $0x8] sm:$0xf]
      %v1056 = vld [vmem:[%s1053 + $0x10] sm:$0xf]
      %v1057 = vld [vmem:[%s1053 + $0x18] sm:$0xf]
      %s1058 = scalar_lea.vmem %s2, 12
      %v1059 = vld [vmem:[%s1058] sm:$0x3]
      %v1064 = vunpack.c.l.b16 %v1054
      %v1065 = vunpack.c.l.b16 %v1055
      %v1066 = vunpack.c.l.b16 %v1056
      %v1067 = vunpack.c.l.b16 %v1057
      %v1068 = vpack.c.b16 %v1065, %v1064
      %v1069 = vpack.c.b16 %v1067, %v1066
      %v1071 = vsel %vm513, %v1068, 0
      %v1074 = vsel %vm513, %v1069, 0
      %v1077 = vsel %vm520, %v1059, 0
      %1079 = vmatprep.subr.bf16.mxu0 0
      %1080 = vmatpush1.bf16.msra.mxu0 %v1077
      %1081 = vmatprep.subr.bf16.mxu0 0
      %1082 = vmatpush1.bf16.msra.mxu0 0
      %1083 = vmatprep.subr.bf16.mxu0 0
      %1084 = vmatpush1.bf16.msra.mxu0 0
      %1085 = vmatprep.subr.bf16.mxu0 0
      %1086 = vmatpush1.bf16.msra.mxu0 0
      %1087 = vmatprep.subr.bf16.mxu0 0
      %1088 = vmatpush1.bf16.msra.mxu0 0
      %1089 = vmatprep.subr.bf16.mxu0 0
      %1090 = vmatpush1.bf16.msra.mxu0 0
      %1091 = vmatprep.subr.bf16.mxu0 0
      %1092 = vmatpush1.bf16.msra.mxu0 0
      %1093 = vmatprep.subr.bf16.mxu0 0
      %1094 = vmatpush1.bf16.msra.mxu0 0
      %1095 = vmatprep.subr.bf16.mxu0 0
      %1096 = vmatpush1.bf16.msra.mxu0 0
      %1097 = vmatprep.subr.bf16.mxu0 0
      %1098 = vmatpush1.bf16.msra.mxu0 0
      %1099 = vmatprep.subr.bf16.mxu0 0
      %1100 = vmatpush1.bf16.msra.mxu0 0
      %1101 = vmatprep.subr.bf16.mxu0 0
      %1102 = vmatpush1.bf16.msra.mxu0 0
      %1103 = vmatprep.subr.bf16.mxu0 0
      %1104 = vmatpush1.bf16.msra.mxu0 0
      %1105 = vmatprep.subr.bf16.mxu0 0
      %1106 = vmatpush1.bf16.msra.mxu0 0
      %1107 = vmatprep.subr.bf16.mxu0 0
      %1108 = vmatpush1.bf16.msra.mxu0 0
      %1109 = vmatprep.subr.bf16.mxu0 0
      %1110 = vmatpush1.bf16.msra.mxu0 0
      %1111 = vmatprep.mubr.bf16.mxu0 0
      %1112 = vmatmul.mubr.bf16.gmra.mrb[0].mxu0 %v1071
      %v1113 = vpop.f32.mrb[0].mxu0
      %v1114 = vadd.f32 0.0, %v1113
      %v1115 = vpop.f32.mrb[0].mxu0
      %v1116 = vpop.f32.mrb[0].mxu0
      %v1117 = vadd.f32 0.0, %v1116
      %v1118 = vpop.f32.mrb[0].mxu0
      %1119 = vmatprep.mubr.bf16.mxu0 0
      %1120 = vmatmul.mubr.bf16.gmra.mrb[0].mxu0 %v1074
      %v1121 = vpop.f32.mrb[0].mxu0
      %v1122 = vadd.f32 0.0, %v1121
      %v1123 = vpop.f32.mrb[0].mxu0
      %v1124 = vpop.f32.mrb[0].mxu0
      %v1125 = vadd.f32 0.0, %v1124
      %v1126 = vpop.f32.mrb[0].mxu0
      %1127 = vdwg.mxu0
      %v1128 = vadd.f32 %v1049, %v1114
      %v1129 = vadd.f32 %v1050, %v1117
      %v1130 = vadd.f32 %v1051, %v1122
      %v1131 = vadd.f32 %v1052, %v1125
      %v1132 = vld [vmem:[%s1053] sm:$0xf]
      %v1133 = vld [vmem:[%s1053 + $0x4] sm:$0x1]
      %v1134 = vld [vmem:[%s1053 + $0x8] sm:$0xf]
      %v1135 = vld [vmem:[%s1053 + $0xc] sm:$0x1]
      %v1136 = vld [vmem:[%s1053 + $0x10] sm:$0xf]
      %v1137 = vld [vmem:[%s1053 + $0x14] sm:$0x1]
      %v1138 = vld [vmem:[%s1053 + $0x18] sm:$0xf]
      %v1139 = vld [vmem:[%s1053 + $0x1c] sm:$0x1]
      %v1141 = vshrl.u32 %v1132, 16
      %v1143 = vrot.slane %v1141, 4
      %v1144 = vshll.u32 %v1132, 16
      %v1146 = vrot.slane %v1144, 5
      %v1147 = vor.u32 %v1143, %v1146
      %v1148 = vrot.slane %v1147, 4
      %v1150 = vshll.u32 %v1133, 16
      %v1152 = vrot.slane %v1150, 5
      %v1153 = vsel %vm448, %v1148, %v1152
      %v1155 = vshrl.u32 %v1134, 16
      %v1157 = vrot.slane %v1155, 4
      %v1158 = vshll.u32 %v1134, 16
      %v1160 = vrot.slane %v1158, 5
      %v1161 = vor.u32 %v1157, %v1160
      %v1162 = vrot.slane %v1161, 4
      %v1164 = vshll.u32 %v1135, 16
      %v1166 = vrot.slane %v1164, 5
      %v1167 = vsel %vm448, %v1162, %v1166
      %v1169 = vshrl.u32 %v1136, 16
      %v1171 = vrot.slane %v1169, 4
      %v1172 = vshll.u32 %v1136, 16
      %v1174 = vrot.slane %v1172, 5
      %v1175 = vor.u32 %v1171, %v1174
      %v1176 = vrot.slane %v1175, 4
      %v1178 = vshll.u32 %v1137, 16
      %v1180 = vrot.slane %v1178, 5
      %v1181 = vsel %vm448, %v1176, %v1180
      %v1183 = vshrl.u32 %v1138, 16
      %v1185 = vrot.slane %v1183, 4
      %v1186 = vshll.u32 %v1138, 16
      %v1188 = vrot.slane %v1186, 5
      %v1189 = vor.u32 %v1185, %v1188
      %v1190 = vrot.slane %v1189, 4
      %v1192 = vshll.u32 %v1139, 16
      %v1194 = vrot.slane %v1192, 5
      %v1195 = vsel %vm448, %v1190, %v1194
      %s1196 = scalar_lea.vmem %s2, 14
      %v1197 = vld [vmem:[%s1196] sm:$0x3]
      %v1198 = vunpack.c.l.b16 %v1153
      %v1199 = vunpack.c.l.b16 %v1167
      %v1200 = vunpack.c.l.b16 %v1181
      %v1201 = vunpack.c.l.b16 %v1195
      %v1202 = vpack.c.b16 %v1199, %v1198
      %v1203 = vpack.c.b16 %v1201, %v1200
      %v1205 = vsel %vm513, %v1202, 0
      %v1208 = vsel %vm513, %v1203, 0
      %v1211 = vsel %vm520, %v1197, 0
      %1213 = vmatprep.subr.bf16.mxu0 0
      %1214 = vmatpush1.bf16.msra.mxu0 %v1211
      %1215 = vmatprep.subr.bf16.mxu0 0
      %1216 = vmatpush1.bf16.msra.mxu0 0
      %1217 = vmatprep.subr.bf16.mxu0 0
      %1218 = vmatpush1.bf16.msra.mxu0 0
      %1219 = vmatprep.subr.bf16.mxu0 0
      %1220 = vmatpush1.bf16.msra.mxu0 0
      %1221 = vmatprep.subr.bf16.mxu0 0
      %1222 = vmatpush1.bf16.msra.mxu0 0
      %1223 = vmatprep.subr.bf16.mxu0 0
      %1224 = vmatpush1.bf16.msra.mxu0 0
      %1225 = vmatprep.subr.bf16.mxu0 0
      %1226 = vmatpush1.bf16.msra.mxu0 0
      %1227 = vmatprep.subr.bf16.mxu0 0
      %1228 = vmatpush1.bf16.msra.mxu0 0
      %1229 = vmatprep.subr.bf16.mxu0 0
      %1230 = vmatpush1.bf16.msra.mxu0 0
      %1231 = vmatprep.subr.bf16.mxu0 0
      %1232 = vmatpush1.bf16.msra.mxu0 0
      %1233 = vmatprep.subr.bf16.mxu0 0
      %1234 = vmatpush1.bf16.msra.mxu0 0
      %1235 = vmatprep.subr.bf16.mxu0 0
      %1236 = vmatpush1.bf16.msra.mxu0 0
      %1237 = vmatprep.subr.bf16.mxu0 0
      %1238 = vmatpush1.bf16.msra.mxu0 0
      %1239 = vmatprep.subr.bf16.mxu0 0
      %1240 = vmatpush1.bf16.msra.mxu0 0
      %1241 = vmatprep.subr.bf16.mxu0 0
      %1242 = vmatpush1.bf16.msra.mxu0 0
      %1243 = vmatprep.subr.bf16.mxu0 0
      %1244 = vmatpush1.bf16.msra.mxu0 0
      %1245 = vmatprep.mubr.bf16.mxu0 0
      %1246 = vmatmul.mubr.bf16.gmra.mrb[0].mxu0 %v1205
      %v1247 = vpop.f32.mrb[0].mxu0
      %v1248 = vadd.f32 0.0, %v1247
      %v1249 = vpop.f32.mrb[0].mxu0
      %v1250 = vpop.f32.mrb[0].mxu0
      %v1251 = vadd.f32 0.0, %v1250
      %v1252 = vpop.f32.mrb[0].mxu0
      %1253 = vmatprep.mubr.bf16.mxu0 0
      %1254 = vmatmul.mubr.bf16.gmra.mrb[0].mxu0 %v1208
      %v1255 = vpop.f32.mrb[0].mxu0
      %v1256 = vadd.f32 0.0, %v1255
      %v1257 = vpop.f32.mrb[0].mxu0
      %v1258 = vpop.f32.mrb[0].mxu0
      %v1259 = vadd.f32 0.0, %v1258
      %v1260 = vpop.f32.mrb[0].mxu0
      %1261 = vdwg.mxu0
      %v1262 = vadd.f32 %v1128, %v1248
      %v1263 = vadd.f32 %v1129, %v1251
      %v1264 = vadd.f32 %v1130, %v1256
      %v1265 = vadd.f32 %v1131, %v1259
      %v1266 = vld [vmem:[%s1053] sm:$0xe]
      %v1267 = vld [vmem:[%s1053 + $0x8] sm:$0xe]
      %v1268 = vld [vmem:[%s1053 + $0x10] sm:$0xe]
      %v1269 = vld [vmem:[%s1053 + $0x18] sm:$0xe]
      %v1278 = vrot.slane %v1266, 5
      %v1279 = vrot.slane %v1278, 4
      %v1280 = vrot.slane %v1133, 5
      %v1281 = vsel %vm655, %v1279, %v1280
      %v1282 = vrot.slane %v1267, 5
      %v1283 = vrot.slane %v1282, 4
      %v1284 = vrot.slane %v1135, 5
      %v1285 = vsel %vm655, %v1283, %v1284
      %v1286 = vrot.slane %v1268, 5
      %v1287 = vrot.slane %v1286, 4
      %v1288 = vrot.slane %v1137, 5
      %v1289 = vsel %vm655, %v1287, %v1288
      %v1290 = vrot.slane %v1269, 5
      %v1291 = vrot.slane %v1290, 4
      %v1292 = vrot.slane %v1139, 5
      %v1293 = vsel %vm655, %v1291, %v1292
      %s1294 = scalar_lea.vmem %s2, 16
      %v1295 = vld [vmem:[%s1294] sm:$0x3]
      %v1296 = vunpack.c.l.b16 %v1281
      %v1297 = vunpack.c.l.b16 %v1285
      %v1298 = vunpack.c.l.b16 %v1289
      %v1299 = vunpack.c.l.b16 %v1293
      %v1300 = vpack.c.b16 %v1297, %v1296
      %v1301 = vpack.c.b16 %v1299, %v1298
      %v1303 = vsel %vm513, %v1300, 0
      %v1306 = vsel %vm513, %v1301, 0
      %v1309 = vsel %vm520, %v1295, 0
      %1311 = vmatprep.subr.bf16.mxu0 0
      %1312 = vmatpush1.bf16.msra.mxu0 %v1309
      %1313 = vmatprep.subr.bf16.mxu0 0
      %1314 = vmatpush1.bf16.msra.mxu0 0
      %1315 = vmatprep.subr.bf16.mxu0 0
      %1316 = vmatpush1.bf16.msra.mxu0 0
      %1317 = vmatprep.subr.bf16.mxu0 0
      %1318 = vmatpush1.bf16.msra.mxu0 0
      %1319 = vmatprep.subr.bf16.mxu0 0
      %1320 = vmatpush1.bf16.msra.mxu0 0
      %1321 = vmatprep.subr.bf16.mxu0 0
      %1322 = vmatpush1.bf16.msra.mxu0 0
      %1323 = vmatprep.subr.bf16.mxu0 0
      %1324 = vmatpush1.bf16.msra.mxu0 0
      %1325 = vmatprep.subr.bf16.mxu0 0
      %1326 = vmatpush1.bf16.msra.mxu0 0
      %1327 = vmatprep.subr.bf16.mxu0 0
      %1328 = vmatpush1.bf16.msra.mxu0 0
      %1329 = vmatprep.subr.bf16.mxu0 0
      %1330 = vmatpush1.bf16.msra.mxu0 0
      %1331 = vmatprep.subr.bf16.mxu0 0
      %1332 = vmatpush1.bf16.msra.mxu0 0
      %1333 = vmatprep.subr.bf16.mxu0 0
      %1334 = vmatpush1.bf16.msra.mxu0 0
      %1335 = vmatprep.subr.bf16.mxu0 0
      %1336 = vmatpush1.bf16.msra.mxu0 0
      %1337 = vmatprep.subr.bf16.mxu0 0
      %1338 = vmatpush1.bf16.msra.mxu0 0
      %1339 = vmatprep.subr.bf16.mxu0 0
      %1340 = vmatpush1.bf16.msra.mxu0 0
      %1341 = vmatprep.subr.bf16.mxu0 0
      %1342 = vmatpush1.bf16.msra.mxu0 0
      %1343 = vmatprep.mubr.bf16.mxu0 0
      %1344 = vmatmul.mubr.bf16.gmra.mrb[0].mxu0 %v1303
      %v1345 = vpop.f32.mrb[0].mxu0
      %v1346 = vadd.f32 0.0, %v1345
      %v1347 = vpop.f32.mrb[0].mxu0
      %v1348 = vpop.f32.mrb[0].mxu0
      %v1349 = vadd.f32 0.0, %v1348
      %v1350 = vpop.f32.mrb[0].mxu0
      %1351 = vmatprep.mubr.bf16.mxu0 0
      %1352 = vmatmul.mubr.bf16.gmra.mrb[0].mxu0 %v1306
      %v1353 = vpop.f32.mrb[0].mxu0
      %v1354 = vadd.f32 0.0, %v1353
      %v1355 = vpop.f32.mrb[0].mxu0
      %v1356 = vpop.f32.mrb[0].mxu0
      %v1357 = vadd.f32 0.0, %v1356
      %v1358 = vpop.f32.mrb[0].mxu0
      %1359 = vdwg.mxu0
      %v1360 = vadd.f32 %v1262, %v1346
      %v1361 = vadd.f32 %v1263, %v1349
      %v1362 = vadd.f32 %v1264, %v1354
      %v1363 = vadd.f32 %v1265, %v1357
      %v1364 = vld [vmem:[%s3] sm:$0x1]
      %v1366 = vlaneseq
      %v1367 = vshrl.u32 %v1366, 7
      %v1368 = vsub.s32 0, %v1367
      %v1369 = vrot.slane %v1364, %v1368
      %v1371 = vadd.f32 %v1360, %v1369
      %v1372 = vadd.f32 %v1361, %v1369
      %v1373 = vadd.f32 %v1362, %v1369
      %v1374 = vadd.f32 %v1363, %v1369
      %s1375 = sld [smem:[#allocation3]]
      %vm1376 = vcmp.ge.f32.partialorder %v1371, 0.0
      %vm1377 = vcmp.ge.f32.partialorder %v1372, 0.0
      %vm1378 = vcmp.ge.f32.partialorder %v1373, 0.0
      %vm1379 = vcmp.ge.f32.partialorder %v1374, 0.0
      %v1380 = vstv %s1375
      %v1381 = vmul.f32 %v1380, %v1371
      %v1382 = vmul.f32 %v1380, %v1372
      %v1383 = vmul.f32 %v1380, %v1373
      %v1384 = vmul.f32 %v1380, %v1374
      %v1385 = vsel %vm1376, %v1371, %v1381
      %v1386 = vsel %vm1377, %v1372, %v1382
      %v1387 = vsel %vm1378, %v1373, %v1383
      %v1388 = vsel %vm1379, %v1374, %v1384
      %v1389 = vld [vmem:[%s397] sm:$0xf]
      %v1390 = vld [vmem:[%s397 + $0x4] sm:$0xf]
      %v1391 = vld [vmem:[%s397 + $0x8] sm:$0xf]
      %v1392 = vld [vmem:[%s397 + $0xc] sm:$0xf]
      %v1393 = vunpack.c.l.bf16 %v1389
      %v1394 = vunpack.c.l.bf16 %v1390
      %v1395 = vunpack.c.l.bf16 %v1391
      %v1396 = vunpack.c.l.bf16 %v1392
      %v1397 = vadd.f32 %v1385, %v1393
      %v1398 = vadd.f32 %v1386, %v1394
      %v1399 = vadd.f32 %v1387, %v1395
      %v1400 = vadd.f32 %v1388, %v1396
      %vm1401 = vcmask 523264
      %1402 = vst.msk [vmem:[%s407] sm:$0xff] %vm1401, %v1397
      %1403 = vst.msk [vmem:[%s407 + $0x8] sm:$0xff] %vm1401, %v1398
      %1404 = vst.msk [vmem:[%s407 + $0x10] sm:$0xff] %vm1401, %v1399
      %1405 = vst.msk [vmem:[%s407 + $0x18] sm:$0xff] %vm1401, %v1400
      %s1406 = smul.u32 4, %s23
      %p1407 = scmp.lt.s32.totalorder %s22, 1
      %s1408 = scalar_select %p1407, %s22, 1
      %p1409 = scmp.lt.s32.totalorder %s1406, 7
      %s1410 = scalar_select %p1409, %s1406, 7
      %s1411 = smul.addr %s1408, 8
      %s1412 = sadd.s32 %s1410, %s1411
      %s1413 = smul.addr %s1412, 8
      %s1414 = scalar_lea.vmem %s6, %s1413
      // Predicated region
      $region45: #{d_upblock_forward.7} parent=43 // pred_check
        %p1415 = pneg %p201
      $region46: #{d_upblock_forward.7} parent=43 // pred_check_branch
        %1417 = sbr.rel (%p1415) target = $region48
      $region47: #{d_upblock_forward.7} parent=43 // pred_region
        %s1418 = smul.u32 4, %s23
      $region48: #{d_upblock_forward.7} parent=43 // pred_fallthru
        _
    $region44: #{d_upblock_forward.7} parent=5 // pred_fallthru
      _
    %p1419 = scmp.le.s32.totalorder 2, %s13
    // Predicated region
    $region49: #{d_upblock_forward.7} parent=5 // pred_check
      %p1420 = pneg %p1419
    $region50: #{d_upblock_forward.7} parent=5 // pred_check_branch
      %1422 = sbr.rel (%p1420) target = $region52
    $region51: #{d_upblock_forward.7} parent=5 // pred_region
      %s1423 = ssub.s32 %s13, 2
      // Predicated region
      $region53: #{d_upblock_forward.7} parent=51 // pred_check
        %p1424 = pneg %p207
      $region54: #{d_upblock_forward.7} parent=51 // pred_check_branch
        %1426 = sbr.rel (%p1424) target = $region56
      $region55: #{d_upblock_forward.7} parent=51 // pred_region
        %s1427 = smul.u32 4, %s25
        %p1428 = scmp.lt.s32.totalorder %s24, 1
        %s1429 = scalar_select %p1428, %s24, 1
        %p1430 = scmp.lt.s32.totalorder %s1427, 7
        %s1431 = scalar_select %p1430, %s1427, 7
        %s1432 = smul.addr %s1429, 8
        %s1433 = sadd.s32 %s1431, %s1432
        %s1434 = smul.addr %s1433, 8
        %s1435 = scalar_lea.vmem %s6, %s1434
      $region56: #{d_upblock_forward.7} parent=51 // pred_fallthru
        _
    $region52: #{d_upblock_forward.7} parent=5 // pred_fallthru
      _
  $region6: #{d_upblock_forward.7} parent=0 // loop_footer
    %s17 = sadd.s32 1, %s13
  $region7: #{d_upblock_forward.7} parent=0 // loop_footer_branch
    %12 = sbr.rel target = $region3
  $region8: #{d_upblock_forward.7} parent=0 // loop_exit
    _

</llo_original>
